<compile_context>
chip_gen: v7x
topology: tpu7x:2x2x1
jax: 0.10.0
libtpu: 0.0.40
codegen_flags: <defaults>
</compile_context>

<pallas_src>
import functools

import jax
import jax.numpy as jnp
from jax import lax
from jax.experimental import pallas as pl
from jax.experimental.pallas import tpu as pltpu


OUT_PAD = 128   # lane-dense padded output row width per document


# ----------------------------------------------------------------------------
# In-kernel helpers
# ----------------------------------------------------------------------------
def _gelu_exact(x):
    # exact (erf-based) GELU, matching nn.GELU() default (approximate='none')
    return 0.5 * x * (1.0 + lax.erf(x * 0.7071067811865476))


def _gru_step(gi_t, h, wh, bhn, H):
    """One fused bidirectional GRU step (PyTorch semantics).

    gi_t: (B, 8H) input projection, lane layout [rf rb zf zb nf nb pad pad];
          r/z lanes already carry b_ih + b_hh (folded), n lanes carry b_ih only.
    h   : (B, 2H) hidden state [hf | hb].
    wh  : (2H, 8H) block hidden weights (hf rows -> fwd lanes, hb rows -> bwd lanes).
    bhn : (B, 2H) hidden n-gate bias [b_hn_f | b_hn_b] (must stay inside r*(...)).
    """
    f32 = jnp.float32
    gh = jnp.dot(h, wh, preferred_element_type=f32)                   # (B, 8H)
    # one full-128-lane sigmoid covers r and z of BOTH directions
    rz = jax.nn.sigmoid(gi_t[:, 0:4 * H] + gh[:, 0:4 * H])            # (B, 4H)
    r = rz[:, 0:2 * H]                                                # [rf | rb]
    z = rz[:, 2 * H:4 * H]                                            # [zf | zb]
    n = jnp.tanh(gi_t[:, 4 * H:6 * H] + r * (gh[:, 4 * H:6 * H] + bhn))
    return (1.0 - z) * n + z * h                                      # (B, 2H)


# ----------------------------------------------------------------------------
# Fused ScopeIt forward kernel (one grid step == one document)
# ----------------------------------------------------------------------------
def _scopeit_kernel(
    x_ref,                                   # (1, T*S, E) time-major flattened doc
    g1_wi_ref, g1_bi_ref,                    # (2E, 8H), (1, 8H)
    g1_wh_ref, g1_bhn_ref,                   # (2H, 8H), (1, 2H)
    g2_wi_ref, g2_bi_ref,                    # (2H, 8H), (1, 8H)
    g2_wh_ref, g2_bhn_ref,                   # (2H, 8H), (1, 2H)
    sb_w1_ref, sb_b1_ref,                    # (2H, 8H), (1, 8H)   sent Boom linear1
    sl_w4_ref, sl_b_ref,                     # (1, 8H), (1, 1)     sent head (chunk-fold folded)
    db_w1_ref, db_b1_ref,                    # (H, 4H), (1, 4H)    doc Boom linear1
    dl_w4_ref, dl_b_ref,                     # (1, 4H), (1, 1)     doc head
    out_ref,                                 # (1, 1, OUT_PAD)
    *, S, T, H,
):
    f32 = jnp.float32
    x = x_ref[0]                             # (T*S, E)
    E = x.shape[1]

    # ----------------------------- bigru1 (batch = S sentences) -------------
    # Hoisted input projections: fwd contribution populates fwd gate lanes only,
    # bwd contribution populates bwd gate lanes only; biases added once.
    gi1f = jnp.dot(x, g1_wi_ref[0:E, :], preferred_element_type=f32) + g1_bi_ref[...]
    gi1b = jnp.dot(x, g1_wi_ref[E:2 * E, :], preferred_element_type=f32)
    wh1 = g1_wh_ref[...]
    bhn1 = jnp.broadcast_to(g1_bhn_ref[...], (S, 2 * H))   # hoisted broadcast

    h1 = jnp.zeros((S, 2 * H), f32)                         # [hf | hb]
    # Fully unrolled static loops are fine at T=S=8, H=32; for larger models
    # stage gi1* in VMEM scratch, slice with pl.ds, use lax.fori_loop(unroll=True).
    for t in range(T):
        tb = T - 1 - t
        gi_t = gi1f[t * S:(t + 1) * S, :] + gi1b[tb * S:(tb + 1) * S, :]
        h1 = _gru_step(gi_t, h1, wh1, bhn1, H)

    sent_emb = h1[:, 0:H] + h1[:, H:2 * H]                  # (S, H): last fwd + last bwd

    # ----------------------------- bigru2 (batch = 1, seq = S) --------------
    gi2f = jnp.dot(sent_emb, g2_wi_ref[0:H, :], preferred_element_type=f32) + g2_bi_ref[...]
    gi2b = jnp.dot(sent_emb, g2_wi_ref[H:2 * H, :], preferred_element_type=f32)
    wh2 = g2_wh_ref[...]
    bhn2 = g2_bhn_ref[...]                                  # (1, 2H)

    h2 = jnp.zeros((1, 2 * H), f32)
    outs_f, outs_b = [], []
    for t in range(S):
        tb = S - 1 - t
        gi_t = gi2f[t:t + 1, :] + gi2b[tb:tb + 1, :]
        h2 = _gru_step(gi_t, h2, wh2, bhn2, H)
        outs_f.append(h2[:, 0:H])        # fwd output at position t
        outs_b.append(h2[:, H:2 * H])    # bwd output at position S-1-t

    doc_emb = h2[:, 0:H] + h2[:, H:2 * H]                   # (1, H)
    # GRU2 output sequence stays entirely in vregs (no VMEM scratch round trip)
    gru2_out = jnp.concatenate(
        [jnp.concatenate(outs_f, axis=0),
         jnp.concatenate(outs_b[::-1], axis=0)], axis=1)    # (S, 2H)

    # ------------------- sent Boom + sent_linear (chunk-sum folded) ---------
    gs = _gelu_exact(jnp.dot(gru2_out, sb_w1_ref[...],
                             preferred_element_type=f32) + sb_b1_ref[...])   # (S, 8H)
    sent_logits = (jnp.sum(gs * sl_w4_ref[...], axis=1, keepdims=True)
                   + sl_b_ref[...])                          # (S, 1) VPU mul + lane reduce

    # ------------------------ doc Boom + doc_linear --------------------------
    gd = _gelu_exact(jnp.dot(doc_emb, db_w1_ref[...],
                             preferred_element_type=f32) + db_b1_ref[...])   # (1, 4H)
    doc_logit = (jnp.sum(gd * dl_w4_ref[...], axis=1, keepdims=True)
                 + dl_b_ref[...])                            # (1, 1)

    # -------- lane-dense padded output row: [sent_0..sent_{S-1}, doc, 0...] --
    lane = lax.broadcasted_iota(jnp.int32, (S, OUT_PAD), 1)
    subl = lax.broadcasted_iota(jnp.int32, (S, OUT_PAD), 0)
    row = jnp.sum(jnp.where(lane == subl, sent_logits, 0.0),
                  axis=0, keepdims=True)                     # (1, OUT_PAD)
    lane1 = lax.broadcasted_iota(jnp.int32, (1, OUT_PAD), 1)
    row = row + jnp.where(lane1 == S, doc_logit, 0.0)
    out_ref[0] = row                                         # single unmasked store


# ----------------------------------------------------------------------------
# Parameters (deterministic synthetic init, PyTorch shape conventions)
# ----------------------------------------------------------------------------
def init_params(key, emb_size, hidden):
    ks = list(jax.random.split(key, 24))
    it = iter(ks)

    def mk(shape, scale=0.1):
        return jax.random.normal(next(it), shape, dtype=jnp.float32) * scale

    H, E = hidden, emb_size
    p = {}
    # bigru1 (input E -> H, bidirectional, 1 layer)
    p['g1_wif'] = mk((3 * H, E)); p['g1_whf'] = mk((3 * H, H))
    p['g1_bif'] = mk((3 * H,));   p['g1_bhf'] = mk((3 * H,))
    p['g1_wib'] = mk((3 * H, E)); p['g1_whb'] = mk((3 * H, H))
    p['g1_bib'] = mk((3 * H,));   p['g1_bhb'] = mk((3 * H,))
    # bigru2 (input H -> H, bidirectional, 1 layer)
    p['g2_wif'] = mk((3 * H, H)); p['g2_whf'] = mk((3 * H, H))
    p['g2_bif'] = mk((3 * H,));   p['g2_bhf'] = mk((3 * H,))
    p['g2_wib'] = mk((3 * H, H)); p['g2_whb'] = mk((3 * H, H))
    p['g2_bib'] = mk((3 * H,));   p['g2_bhb'] = mk((3 * H,))
    # sent_boomer: Boom(2H, 8H, shortcut=True) ; sent_linear: Linear(2H, 1)
    p['sb_w1'] = mk((8 * H, 2 * H)); p['sb_b1'] = mk((8 * H,))
    p['sl_w']  = mk((1, 2 * H));     p['sl_b']  = mk((1,))
    # doc_boomer: Boom(H, 4H, shortcut=True) ; doc_linear: Linear(H, 1)
    p['db_w1'] = mk((4 * H, H));     p['db_b1'] = mk((4 * H,))
    p['dl_w']  = mk((1, H));         p['dl_b']  = mk((1,))
    return p


def prepare_kernel_params(p):
    """One-time layout prep: interleave/pad gates, fold biases, tile head weights.

    Gate lane layout (width G = 8H): [rf rb zf zb nf nb pad pad], each block H wide.
    """
    H = p['g1_whf'].shape[1]
    G = 8 * H

    def interleave_wi(wf, wb):
        # wf, wb: PyTorch weight_ih (3H, in_dim) rows [W_ir; W_iz; W_in] per direction.
        # -> (2*in_dim, G): rows 0:in feed fwd lanes, rows in:2in feed bwd lanes.
        in_dim = wf.shape[1]
        w = jnp.zeros((2 * in_dim, G), jnp.float32)
        w = w.at[0:in_dim, 0 * H:1 * H].set(wf[0:H].T)            # rf
        w = w.at[0:in_dim, 2 * H:3 * H].set(wf[H:2 * H].T)        # zf
        w = w.at[0:in_dim, 4 * H:5 * H].set(wf[2 * H:3 * H].T)    # nf
        w = w.at[in_dim:2 * in_dim, 1 * H:2 * H].set(wb[0:H].T)   # rb
        w = w.at[in_dim:2 * in_dim, 3 * H:4 * H].set(wb[H:2 * H].T)    # zb
        w = w.at[in_dim:2 * in_dim, 5 * H:6 * H].set(wb[2 * H:3 * H].T)  # nb
        return w

    def interleave_wh(wf, wb):
        # (3H, H) x2 -> (2H, G): hf rows feed fwd lanes, hb rows feed bwd lanes.
        w = jnp.zeros((2 * H, G), jnp.float32)
        w = w.at[0:H, 0 * H:1 * H].set(wf[0:H].T)
        w = w.at[0:H, 2 * H:3 * H].set(wf[H:2 * H].T)
        w = w.at[0:H, 4 * H:5 * H].set(wf[2 * H:3 * H].T)
        w = w.at[H:2 * H, 1 * H:2 * H].set(wb[0:H].T)
        w = w.at[H:2 * H, 3 * H:4 * H].set(wb[H:2 * H].T)
        w = w.at[H:2 * H, 5 * H:6 * H].set(wb[2 * H:3 * H].T)
        return w

    def fold_bias(bif, bhf, bib, bhb):
        # r/z lanes carry b_ih + b_hh (folded); n lanes carry b_ih only.
        b = jnp.zeros((1, G), jnp.float32)
        b = b.at[0, 0 * H:1 * H].set(bif[0:H] + bhf[0:H])              # rf
        b = b.at[0, 1 * H:2 * H].set(bib[0:H] + bhb[0:H])              # rb
        b = b.at[0, 2 * H:3 * H].set(bif[H:2 * H] + bhf[H:2 * H])      # zf
        b = b.at[0, 3 * H:4 * H].set(bib[H:2 * H] + bhb[H:2 * H])      # zb
        b = b.at[0, 4 * H:5 * H].set(bif[2 * H:3 * H])                 # nf (ih only)
        b = b.at[0, 5 * H:6 * H].set(bib[2 * H:3 * H])                 # nb (ih only)
        return b

    def bhn_cat(bhf, bhb):
        # hidden n-gate biases, kept per step inside r * (gh_n + b_hn)
        return jnp.concatenate([bhf[2 * H:3 * H], bhb[2 * H:3 * H]]).reshape(1, 2 * H)

    return dict(
        g1_wi=interleave_wi(p['g1_wif'], p['g1_wib']),
        g1_bi=fold_bias(p['g1_bif'], p['g1_bhf'], p['g1_bib'], p['g1_bhb']),
        g1_wh=interleave_wh(p['g1_whf'], p['g1_whb']),
        g1_bhn=bhn_cat(p['g1_bhf'], p['g1_bhb']),
        g2_wi=interleave_wi(p['g2_wif'], p['g2_wib']),
        g2_bi=fold_bias(p['g2_bif'], p['g2_bhf'], p['g2_bib'], p['g2_bhb']),
        g2_wh=interleave_wh(p['g2_whf'], p['g2_whb']),
        g2_bhn=bhn_cat(p['g2_bhf'], p['g2_bhb']),
        sb_w1=p['sb_w1'].T, sb_b1=p['sb_b1'].reshape(1, -1),
        sl_w4=jnp.tile(p['sl_w'], (1, 4)), sl_b=p['sl_b'].reshape(1, 1),
        db_w1=p['db_w1'].T, db_b1=p['db_b1'].reshape(1, -1),
        dl_w4=jnp.tile(p['dl_w'], (1, 4)), dl_b=p['dl_b'].reshape(1, 1),
    )


# ----------------------------------------------------------------------------
# Forward wrappers: one pallas_call, grid over documents
# ----------------------------------------------------------------------------
def scopeit_forward_batched(embeddings, kp):
    """embeddings: (D, S, T, E) -> (D, S+1, 1). One grid step per document."""
    D, S, T, E = embeddings.shape
    H = kp['g1_wh'].shape[0] // 2
    assert S + 1 <= OUT_PAD

    # time-major flatten so per-step gi slices are contiguous S-row blocks
    x_tm = jnp.transpose(embeddings, (0, 2, 1, 3)).reshape(D, T * S, E)

    weights = (kp['g1_wi'], kp['g1_bi'], kp['g1_wh'], kp['g1_bhn'],
               kp['g2_wi'], kp['g2_bi'], kp['g2_wh'], kp['g2_bhn'],
               kp['sb_w1'], kp['sb_b1'], kp['sl_w4'], kp['sl_b'],
               kp['db_w1'], kp['db_b1'], kp['dl_w4'], kp['dl_b'])
    # constant index maps -> weights are DMA'd once and stay resident in VMEM
    weight_specs = [pl.BlockSpec(w.shape, lambda d: (0, 0)) for w in weights]

    out = pl.pallas_call(
        functools.partial(_scopeit_kernel, S=S, T=T, H=H),
        out_shape=jax.ShapeDtypeStruct((D, 1, OUT_PAD), jnp.float32),
        grid=(D,),
        in_specs=[pl.BlockSpec((1, T * S, E), lambda d: (d, 0, 0))] + weight_specs,
        out_specs=pl.BlockSpec((1, 1, OUT_PAD), lambda d: (d, 0, 0)),
        compiler_params=pltpu.CompilerParams(
            dimension_semantics=("parallel",)),   # v7x: docs shard across 2 TCs
    )(x_tm, *weights)

    return out[:, 0, :S + 1, None]                # (D, S+1, 1)


def scopeit_forward(embeddings, kp):
    """Single-document forward matching ScopeIt.forward: (S, T, E) -> (S+1, 1)."""
    return scopeit_forward_batched(embeddings[None], kp)[0]


# ----------------------------------------------------------------------------
# Pure-JAX reference (PyTorch-convention weights) for correctness check
# ----------------------------------------------------------------------------
def _ref_gru_step(x_t, h, w_ih, w_hh, b_ih, b_hh):
    H = h.shape[-1]
    gi = x_t @ w_ih.T + b_ih
    gh = h @ w_hh.T + b_hh
    r = jax.nn.sigmoid(gi[:, :H] + gh[:, :H])
    z = jax.nn.sigmoid(gi[:, H:2 * H] + gh[:, H:2 * H])
    n = jnp.tanh(gi[:, 2 * H:] + r * gh[:, 2 * H:])
    return (1.0 - z) * n + z * h


def scopeit_reference(embeddings, p):
    S, T, E = embeddings.shape
    H = p['g1_whf'].shape[1]

    hf = jnp.zeros((S, H), jnp.float32)
    hb = jnp.zeros((S, H), jnp.float32)
    for t in range(T):
        hf = _ref_gru_step(embeddings[:, t, :], hf, p['g1_wif'], p['g1_whf'],
                           p['g1_bif'], p['g1_bhf'])
        hb = _ref_gru_step(embeddings[:, T - 1 - t, :], hb, p['g1_wib'], p['g1_whb'],
                           p['g1_bib'], p['g1_bhb'])
    sent_emb = hf + hb                                    # (S, H)

    hf2 = jnp.zeros((1, H), jnp.float32)
    hb2 = jnp.zeros((1, H), jnp.float32)
    outf = [None] * S
    outb = [None] * S
    for t in range(S):
        hf2 = _ref_gru_step(sent_emb[t:t + 1], hf2, p['g2_wif'], p['g2_whf'],
                            p['g2_bif'], p['g2_bhf'])
        outf[t] = hf2
        tb = S - 1 - t
        hb2 = _ref_gru_step(sent_emb[tb:tb + 1], hb2, p['g2_wib'], p['g2_whb'],
                            p['g2_bib'], p['g2_bhb'])
        outb[tb] = hb2
    gru2_out = jnp.concatenate([jnp.concatenate(outf, 0),
                                jnp.concatenate(outb, 0)], axis=-1)   # (S, 2H)
    doc_emb = hf2 + hb2                                                # (1, H)

    def boom(x, w1, b1):
        D = x.shape[-1]
        g = jax.nn.gelu(x @ w1.T + b1, approximate=False)
        return g.reshape(*x.shape[:-1], 4, D).sum(axis=-2)

    sent_logits = boom(gru2_out, p['sb_w1'], p['sb_b1']) @ p['sl_w'].T + p['sl_b']
    doc_logit = boom(doc_emb, p['db_w1'], p['db_b1']) @ p['dl_w'].T + p['dl_b']
    return jnp.concatenate([sent_logits, doc_logit], axis=0)          # (S+1, 1)


# ----------------------------------------------------------------------------
if __name__ == "__main__":
    NUM_SENTS, SEQ_LEN, EMB, HIDDEN = 8, 8, 32, 32
    NUM_DOCS = 4

    key = jax.random.PRNGKey(0)
    k_x, k_p = jax.random.split(key)
    embeddings = jax.random.normal(
        k_x, (NUM_DOCS, NUM_SENTS, SEQ_LEN, EMB), dtype=jnp.float32)
    params = init_params(k_p, EMB, HIDDEN)
    kparams = jax.tree_util.tree_map(jax.block_until_ready,
                                     prepare_kernel_params(params))

    # batched forward: one fused pallas_call, grid over documents
    out = jax.block_until_ready(jax.jit(scopeit_forward_batched)(embeddings, kparams))
    assert out.shape == (NUM_DOCS, NUM_SENTS + 1, 1), out.shape

    # per-document check against the pure-JAX PyTorch-convention reference
    for d in range(NUM_DOCS):
        ref_d = scopeit_reference(embeddings[d], params)
        assert jnp.allclose(out[d], ref_d, atol=2e-4, rtol=2e-4), (d, out[d], ref_d)

    # single-document entry point (module-equivalent output shape)
    out1 = jax.block_until_ready(jax.jit(scopeit_forward)(embeddings[0], kparams))
    assert out1.shape == (NUM_SENTS + 1, 1), out1.shape
    assert jnp.allclose(out1, out[0], atol=1e-5, rtol=1e-5)

    print("KERNEL_OK")
</pallas_src>

<mosaic_0001>
module attributes {stable_mosaic.version = 11 : i64} {
  func.func @_scopeit_kernel(%arg0: i32, %arg1: memref<1x64x32xf32, #tpu.memory_space<vmem>>, %arg2: memref<64x256xf32, #tpu.memory_space<vmem>>, %arg3: memref<1x256xf32, #tpu.memory_space<vmem>>, %arg4: memref<64x256xf32, #tpu.memory_space<vmem>>, %arg5: memref<1x64xf32, #tpu.memory_space<vmem>>, %arg6: memref<64x256xf32, #tpu.memory_space<vmem>>, %arg7: memref<1x256xf32, #tpu.memory_space<vmem>>, %arg8: memref<64x256xf32, #tpu.memory_space<vmem>>, %arg9: memref<1x64xf32, #tpu.memory_space<vmem>>, %arg10: memref<64x256xf32, #tpu.memory_space<vmem>>, %arg11: memref<1x256xf32, #tpu.memory_space<vmem>>, %arg12: memref<1x256xf32, #tpu.memory_space<vmem>>, %arg13: memref<1x1xf32, #tpu.memory_space<vmem>>, %arg14: memref<32x128xf32, #tpu.memory_space<vmem>>, %arg15: memref<1x128xf32, #tpu.memory_space<vmem>>, %arg16: memref<1x128xf32, #tpu.memory_space<vmem>>, %arg17: memref<1x1xf32, #tpu.memory_space<vmem>>, %arg18: memref<1x1x128xf32, #tpu.memory_space<vmem>>) attributes {dimension_semantics = [#tpu.dimension_semantics<parallel>], iteration_bounds = array<i64: 4>, scalar_prefetch = 0 : i64, scratch_operands = 0 : i64, tpu.core_type = #tpu.core_type<tc>, window_params = [{transform_indices = @transform_0, window_bounds = array<i64: 1, 64, 32>}, {pipeline_mode = #tpu.pipeline_mode<synchronous>, transform_indices = @transform_1, window_bounds = array<i64: 64, 256>}, {pipeline_mode = #tpu.pipeline_mode<synchronous>, transform_indices = @transform_2, window_bounds = array<i64: 1, 256>}, {pipeline_mode = #tpu.pipeline_mode<synchronous>, transform_indices = @transform_3, window_bounds = array<i64: 64, 256>}, {pipeline_mode = #tpu.pipeline_mode<synchronous>, transform_indices = @transform_4, window_bounds = array<i64: 1, 64>}, {pipeline_mode = #tpu.pipeline_mode<synchronous>, transform_indices = @transform_5, window_bounds = array<i64: 64, 256>}, {pipeline_mode = #tpu.pipeline_mode<synchronous>, transform_indices = @transform_6, window_bounds = array<i64: 1, 256>}, {pipeline_mode = #tpu.pipeline_mode<synchronous>, transform_indices = @transform_7, window_bounds = array<i64: 64, 256>}, {pipeline_mode = #tpu.pipeline_mode<synchronous>, transform_indices = @transform_8, window_bounds = array<i64: 1, 64>}, {pipeline_mode = #tpu.pipeline_mode<synchronous>, transform_indices = @transform_9, window_bounds = array<i64: 64, 256>}, {pipeline_mode = #tpu.pipeline_mode<synchronous>, transform_indices = @transform_10, window_bounds = array<i64: 1, 256>}, {pipeline_mode = #tpu.pipeline_mode<synchronous>, transform_indices = @transform_11, window_bounds = array<i64: 1, 256>}, {pipeline_mode = #tpu.pipeline_mode<synchronous>, transform_indices = @transform_12, window_bounds = array<i64: 1, 1>}, {pipeline_mode = #tpu.pipeline_mode<synchronous>, transform_indices = @transform_13, window_bounds = array<i64: 32, 128>}, {pipeline_mode = #tpu.pipeline_mode<synchronous>, transform_indices = @transform_14, window_bounds = array<i64: 1, 128>}, {pipeline_mode = #tpu.pipeline_mode<synchronous>, transform_indices = @transform_15, window_bounds = array<i64: 1, 128>}, {pipeline_mode = #tpu.pipeline_mode<synchronous>, transform_indices = @transform_16, window_bounds = array<i64: 1, 1>}, {transform_indices = @transform_17, window_bounds = array<i64: 1, 1, 128>}]} {
    %c0 = arith.constant 0 : index
    %c0_0 = arith.constant 0 : index
    %c0_1 = arith.constant 0 : index
    %0 = vector.load %arg1[%c0, %c0_0, %c0_1] : memref<1x64x32xf32, #tpu.memory_space<vmem>>, vector<1x64x32xf32>
    %1 = vector.shape_cast %0 : vector<1x64x32xf32> to vector<64x32xf32>
    %c0_2 = arith.constant 0 : index
    %c0_3 = arith.constant 0 : index
    %2 = vector.load %arg2[%c0_2, %c0_3] : memref<64x256xf32, #tpu.memory_space<vmem>>, vector<32x256xf32>
    %cst = arith.constant dense<0.000000e+00> : vector<64x256xf32>
    %3 = tpu.matmul %1, %2, %cst {dimension_numbers = #tpu.dot_dimension_numbers<[1], [0], [0], [1], [0, 0, 1, 1], [], []>} : vector<64x32xf32>, vector<32x256xf32>, vector<64x256xf32> -> vector<64x256xf32>
    %c0_4 = arith.constant 0 : index
    %c0_5 = arith.constant 0 : index
    %4 = vector.load %arg3[%c0_4, %c0_5] : memref<1x256xf32, #tpu.memory_space<vmem>>, vector<1x256xf32>
    %5 = vector.broadcast %4 : vector<1x256xf32> to vector<64x256xf32>
    %6 = arith.addf %3, %5 : vector<64x256xf32>
    %c32 = arith.constant 32 : index
    %c0_6 = arith.constant 0 : index
    %7 = vector.load %arg2[%c32, %c0_6] : memref<64x256xf32, #tpu.memory_space<vmem>>, vector<32x256xf32>
    %cst_7 = arith.constant dense<0.000000e+00> : vector<64x256xf32>
    %8 = tpu.matmul %1, %7, %cst_7 {dimension_numbers = #tpu.dot_dimension_numbers<[1], [0], [0], [1], [0, 0, 1, 1], [], []>} : vector<64x32xf32>, vector<32x256xf32>, vector<64x256xf32> -> vector<64x256xf32>
    %c0_8 = arith.constant 0 : index
    %c0_9 = arith.constant 0 : index
    %9 = vector.load %arg4[%c0_8, %c0_9] : memref<64x256xf32, #tpu.memory_space<vmem>>, vector<64x256xf32>
    %c0_10 = arith.constant 0 : index
    %c0_11 = arith.constant 0 : index
    %10 = vector.load %arg5[%c0_10, %c0_11] : memref<1x64xf32, #tpu.memory_space<vmem>>, vector<1x64xf32>
    %11 = vector.shape_cast %10 : vector<1x64xf32> to vector<1x64xf32>
    %12 = vector.broadcast %11 : vector<1x64xf32> to vector<8x64xf32>
    %cst_12 = arith.constant 0.000000e+00 : f32
    %13 = vector.broadcast %cst_12 : f32 to vector<8x64xf32>
    %14 = vector.extract_strided_slice %6 {offsets = [0, 0], sizes = [8, 256], strides = [1, 1]} : vector<64x256xf32> to vector<8x256xf32>
    %15 = vector.extract_strided_slice %8 {offsets = [56, 0], sizes = [8, 256], strides = [1, 1]} : vector<64x256xf32> to vector<8x256xf32>
    %16 = arith.addf %14, %15 : vector<8x256xf32>
    %cst_13 = arith.constant dense<0.000000e+00> : vector<8x256xf32>
    %17 = tpu.matmul %13, %9, %cst_13 {dimension_numbers = #tpu.dot_dimension_numbers<[1], [0], [0], [1], [0, 0, 1, 1], [], []>} : vector<8x64xf32>, vector<64x256xf32>, vector<8x256xf32> -> vector<8x256xf32>
    %18 = vector.extract_strided_slice %16 {offsets = [0, 0], sizes = [8, 128], strides = [1, 1]} : vector<8x256xf32> to vector<8x128xf32>
    %19 = vector.extract_strided_slice %17 {offsets = [0, 0], sizes = [8, 128], strides = [1, 1]} : vector<8x256xf32> to vector<8x128xf32>
    %20 = arith.addf %18, %19 : vector<8x128xf32>
    %21 = arith.negf %20 : vector<8x128xf32>
    %22 = math.exp %21 : vector<8x128xf32>
    %cst_14 = arith.constant 1.000000e+00 : f32
    %23 = vector.broadcast %cst_14 : f32 to vector<8x128xf32>
    %24 = arith.addf %23, %22 : vector<8x128xf32>
    %25 = arith.divf %23, %24 : vector<8x128xf32>
    %26 = vector.extract_strided_slice %25 {offsets = [0, 0], sizes = [8, 64], strides = [1, 1]} : vector<8x128xf32> to vector<8x64xf32>
    %27 = vector.extract_strided_slice %25 {offsets = [0, 64], sizes = [8, 64], strides = [1, 1]} : vector<8x128xf32> to vector<8x64xf32>
    %28 = vector.extract_strided_slice %16 {offsets = [0, 128], sizes = [8, 64], strides = [1, 1]} : vector<8x256xf32> to vector<8x64xf32>
    %29 = vector.extract_strided_slice %17 {offsets = [0, 128], sizes = [8, 64], strides = [1, 1]} : vector<8x256xf32> to vector<8x64xf32>
    %30 = arith.addf %29, %12 : vector<8x64xf32>
    %31 = arith.mulf %26, %30 : vector<8x64xf32>
    %32 = arith.addf %28, %31 : vector<8x64xf32>
    %33 = math.tanh %32 : vector<8x64xf32>
    %cst_15 = arith.constant 1.000000e+00 : f32
    %34 = vector.broadcast %cst_15 : f32 to vector<8x64xf32>
    %35 = arith.subf %34, %27 : vector<8x64xf32>
    %36 = arith.mulf %35, %33 : vector<8x64xf32>
    %37 = arith.mulf %27, %13 : vector<8x64xf32>
    %38 = arith.addf %36, %37 : vector<8x64xf32>
    %39 = vector.extract_strided_slice %6 {offsets = [8, 0], sizes = [8, 256], strides = [1, 1]} : vector<64x256xf32> to vector<8x256xf32>
    %40 = vector.extract_strided_slice %8 {offsets = [48, 0], sizes = [8, 256], strides = [1, 1]} : vector<64x256xf32> to vector<8x256xf32>
    %41 = arith.addf %39, %40 : vector<8x256xf32>
    %cst_16 = arith.constant dense<0.000000e+00> : vector<8x256xf32>
    %42 = tpu.matmul %38, %9, %cst_16 {dimension_numbers = #tpu.dot_dimension_numbers<[1], [0], [0], [1], [0, 0, 1, 1], [], []>} : vector<8x64xf32>, vector<64x256xf32>, vector<8x256xf32> -> vector<8x256xf32>
    %43 = vector.extract_strided_slice %41 {offsets = [0, 0], sizes = [8, 128], strides = [1, 1]} : vector<8x256xf32> to vector<8x128xf32>
    %44 = vector.extract_strided_slice %42 {offsets = [0, 0], sizes = [8, 128], strides = [1, 1]} : vector<8x256xf32> to vector<8x128xf32>
    %45 = arith.addf %43, %44 : vector<8x128xf32>
    %46 = arith.negf %45 : vector<8x128xf32>
    %47 = math.exp %46 : vector<8x128xf32>
    %cst_17 = arith.constant 1.000000e+00 : f32
    %48 = vector.broadcast %cst_17 : f32 to vector<8x128xf32>
    %49 = arith.addf %48, %47 : vector<8x128xf32>
    %50 = arith.divf %48, %49 : vector<8x128xf32>
    %51 = vector.extract_strided_slice %50 {offsets = [0, 0], sizes = [8, 64], strides = [1, 1]} : vector<8x128xf32> to vector<8x64xf32>
    %52 = vector.extract_strided_slice %50 {offsets = [0, 64], sizes = [8, 64], strides = [1, 1]} : vector<8x128xf32> to vector<8x64xf32>
    %53 = vector.extract_strided_slice %41 {offsets = [0, 128], sizes = [8, 64], strides = [1, 1]} : vector<8x256xf32> to vector<8x64xf32>
    %54 = vector.extract_strided_slice %42 {offsets = [0, 128], sizes = [8, 64], strides = [1, 1]} : vector<8x256xf32> to vector<8x64xf32>
    %55 = arith.addf %54, %12 : vector<8x64xf32>
    %56 = arith.mulf %51, %55 : vector<8x64xf32>
    %57 = arith.addf %53, %56 : vector<8x64xf32>
    %58 = math.tanh %57 : vector<8x64xf32>
    %cst_18 = arith.constant 1.000000e+00 : f32
    %59 = vector.broadcast %cst_18 : f32 to vector<8x64xf32>
    %60 = arith.subf %59, %52 : vector<8x64xf32>
    %61 = arith.mulf %60, %58 : vector<8x64xf32>
    %62 = arith.mulf %52, %38 : vector<8x64xf32>
    %63 = arith.addf %61, %62 : vector<8x64xf32>
    %64 = vector.extract_strided_slice %6 {offsets = [16, 0], sizes = [8, 256], strides = [1, 1]} : vector<64x256xf32> to vector<8x256xf32>
    %65 = vector.extract_strided_slice %8 {offsets = [40, 0], sizes = [8, 256], strides = [1, 1]} : vector<64x256xf32> to vector<8x256xf32>
    %66 = arith.addf %64, %65 : vector<8x256xf32>
    %cst_19 = arith.constant dense<0.000000e+00> : vector<8x256xf32>
    %67 = tpu.matmul %63, %9, %cst_19 {dimension_numbers = #tpu.dot_dimension_numbers<[1], [0], [0], [1], [0, 0, 1, 1], [], []>} : vector<8x64xf32>, vector<64x256xf32>, vector<8x256xf32> -> vector<8x256xf32>
    %68 = vector.extract_strided_slice %66 {offsets = [0, 0], sizes = [8, 128], strides = [1, 1]} : vector<8x256xf32> to vector<8x128xf32>
    %69 = vector.extract_strided_slice %67 {offsets = [0, 0], sizes = [8, 128], strides = [1, 1]} : vector<8x256xf32> to vector<8x128xf32>
    %70 = arith.addf %68, %69 : vector<8x128xf32>
    %71 = arith.negf %70 : vector<8x128xf32>
    %72 = math.exp %71 : vector<8x128xf32>
    %cst_20 = arith.constant 1.000000e+00 : f32
    %73 = vector.broadcast %cst_20 : f32 to vector<8x128xf32>
    %74 = arith.addf %73, %72 : vector<8x128xf32>
    %75 = arith.divf %73, %74 : vector<8x128xf32>
    %76 = vector.extract_strided_slice %75 {offsets = [0, 0], sizes = [8, 64], strides = [1, 1]} : vector<8x128xf32> to vector<8x64xf32>
    %77 = vector.extract_strided_slice %75 {offsets = [0, 64], sizes = [8, 64], strides = [1, 1]} : vector<8x128xf32> to vector<8x64xf32>
    %78 = vector.extract_strided_slice %66 {offsets = [0, 128], sizes = [8, 64], strides = [1, 1]} : vector<8x256xf32> to vector<8x64xf32>
    %79 = vector.extract_strided_slice %67 {offsets = [0, 128], sizes = [8, 64], strides = [1, 1]} : vector<8x256xf32> to vector<8x64xf32>
    %80 = arith.addf %79, %12 : vector<8x64xf32>
    %81 = arith.mulf %76, %80 : vector<8x64xf32>
    %82 = arith.addf %78, %81 : vector<8x64xf32>
    %83 = math.tanh %82 : vector<8x64xf32>
    %cst_21 = arith.constant 1.000000e+00 : f32
    %84 = vector.broadcast %cst_21 : f32 to vector<8x64xf32>
    %85 = arith.subf %84, %77 : vector<8x64xf32>
    %86 = arith.mulf %85, %83 : vector<8x64xf32>
    %87 = arith.mulf %77, %63 : vector<8x64xf32>
    %88 = arith.addf %86, %87 : vector<8x64xf32>
    %89 = vector.extract_strided_slice %6 {offsets = [24, 0], sizes = [8, 256], strides = [1, 1]} : vector<64x256xf32> to vector<8x256xf32>
    %90 = vector.extract_strided_slice %8 {offsets = [32, 0], sizes = [8, 256], strides = [1, 1]} : vector<64x256xf32> to vector<8x256xf32>
    %91 = arith.addf %89, %90 : vector<8x256xf32>
    %cst_22 = arith.constant dense<0.000000e+00> : vector<8x256xf32>
    %92 = tpu.matmul %88, %9, %cst_22 {dimension_numbers = #tpu.dot_dimension_numbers<[1], [0], [0], [1], [0, 0, 1, 1], [], []>} : vector<8x64xf32>, vector<64x256xf32>, vector<8x256xf32> -> vector<8x256xf32>
    %93 = vector.extract_strided_slice %91 {offsets = [0, 0], sizes = [8, 128], strides = [1, 1]} : vector<8x256xf32> to vector<8x128xf32>
    %94 = vector.extract_strided_slice %92 {offsets = [0, 0], sizes = [8, 128], strides = [1, 1]} : vector<8x256xf32> to vector<8x128xf32>
    %95 = arith.addf %93, %94 : vector<8x128xf32>
    %96 = arith.negf %95 : vector<8x128xf32>
    %97 = math.exp %96 : vector<8x128xf32>
    %cst_23 = arith.constant 1.000000e+00 : f32
    %98 = vector.broadcast %cst_23 : f32 to vector<8x128xf32>
    %99 = arith.addf %98, %97 : vector<8x128xf32>
    %100 = arith.divf %98, %99 : vector<8x128xf32>
    %101 = vector.extract_strided_slice %100 {offsets = [0, 0], sizes = [8, 64], strides = [1, 1]} : vector<8x128xf32> to vector<8x64xf32>
    %102 = vector.extract_strided_slice %100 {offsets = [0, 64], sizes = [8, 64], strides = [1, 1]} : vector<8x128xf32> to vector<8x64xf32>
    %103 = vector.extract_strided_slice %91 {offsets = [0, 128], sizes = [8, 64], strides = [1, 1]} : vector<8x256xf32> to vector<8x64xf32>
    %104 = vector.extract_strided_slice %92 {offsets = [0, 128], sizes = [8, 64], strides = [1, 1]} : vector<8x256xf32> to vector<8x64xf32>
    %105 = arith.addf %104, %12 : vector<8x64xf32>
    %106 = arith.mulf %101, %105 : vector<8x64xf32>
    %107 = arith.addf %103, %106 : vector<8x64xf32>
    %108 = math.tanh %107 : vector<8x64xf32>
    %cst_24 = arith.constant 1.000000e+00 : f32
    %109 = vector.broadcast %cst_24 : f32 to vector<8x64xf32>
    %110 = arith.subf %109, %102 : vector<8x64xf32>
    %111 = arith.mulf %110, %108 : vector<8x64xf32>
    %112 = arith.mulf %102, %88 : vector<8x64xf32>
    %113 = arith.addf %111, %112 : vector<8x64xf32>
    %114 = vector.extract_strided_slice %6 {offsets = [32, 0], sizes = [8, 256], strides = [1, 1]} : vector<64x256xf32> to vector<8x256xf32>
    %115 = vector.extract_strided_slice %8 {offsets = [24, 0], sizes = [8, 256], strides = [1, 1]} : vector<64x256xf32> to vector<8x256xf32>
    %116 = arith.addf %114, %115 : vector<8x256xf32>
    %cst_25 = arith.constant dense<0.000000e+00> : vector<8x256xf32>
    %117 = tpu.matmul %113, %9, %cst_25 {dimension_numbers = #tpu.dot_dimension_numbers<[1], [0], [0], [1], [0, 0, 1, 1], [], []>} : vector<8x64xf32>, vector<64x256xf32>, vector<8x256xf32> -> vector<8x256xf32>
    %118 = vector.extract_strided_slice %116 {offsets = [0, 0], sizes = [8, 128], strides = [1, 1]} : vector<8x256xf32> to vector<8x128xf32>
    %119 = vector.extract_strided_slice %117 {offsets = [0, 0], sizes = [8, 128], strides = [1, 1]} : vector<8x256xf32> to vector<8x128xf32>
    %120 = arith.addf %118, %119 : vector<8x128xf32>
    %121 = arith.negf %120 : vector<8x128xf32>
    %122 = math.exp %121 : vector<8x128xf32>
    %cst_26 = arith.constant 1.000000e+00 : f32
    %123 = vector.broadcast %cst_26 : f32 to vector<8x128xf32>
    %124 = arith.addf %123, %122 : vector<8x128xf32>
    %125 = arith.divf %123, %124 : vector<8x128xf32>
    %126 = vector.extract_strided_slice %125 {offsets = [0, 0], sizes = [8, 64], strides = [1, 1]} : vector<8x128xf32> to vector<8x64xf32>
    %127 = vector.extract_strided_slice %125 {offsets = [0, 64], sizes = [8, 64], strides = [1, 1]} : vector<8x128xf32> to vector<8x64xf32>
    %128 = vector.extract_strided_slice %116 {offsets = [0, 128], sizes = [8, 64], strides = [1, 1]} : vector<8x256xf32> to vector<8x64xf32>
    %129 = vector.extract_strided_slice %117 {offsets = [0, 128], sizes = [8, 64], strides = [1, 1]} : vector<8x256xf32> to vector<8x64xf32>
    %130 = arith.addf %129, %12 : vector<8x64xf32>
    %131 = arith.mulf %126, %130 : vector<8x64xf32>
    %132 = arith.addf %128, %131 : vector<8x64xf32>
    %133 = math.tanh %132 : vector<8x64xf32>
    %cst_27 = arith.constant 1.000000e+00 : f32
    %134 = vector.broadcast %cst_27 : f32 to vector<8x64xf32>
    %135 = arith.subf %134, %127 : vector<8x64xf32>
    %136 = arith.mulf %135, %133 : vector<8x64xf32>
    %137 = arith.mulf %127, %113 : vector<8x64xf32>
    %138 = arith.addf %136, %137 : vector<8x64xf32>
    %139 = vector.extract_strided_slice %6 {offsets = [40, 0], sizes = [8, 256], strides = [1, 1]} : vector<64x256xf32> to vector<8x256xf32>
    %140 = vector.extract_strided_slice %8 {offsets = [16, 0], sizes = [8, 256], strides = [1, 1]} : vector<64x256xf32> to vector<8x256xf32>
    %141 = arith.addf %139, %140 : vector<8x256xf32>
    %cst_28 = arith.constant dense<0.000000e+00> : vector<8x256xf32>
    %142 = tpu.matmul %138, %9, %cst_28 {dimension_numbers = #tpu.dot_dimension_numbers<[1], [0], [0], [1], [0, 0, 1, 1], [], []>} : vector<8x64xf32>, vector<64x256xf32>, vector<8x256xf32> -> vector<8x256xf32>
    %143 = vector.extract_strided_slice %141 {offsets = [0, 0], sizes = [8, 128], strides = [1, 1]} : vector<8x256xf32> to vector<8x128xf32>
    %144 = vector.extract_strided_slice %142 {offsets = [0, 0], sizes = [8, 128], strides = [1, 1]} : vector<8x256xf32> to vector<8x128xf32>
    %145 = arith.addf %143, %144 : vector<8x128xf32>
    %146 = arith.negf %145 : vector<8x128xf32>
    %147 = math.exp %146 : vector<8x128xf32>
    %cst_29 = arith.constant 1.000000e+00 : f32
    %148 = vector.broadcast %cst_29 : f32 to vector<8x128xf32>
    %149 = arith.addf %148, %147 : vector<8x128xf32>
    %150 = arith.divf %148, %149 : vector<8x128xf32>
    %151 = vector.extract_strided_slice %150 {offsets = [0, 0], sizes = [8, 64], strides = [1, 1]} : vector<8x128xf32> to vector<8x64xf32>
    %152 = vector.extract_strided_slice %150 {offsets = [0, 64], sizes = [8, 64], strides = [1, 1]} : vector<8x128xf32> to vector<8x64xf32>
    %153 = vector.extract_strided_slice %141 {offsets = [0, 128], sizes = [8, 64], strides = [1, 1]} : vector<8x256xf32> to vector<8x64xf32>
    %154 = vector.extract_strided_slice %142 {offsets = [0, 128], sizes = [8, 64], strides = [1, 1]} : vector<8x256xf32> to vector<8x64xf32>
    %155 = arith.addf %154, %12 : vector<8x64xf32>
    %156 = arith.mulf %151, %155 : vector<8x64xf32>
    %157 = arith.addf %153, %156 : vector<8x64xf32>
    %158 = math.tanh %157 : vector<8x64xf32>
    %cst_30 = arith.constant 1.000000e+00 : f32
    %159 = vector.broadcast %cst_30 : f32 to vector<8x64xf32>
    %160 = arith.subf %159, %152 : vector<8x64xf32>
    %161 = arith.mulf %160, %158 : vector<8x64xf32>
    %162 = arith.mulf %152, %138 : vector<8x64xf32>
    %163 = arith.addf %161, %162 : vector<8x64xf32>
    %164 = vector.extract_strided_slice %6 {offsets = [48, 0], sizes = [8, 256], strides = [1, 1]} : vector<64x256xf32> to vector<8x256xf32>
    %165 = vector.extract_strided_slice %8 {offsets = [8, 0], sizes = [8, 256], strides = [1, 1]} : vector<64x256xf32> to vector<8x256xf32>
    %166 = arith.addf %164, %165 : vector<8x256xf32>
    %cst_31 = arith.constant dense<0.000000e+00> : vector<8x256xf32>
    %167 = tpu.matmul %163, %9, %cst_31 {dimension_numbers = #tpu.dot_dimension_numbers<[1], [0], [0], [1], [0, 0, 1, 1], [], []>} : vector<8x64xf32>, vector<64x256xf32>, vector<8x256xf32> -> vector<8x256xf32>
    %168 = vector.extract_strided_slice %166 {offsets = [0, 0], sizes = [8, 128], strides = [1, 1]} : vector<8x256xf32> to vector<8x128xf32>
    %169 = vector.extract_strided_slice %167 {offsets = [0, 0], sizes = [8, 128], strides = [1, 1]} : vector<8x256xf32> to vector<8x128xf32>
    %170 = arith.addf %168, %169 : vector<8x128xf32>
    %171 = arith.negf %170 : vector<8x128xf32>
    %172 = math.exp %171 : vector<8x128xf32>
    %cst_32 = arith.constant 1.000000e+00 : f32
    %173 = vector.broadcast %cst_32 : f32 to vector<8x128xf32>
    %174 = arith.addf %173, %172 : vector<8x128xf32>
    %175 = arith.divf %173, %174 : vector<8x128xf32>
    %176 = vector.extract_strided_slice %175 {offsets = [0, 0], sizes = [8, 64], strides = [1, 1]} : vector<8x128xf32> to vector<8x64xf32>
    %177 = vector.extract_strided_slice %175 {offsets = [0, 64], sizes = [8, 64], strides = [1, 1]} : vector<8x128xf32> to vector<8x64xf32>
    %178 = vector.extract_strided_slice %166 {offsets = [0, 128], sizes = [8, 64], strides = [1, 1]} : vector<8x256xf32> to vector<8x64xf32>
    %179 = vector.extract_strided_slice %167 {offsets = [0, 128], sizes = [8, 64], strides = [1, 1]} : vector<8x256xf32> to vector<8x64xf32>
    %180 = arith.addf %179, %12 : vector<8x64xf32>
    %181 = arith.mulf %176, %180 : vector<8x64xf32>
    %182 = arith.addf %178, %181 : vector<8x64xf32>
    %183 = math.tanh %182 : vector<8x64xf32>
    %cst_33 = arith.constant 1.000000e+00 : f32
    %184 = vector.broadcast %cst_33 : f32 to vector<8x64xf32>
    %185 = arith.subf %184, %177 : vector<8x64xf32>
    %186 = arith.mulf %185, %183 : vector<8x64xf32>
    %187 = arith.mulf %177, %163 : vector<8x64xf32>
    %188 = arith.addf %186, %187 : vector<8x64xf32>
    %189 = vector.extract_strided_slice %6 {offsets = [56, 0], sizes = [8, 256], strides = [1, 1]} : vector<64x256xf32> to vector<8x256xf32>
    %190 = vector.extract_strided_slice %8 {offsets = [0, 0], sizes = [8, 256], strides = [1, 1]} : vector<64x256xf32> to vector<8x256xf32>
    %191 = arith.addf %189, %190 : vector<8x256xf32>
    %cst_34 = arith.constant dense<0.000000e+00> : vector<8x256xf32>
    %192 = tpu.matmul %188, %9, %cst_34 {dimension_numbers = #tpu.dot_dimension_numbers<[1], [0], [0], [1], [0, 0, 1, 1], [], []>} : vector<8x64xf32>, vector<64x256xf32>, vector<8x256xf32> -> vector<8x256xf32>
    %193 = vector.extract_strided_slice %191 {offsets = [0, 0], sizes = [8, 128], strides = [1, 1]} : vector<8x256xf32> to vector<8x128xf32>
    %194 = vector.extract_strided_slice %192 {offsets = [0, 0], sizes = [8, 128], strides = [1, 1]} : vector<8x256xf32> to vector<8x128xf32>
    %195 = arith.addf %193, %194 : vector<8x128xf32>
    %196 = arith.negf %195 : vector<8x128xf32>
    %197 = math.exp %196 : vector<8x128xf32>
    %cst_35 = arith.constant 1.000000e+00 : f32
    %198 = vector.broadcast %cst_35 : f32 to vector<8x128xf32>
    %199 = arith.addf %198, %197 : vector<8x128xf32>
    %200 = arith.divf %198, %199 : vector<8x128xf32>
    %201 = vector.extract_strided_slice %200 {offsets = [0, 0], sizes = [8, 64], strides = [1, 1]} : vector<8x128xf32> to vector<8x64xf32>
    %202 = vector.extract_strided_slice %200 {offsets = [0, 64], sizes = [8, 64], strides = [1, 1]} : vector<8x128xf32> to vector<8x64xf32>
    %203 = vector.extract_strided_slice %191 {offsets = [0, 128], sizes = [8, 64], strides = [1, 1]} : vector<8x256xf32> to vector<8x64xf32>
    %204 = vector.extract_strided_slice %192 {offsets = [0, 128], sizes = [8, 64], strides = [1, 1]} : vector<8x256xf32> to vector<8x64xf32>
    %205 = arith.addf %204, %12 : vector<8x64xf32>
    %206 = arith.mulf %201, %205 : vector<8x64xf32>
    %207 = arith.addf %203, %206 : vector<8x64xf32>
    %208 = math.tanh %207 : vector<8x64xf32>
    %cst_36 = arith.constant 1.000000e+00 : f32
    %209 = vector.broadcast %cst_36 : f32 to vector<8x64xf32>
    %210 = arith.subf %209, %202 : vector<8x64xf32>
    %211 = arith.mulf %210, %208 : vector<8x64xf32>
    %212 = arith.mulf %202, %188 : vector<8x64xf32>
    %213 = arith.addf %211, %212 : vector<8x64xf32>
    %214 = vector.extract_strided_slice %213 {offsets = [0, 0], sizes = [8, 32], strides = [1, 1]} : vector<8x64xf32> to vector<8x32xf32>
    %215 = vector.extract_strided_slice %213 {offsets = [0, 32], sizes = [8, 32], strides = [1, 1]} : vector<8x64xf32> to vector<8x32xf32>
    %216 = arith.addf %214, %215 : vector<8x32xf32>
    %c0_37 = arith.constant 0 : index
    %c0_38 = arith.constant 0 : index
    %217 = vector.load %arg6[%c0_37, %c0_38] : memref<64x256xf32, #tpu.memory_space<vmem>>, vector<32x256xf32>
    %cst_39 = arith.constant dense<0.000000e+00> : vector<8x256xf32>
    %218 = tpu.matmul %216, %217, %cst_39 {dimension_numbers = #tpu.dot_dimension_numbers<[1], [0], [0], [1], [0, 0, 1, 1], [], []>} : vector<8x32xf32>, vector<32x256xf32>, vector<8x256xf32> -> vector<8x256xf32>
    %c0_40 = arith.constant 0 : index
    %c0_41 = arith.constant 0 : index
    %219 = vector.load %arg7[%c0_40, %c0_41] : memref<1x256xf32, #tpu.memory_space<vmem>>, vector<1x256xf32>
    %220 = vector.broadcast %219 : vector<1x256xf32> to vector<8x256xf32>
    %221 = arith.addf %218, %220 : vector<8x256xf32>
    %c32_42 = arith.constant 32 : index
    %c0_43 = arith.constant 0 : index
    %222 = vector.load %arg6[%c32_42, %c0_43] : memref<64x256xf32, #tpu.memory_space<vmem>>, vector<32x256xf32>
    %cst_44 = arith.constant dense<0.000000e+00> : vector<8x256xf32>
    %223 = tpu.matmul %216, %222, %cst_44 {dimension_numbers = #tpu.dot_dimension_numbers<[1], [0], [0], [1], [0, 0, 1, 1], [], []>} : vector<8x32xf32>, vector<32x256xf32>, vector<8x256xf32> -> vector<8x256xf32>
    %c0_45 = arith.constant 0 : index
    %c0_46 = arith.constant 0 : index
    %224 = vector.load %arg8[%c0_45, %c0_46] : memref<64x256xf32, #tpu.memory_space<vmem>>, vector<64x256xf32>
    %c0_47 = arith.constant 0 : index
    %c0_48 = arith.constant 0 : index
    %225 = vector.load %arg9[%c0_47, %c0_48] : memref<1x64xf32, #tpu.memory_space<vmem>>, vector<1x64xf32>
    %cst_49 = arith.constant 0.000000e+00 : f32
    %226 = vector.broadcast %cst_49 : f32 to vector<1x64xf32>
    %227 = vector.extract_strided_slice %221 {offsets = [0, 0], sizes = [1, 256], strides = [1, 1]} : vector<8x256xf32> to vector<1x256xf32>
    %228 = vector.extract_strided_slice %223 {offsets = [7, 0], sizes = [1, 256], strides = [1, 1]} : vector<8x256xf32> to vector<1x256xf32>
    %229 = arith.addf %227, %228 : vector<1x256xf32>
    %cst_50 = arith.constant dense<0.000000e+00> : vector<1x256xf32>
    %230 = tpu.matmul %226, %224, %cst_50 {dimension_numbers = #tpu.dot_dimension_numbers<[1], [0], [0], [1], [0, 0, 1, 1], [], []>} : vector<1x64xf32>, vector<64x256xf32>, vector<1x256xf32> -> vector<1x256xf32>
    %231 = vector.extract_strided_slice %229 {offsets = [0, 0], sizes = [1, 128], strides = [1, 1]} : vector<1x256xf32> to vector<1x128xf32>
    %232 = vector.extract_strided_slice %230 {offsets = [0, 0], sizes = [1, 128], strides = [1, 1]} : vector<1x256xf32> to vector<1x128xf32>
    %233 = arith.addf %231, %232 : vector<1x128xf32>
    %234 = arith.negf %233 : vector<1x128xf32>
    %235 = math.exp %234 : vector<1x128xf32>
    %cst_51 = arith.constant 1.000000e+00 : f32
    %236 = vector.broadcast %cst_51 : f32 to vector<1x128xf32>
    %237 = arith.addf %236, %235 : vector<1x128xf32>
    %238 = arith.divf %236, %237 : vector<1x128xf32>
    %239 = vector.extract_strided_slice %238 {offsets = [0, 0], sizes = [1, 64], strides = [1, 1]} : vector<1x128xf32> to vector<1x64xf32>
    %240 = vector.extract_strided_slice %238 {offsets = [0, 64], sizes = [1, 64], strides = [1, 1]} : vector<1x128xf32> to vector<1x64xf32>
    %241 = vector.extract_strided_slice %229 {offsets = [0, 128], sizes = [1, 64], strides = [1, 1]} : vector<1x256xf32> to vector<1x64xf32>
    %242 = vector.extract_strided_slice %230 {offsets = [0, 128], sizes = [1, 64], strides = [1, 1]} : vector<1x256xf32> to vector<1x64xf32>
    %243 = arith.addf %242, %225 : vector<1x64xf32>
    %244 = arith.mulf %239, %243 : vector<1x64xf32>
    %245 = arith.addf %241, %244 : vector<1x64xf32>
    %246 = math.tanh %245 : vector<1x64xf32>
    %cst_52 = arith.constant 1.000000e+00 : f32
    %247 = vector.broadcast %cst_52 : f32 to vector<1x64xf32>
    %248 = arith.subf %247, %240 : vector<1x64xf32>
    %249 = arith.mulf %248, %246 : vector<1x64xf32>
    %250 = arith.mulf %240, %226 : vector<1x64xf32>
    %251 = arith.addf %249, %250 : vector<1x64xf32>
    %252 = vector.extract_strided_slice %251 {offsets = [0, 0], sizes = [1, 32], strides = [1, 1]} : vector<1x64xf32> to vector<1x32xf32>
    %253 = vector.extract_strided_slice %251 {offsets = [0, 32], sizes = [1, 32], strides = [1, 1]} : vector<1x64xf32> to vector<1x32xf32>
    %254 = vector.extract_strided_slice %221 {offsets = [1, 0], sizes = [1, 256], strides = [1, 1]} : vector<8x256xf32> to vector<1x256xf32>
    %255 = vector.extract_strided_slice %223 {offsets = [6, 0], sizes = [1, 256], strides = [1, 1]} : vector<8x256xf32> to vector<1x256xf32>
    %256 = arith.addf %254, %255 : vector<1x256xf32>
    %cst_53 = arith.constant dense<0.000000e+00> : vector<1x256xf32>
    %257 = tpu.matmul %251, %224, %cst_53 {dimension_numbers = #tpu.dot_dimension_numbers<[1], [0], [0], [1], [0, 0, 1, 1], [], []>} : vector<1x64xf32>, vector<64x256xf32>, vector<1x256xf32> -> vector<1x256xf32>
    %258 = vector.extract_strided_slice %256 {offsets = [0, 0], sizes = [1, 128], strides = [1, 1]} : vector<1x256xf32> to vector<1x128xf32>
    %259 = vector.extract_strided_slice %257 {offsets = [0, 0], sizes = [1, 128], strides = [1, 1]} : vector<1x256xf32> to vector<1x128xf32>
    %260 = arith.addf %258, %259 : vector<1x128xf32>
    %261 = arith.negf %260 : vector<1x128xf32>
    %262 = math.exp %261 : vector<1x128xf32>
    %cst_54 = arith.constant 1.000000e+00 : f32
    %263 = vector.broadcast %cst_54 : f32 to vector<1x128xf32>
    %264 = arith.addf %263, %262 : vector<1x128xf32>
    %265 = arith.divf %263, %264 : vector<1x128xf32>
    %266 = vector.extract_strided_slice %265 {offsets = [0, 0], sizes = [1, 64], strides = [1, 1]} : vector<1x128xf32> to vector<1x64xf32>
    %267 = vector.extract_strided_slice %265 {offsets = [0, 64], sizes = [1, 64], strides = [1, 1]} : vector<1x128xf32> to vector<1x64xf32>
    %268 = vector.extract_strided_slice %256 {offsets = [0, 128], sizes = [1, 64], strides = [1, 1]} : vector<1x256xf32> to vector<1x64xf32>
    %269 = vector.extract_strided_slice %257 {offsets = [0, 128], sizes = [1, 64], strides = [1, 1]} : vector<1x256xf32> to vector<1x64xf32>
    %270 = arith.addf %269, %225 : vector<1x64xf32>
    %271 = arith.mulf %266, %270 : vector<1x64xf32>
    %272 = arith.addf %268, %271 : vector<1x64xf32>
    %273 = math.tanh %272 : vector<1x64xf32>
    %cst_55 = arith.constant 1.000000e+00 : f32
    %274 = vector.broadcast %cst_55 : f32 to vector<1x64xf32>
    %275 = arith.subf %274, %267 : vector<1x64xf32>
    %276 = arith.mulf %275, %273 : vector<1x64xf32>
    %277 = arith.mulf %267, %251 : vector<1x64xf32>
    %278 = arith.addf %276, %277 : vector<1x64xf32>
    %279 = vector.extract_strided_slice %278 {offsets = [0, 0], sizes = [1, 32], strides = [1, 1]} : vector<1x64xf32> to vector<1x32xf32>
    %280 = vector.extract_strided_slice %278 {offsets = [0, 32], sizes = [1, 32], strides = [1, 1]} : vector<1x64xf32> to vector<1x32xf32>
    %281 = vector.extract_strided_slice %221 {offsets = [2, 0], sizes = [1, 256], strides = [1, 1]} : vector<8x256xf32> to vector<1x256xf32>
    %282 = vector.extract_strided_slice %223 {offsets = [5, 0], sizes = [1, 256], strides = [1, 1]} : vector<8x256xf32> to vector<1x256xf32>
    %283 = arith.addf %281, %282 : vector<1x256xf32>
    %cst_56 = arith.constant dense<0.000000e+00> : vector<1x256xf32>
    %284 = tpu.matmul %278, %224, %cst_56 {dimension_numbers = #tpu.dot_dimension_numbers<[1], [0], [0], [1], [0, 0, 1, 1], [], []>} : vector<1x64xf32>, vector<64x256xf32>, vector<1x256xf32> -> vector<1x256xf32>
    %285 = vector.extract_strided_slice %283 {offsets = [0, 0], sizes = [1, 128], strides = [1, 1]} : vector<1x256xf32> to vector<1x128xf32>
    %286 = vector.extract_strided_slice %284 {offsets = [0, 0], sizes = [1, 128], strides = [1, 1]} : vector<1x256xf32> to vector<1x128xf32>
    %287 = arith.addf %285, %286 : vector<1x128xf32>
    %288 = arith.negf %287 : vector<1x128xf32>
    %289 = math.exp %288 : vector<1x128xf32>
    %cst_57 = arith.constant 1.000000e+00 : f32
    %290 = vector.broadcast %cst_57 : f32 to vector<1x128xf32>
    %291 = arith.addf %290, %289 : vector<1x128xf32>
    %292 = arith.divf %290, %291 : vector<1x128xf32>
    %293 = vector.extract_strided_slice %292 {offsets = [0, 0], sizes = [1, 64], strides = [1, 1]} : vector<1x128xf32> to vector<1x64xf32>
    %294 = vector.extract_strided_slice %292 {offsets = [0, 64], sizes = [1, 64], strides = [1, 1]} : vector<1x128xf32> to vector<1x64xf32>
    %295 = vector.extract_strided_slice %283 {offsets = [0, 128], sizes = [1, 64], strides = [1, 1]} : vector<1x256xf32> to vector<1x64xf32>
    %296 = vector.extract_strided_slice %284 {offsets = [0, 128], sizes = [1, 64], strides = [1, 1]} : vector<1x256xf32> to vector<1x64xf32>
    %297 = arith.addf %296, %225 : vector<1x64xf32>
    %298 = arith.mulf %293, %297 : vector<1x64xf32>
    %299 = arith.addf %295, %298 : vector<1x64xf32>
    %300 = math.tanh %299 : vector<1x64xf32>
    %cst_58 = arith.constant 1.000000e+00 : f32
    %301 = vector.broadcast %cst_58 : f32 to vector<1x64xf32>
    %302 = arith.subf %301, %294 : vector<1x64xf32>
    %303 = arith.mulf %302, %300 : vector<1x64xf32>
    %304 = arith.mulf %294, %278 : vector<1x64xf32>
    %305 = arith.addf %303, %304 : vector<1x64xf32>
    %306 = vector.extract_strided_slice %305 {offsets = [0, 0], sizes = [1, 32], strides = [1, 1]} : vector<1x64xf32> to vector<1x32xf32>
    %307 = vector.extract_strided_slice %305 {offsets = [0, 32], sizes = [1, 32], strides = [1, 1]} : vector<1x64xf32> to vector<1x32xf32>
    %308 = vector.extract_strided_slice %221 {offsets = [3, 0], sizes = [1, 256], strides = [1, 1]} : vector<8x256xf32> to vector<1x256xf32>
    %309 = vector.extract_strided_slice %223 {offsets = [4, 0], sizes = [1, 256], strides = [1, 1]} : vector<8x256xf32> to vector<1x256xf32>
    %310 = arith.addf %308, %309 : vector<1x256xf32>
    %cst_59 = arith.constant dense<0.000000e+00> : vector<1x256xf32>
    %311 = tpu.matmul %305, %224, %cst_59 {dimension_numbers = #tpu.dot_dimension_numbers<[1], [0], [0], [1], [0, 0, 1, 1], [], []>} : vector<1x64xf32>, vector<64x256xf32>, vector<1x256xf32> -> vector<1x256xf32>
    %312 = vector.extract_strided_slice %310 {offsets = [0, 0], sizes = [1, 128], strides = [1, 1]} : vector<1x256xf32> to vector<1x128xf32>
    %313 = vector.extract_strided_slice %311 {offsets = [0, 0], sizes = [1, 128], strides = [1, 1]} : vector<1x256xf32> to vector<1x128xf32>
    %314 = arith.addf %312, %313 : vector<1x128xf32>
    %315 = arith.negf %314 : vector<1x128xf32>
    %316 = math.exp %315 : vector<1x128xf32>
    %cst_60 = arith.constant 1.000000e+00 : f32
    %317 = vector.broadcast %cst_60 : f32 to vector<1x128xf32>
    %318 = arith.addf %317, %316 : vector<1x128xf32>
    %319 = arith.divf %317, %318 : vector<1x128xf32>
    %320 = vector.extract_strided_slice %319 {offsets = [0, 0], sizes = [1, 64], strides = [1, 1]} : vector<1x128xf32> to vector<1x64xf32>
    %321 = vector.extract_strided_slice %319 {offsets = [0, 64], sizes = [1, 64], strides = [1, 1]} : vector<1x128xf32> to vector<1x64xf32>
    %322 = vector.extract_strided_slice %310 {offsets = [0, 128], sizes = [1, 64], strides = [1, 1]} : vector<1x256xf32> to vector<1x64xf32>
    %323 = vector.extract_strided_slice %311 {offsets = [0, 128], sizes = [1, 64], strides = [1, 1]} : vector<1x256xf32> to vector<1x64xf32>
    %324 = arith.addf %323, %225 : vector<1x64xf32>
    %325 = arith.mulf %320, %324 : vector<1x64xf32>
    %326 = arith.addf %322, %325 : vector<1x64xf32>
    %327 = math.tanh %326 : vector<1x64xf32>
    %cst_61 = arith.constant 1.000000e+00 : f32
    %328 = vector.broadcast %cst_61 : f32 to vector<1x64xf32>
    %329 = arith.subf %328, %321 : vector<1x64xf32>
    %330 = arith.mulf %329, %327 : vector<1x64xf32>
    %331 = arith.mulf %321, %305 : vector<1x64xf32>
    %332 = arith.addf %330, %331 : vector<1x64xf32>
    %333 = vector.extract_strided_slice %332 {offsets = [0, 0], sizes = [1, 32], strides = [1, 1]} : vector<1x64xf32> to vector<1x32xf32>
    %334 = vector.extract_strided_slice %332 {offsets = [0, 32], sizes = [1, 32], strides = [1, 1]} : vector<1x64xf32> to vector<1x32xf32>
    %335 = vector.extract_strided_slice %221 {offsets = [4, 0], sizes = [1, 256], strides = [1, 1]} : vector<8x256xf32> to vector<1x256xf32>
    %336 = vector.extract_strided_slice %223 {offsets = [3, 0], sizes = [1, 256], strides = [1, 1]} : vector<8x256xf32> to vector<1x256xf32>
    %337 = arith.addf %335, %336 : vector<1x256xf32>
    %cst_62 = arith.constant dense<0.000000e+00> : vector<1x256xf32>
    %338 = tpu.matmul %332, %224, %cst_62 {dimension_numbers = #tpu.dot_dimension_numbers<[1], [0], [0], [1], [0, 0, 1, 1], [], []>} : vector<1x64xf32>, vector<64x256xf32>, vector<1x256xf32> -> vector<1x256xf32>
    %339 = vector.extract_strided_slice %337 {offsets = [0, 0], sizes = [1, 128], strides = [1, 1]} : vector<1x256xf32> to vector<1x128xf32>
    %340 = vector.extract_strided_slice %338 {offsets = [0, 0], sizes = [1, 128], strides = [1, 1]} : vector<1x256xf32> to vector<1x128xf32>
    %341 = arith.addf %339, %340 : vector<1x128xf32>
    %342 = arith.negf %341 : vector<1x128xf32>
    %343 = math.exp %342 : vector<1x128xf32>
    %cst_63 = arith.constant 1.000000e+00 : f32
    %344 = vector.broadcast %cst_63 : f32 to vector<1x128xf32>
    %345 = arith.addf %344, %343 : vector<1x128xf32>
    %346 = arith.divf %344, %345 : vector<1x128xf32>
    %347 = vector.extract_strided_slice %346 {offsets = [0, 0], sizes = [1, 64], strides = [1, 1]} : vector<1x128xf32> to vector<1x64xf32>
    %348 = vector.extract_strided_slice %346 {offsets = [0, 64], sizes = [1, 64], strides = [1, 1]} : vector<1x128xf32> to vector<1x64xf32>
    %349 = vector.extract_strided_slice %337 {offsets = [0, 128], sizes = [1, 64], strides = [1, 1]} : vector<1x256xf32> to vector<1x64xf32>
    %350 = vector.extract_strided_slice %338 {offsets = [0, 128], sizes = [1, 64], strides = [1, 1]} : vector<1x256xf32> to vector<1x64xf32>
    %351 = arith.addf %350, %225 : vector<1x64xf32>
    %352 = arith.mulf %347, %351 : vector<1x64xf32>
    %353 = arith.addf %349, %352 : vector<1x64xf32>
    %354 = math.tanh %353 : vector<1x64xf32>
    %cst_64 = arith.constant 1.000000e+00 : f32
    %355 = vector.broadcast %cst_64 : f32 to vector<1x64xf32>
    %356 = arith.subf %355, %348 : vector<1x64xf32>
    %357 = arith.mulf %356, %354 : vector<1x64xf32>
    %358 = arith.mulf %348, %332 : vector<1x64xf32>
    %359 = arith.addf %357, %358 : vector<1x64xf32>
    %360 = vector.extract_strided_slice %359 {offsets = [0, 0], sizes = [1, 32], strides = [1, 1]} : vector<1x64xf32> to vector<1x32xf32>
    %361 = vector.extract_strided_slice %359 {offsets = [0, 32], sizes = [1, 32], strides = [1, 1]} : vector<1x64xf32> to vector<1x32xf32>
    %362 = vector.extract_strided_slice %221 {offsets = [5, 0], sizes = [1, 256], strides = [1, 1]} : vector<8x256xf32> to vector<1x256xf32>
    %363 = vector.extract_strided_slice %223 {offsets = [2, 0], sizes = [1, 256], strides = [1, 1]} : vector<8x256xf32> to vector<1x256xf32>
    %364 = arith.addf %362, %363 : vector<1x256xf32>
    %cst_65 = arith.constant dense<0.000000e+00> : vector<1x256xf32>
    %365 = tpu.matmul %359, %224, %cst_65 {dimension_numbers = #tpu.dot_dimension_numbers<[1], [0], [0], [1], [0, 0, 1, 1], [], []>} : vector<1x64xf32>, vector<64x256xf32>, vector<1x256xf32> -> vector<1x256xf32>
    %366 = vector.extract_strided_slice %364 {offsets = [0, 0], sizes = [1, 128], strides = [1, 1]} : vector<1x256xf32> to vector<1x128xf32>
    %367 = vector.extract_strided_slice %365 {offsets = [0, 0], sizes = [1, 128], strides = [1, 1]} : vector<1x256xf32> to vector<1x128xf32>
    %368 = arith.addf %366, %367 : vector<1x128xf32>
    %369 = arith.negf %368 : vector<1x128xf32>
    %370 = math.exp %369 : vector<1x128xf32>
    %cst_66 = arith.constant 1.000000e+00 : f32
    %371 = vector.broadcast %cst_66 : f32 to vector<1x128xf32>
    %372 = arith.addf %371, %370 : vector<1x128xf32>
    %373 = arith.divf %371, %372 : vector<1x128xf32>
    %374 = vector.extract_strided_slice %373 {offsets = [0, 0], sizes = [1, 64], strides = [1, 1]} : vector<1x128xf32> to vector<1x64xf32>
    %375 = vector.extract_strided_slice %373 {offsets = [0, 64], sizes = [1, 64], strides = [1, 1]} : vector<1x128xf32> to vector<1x64xf32>
    %376 = vector.extract_strided_slice %364 {offsets = [0, 128], sizes = [1, 64], strides = [1, 1]} : vector<1x256xf32> to vector<1x64xf32>
    %377 = vector.extract_strided_slice %365 {offsets = [0, 128], sizes = [1, 64], strides = [1, 1]} : vector<1x256xf32> to vector<1x64xf32>
    %378 = arith.addf %377, %225 : vector<1x64xf32>
    %379 = arith.mulf %374, %378 : vector<1x64xf32>
    %380 = arith.addf %376, %379 : vector<1x64xf32>
    %381 = math.tanh %380 : vector<1x64xf32>
    %cst_67 = arith.constant 1.000000e+00 : f32
    %382 = vector.broadcast %cst_67 : f32 to vector<1x64xf32>
    %383 = arith.subf %382, %375 : vector<1x64xf32>
    %384 = arith.mulf %383, %381 : vector<1x64xf32>
    %385 = arith.mulf %375, %359 : vector<1x64xf32>
    %386 = arith.addf %384, %385 : vector<1x64xf32>
    %387 = vector.extract_strided_slice %386 {offsets = [0, 0], sizes = [1, 32], strides = [1, 1]} : vector<1x64xf32> to vector<1x32xf32>
    %388 = vector.extract_strided_slice %386 {offsets = [0, 32], sizes = [1, 32], strides = [1, 1]} : vector<1x64xf32> to vector<1x32xf32>
    %389 = vector.extract_strided_slice %221 {offsets = [6, 0], sizes = [1, 256], strides = [1, 1]} : vector<8x256xf32> to vector<1x256xf32>
    %390 = vector.extract_strided_slice %223 {offsets = [1, 0], sizes = [1, 256], strides = [1, 1]} : vector<8x256xf32> to vector<1x256xf32>
    %391 = arith.addf %389, %390 : vector<1x256xf32>
    %cst_68 = arith.constant dense<0.000000e+00> : vector<1x256xf32>
    %392 = tpu.matmul %386, %224, %cst_68 {dimension_numbers = #tpu.dot_dimension_numbers<[1], [0], [0], [1], [0, 0, 1, 1], [], []>} : vector<1x64xf32>, vector<64x256xf32>, vector<1x256xf32> -> vector<1x256xf32>
    %393 = vector.extract_strided_slice %391 {offsets = [0, 0], sizes = [1, 128], strides = [1, 1]} : vector<1x256xf32> to vector<1x128xf32>
    %394 = vector.extract_strided_slice %392 {offsets = [0, 0], sizes = [1, 128], strides = [1, 1]} : vector<1x256xf32> to vector<1x128xf32>
    %395 = arith.addf %393, %394 : vector<1x128xf32>
    %396 = arith.negf %395 : vector<1x128xf32>
    %397 = math.exp %396 : vector<1x128xf32>
    %cst_69 = arith.constant 1.000000e+00 : f32
    %398 = vector.broadcast %cst_69 : f32 to vector<1x128xf32>
    %399 = arith.addf %398, %397 : vector<1x128xf32>
    %400 = arith.divf %398, %399 : vector<1x128xf32>
    %401 = vector.extract_strided_slice %400 {offsets = [0, 0], sizes = [1, 64], strides = [1, 1]} : vector<1x128xf32> to vector<1x64xf32>
    %402 = vector.extract_strided_slice %400 {offsets = [0, 64], sizes = [1, 64], strides = [1, 1]} : vector<1x128xf32> to vector<1x64xf32>
    %403 = vector.extract_strided_slice %391 {offsets = [0, 128], sizes = [1, 64], strides = [1, 1]} : vector<1x256xf32> to vector<1x64xf32>
    %404 = vector.extract_strided_slice %392 {offsets = [0, 128], sizes = [1, 64], strides = [1, 1]} : vector<1x256xf32> to vector<1x64xf32>
    %405 = arith.addf %404, %225 : vector<1x64xf32>
    %406 = arith.mulf %401, %405 : vector<1x64xf32>
    %407 = arith.addf %403, %406 : vector<1x64xf32>
    %408 = math.tanh %407 : vector<1x64xf32>
    %cst_70 = arith.constant 1.000000e+00 : f32
    %409 = vector.broadcast %cst_70 : f32 to vector<1x64xf32>
    %410 = arith.subf %409, %402 : vector<1x64xf32>
    %411 = arith.mulf %410, %408 : vector<1x64xf32>
    %412 = arith.mulf %402, %386 : vector<1x64xf32>
    %413 = arith.addf %411, %412 : vector<1x64xf32>
    %414 = vector.extract_strided_slice %413 {offsets = [0, 0], sizes = [1, 32], strides = [1, 1]} : vector<1x64xf32> to vector<1x32xf32>
    %415 = vector.extract_strided_slice %413 {offsets = [0, 32], sizes = [1, 32], strides = [1, 1]} : vector<1x64xf32> to vector<1x32xf32>
    %416 = vector.extract_strided_slice %221 {offsets = [7, 0], sizes = [1, 256], strides = [1, 1]} : vector<8x256xf32> to vector<1x256xf32>
    %417 = vector.extract_strided_slice %223 {offsets = [0, 0], sizes = [1, 256], strides = [1, 1]} : vector<8x256xf32> to vector<1x256xf32>
    %418 = arith.addf %416, %417 : vector<1x256xf32>
    %cst_71 = arith.constant dense<0.000000e+00> : vector<1x256xf32>
    %419 = tpu.matmul %413, %224, %cst_71 {dimension_numbers = #tpu.dot_dimension_numbers<[1], [0], [0], [1], [0, 0, 1, 1], [], []>} : vector<1x64xf32>, vector<64x256xf32>, vector<1x256xf32> -> vector<1x256xf32>
    %420 = vector.extract_strided_slice %418 {offsets = [0, 0], sizes = [1, 128], strides = [1, 1]} : vector<1x256xf32> to vector<1x128xf32>
    %421 = vector.extract_strided_slice %419 {offsets = [0, 0], sizes = [1, 128], strides = [1, 1]} : vector<1x256xf32> to vector<1x128xf32>
    %422 = arith.addf %420, %421 : vector<1x128xf32>
    %423 = arith.negf %422 : vector<1x128xf32>
    %424 = math.exp %423 : vector<1x128xf32>
    %cst_72 = arith.constant 1.000000e+00 : f32
    %425 = vector.broadcast %cst_72 : f32 to vector<1x128xf32>
    %426 = arith.addf %425, %424 : vector<1x128xf32>
    %427 = arith.divf %425, %426 : vector<1x128xf32>
    %428 = vector.extract_strided_slice %427 {offsets = [0, 0], sizes = [1, 64], strides = [1, 1]} : vector<1x128xf32> to vector<1x64xf32>
    %429 = vector.extract_strided_slice %427 {offsets = [0, 64], sizes = [1, 64], strides = [1, 1]} : vector<1x128xf32> to vector<1x64xf32>
    %430 = vector.extract_strided_slice %418 {offsets = [0, 128], sizes = [1, 64], strides = [1, 1]} : vector<1x256xf32> to vector<1x64xf32>
    %431 = vector.extract_strided_slice %419 {offsets = [0, 128], sizes = [1, 64], strides = [1, 1]} : vector<1x256xf32> to vector<1x64xf32>
    %432 = arith.addf %431, %225 : vector<1x64xf32>
    %433 = arith.mulf %428, %432 : vector<1x64xf32>
    %434 = arith.addf %430, %433 : vector<1x64xf32>
    %435 = math.tanh %434 : vector<1x64xf32>
    %cst_73 = arith.constant 1.000000e+00 : f32
    %436 = vector.broadcast %cst_73 : f32 to vector<1x64xf32>
    %437 = arith.subf %436, %429 : vector<1x64xf32>
    %438 = arith.mulf %437, %435 : vector<1x64xf32>
    %439 = arith.mulf %429, %413 : vector<1x64xf32>
    %440 = arith.addf %438, %439 : vector<1x64xf32>
    %441 = vector.extract_strided_slice %440 {offsets = [0, 0], sizes = [1, 32], strides = [1, 1]} : vector<1x64xf32> to vector<1x32xf32>
    %442 = vector.extract_strided_slice %440 {offsets = [0, 32], sizes = [1, 32], strides = [1, 1]} : vector<1x64xf32> to vector<1x32xf32>
    %443 = vector.extract_strided_slice %440 {offsets = [0, 0], sizes = [1, 32], strides = [1, 1]} : vector<1x64xf32> to vector<1x32xf32>
    %444 = vector.extract_strided_slice %440 {offsets = [0, 32], sizes = [1, 32], strides = [1, 1]} : vector<1x64xf32> to vector<1x32xf32>
    %445 = arith.addf %443, %444 : vector<1x32xf32>
    %446 = tpu.concatenate %252, %279, %306, %333, %360, %387, %414, %441 in 0 : vector<1x32xf32>, vector<1x32xf32>, vector<1x32xf32>, vector<1x32xf32>, vector<1x32xf32>, vector<1x32xf32>, vector<1x32xf32>, vector<1x32xf32> -> vector<8x32xf32>
    %447 = tpu.concatenate %442, %415, %388, %361, %334, %307, %280, %253 in 0 : vector<1x32xf32>, vector<1x32xf32>, vector<1x32xf32>, vector<1x32xf32>, vector<1x32xf32>, vector<1x32xf32>, vector<1x32xf32>, vector<1x32xf32> -> vector<8x32xf32>
    %448 = tpu.concatenate %446, %447 in 1 : vector<8x32xf32>, vector<8x32xf32> -> vector<8x64xf32>
    %c0_74 = arith.constant 0 : index
    %c0_75 = arith.constant 0 : index
    %449 = vector.load %arg10[%c0_74, %c0_75] : memref<64x256xf32, #tpu.memory_space<vmem>>, vector<64x256xf32>
    %cst_76 = arith.constant dense<0.000000e+00> : vector<8x256xf32>
    %450 = tpu.matmul %448, %449, %cst_76 {dimension_numbers = #tpu.dot_dimension_numbers<[1], [0], [0], [1], [0, 0, 1, 1], [], []>} : vector<8x64xf32>, vector<64x256xf32>, vector<8x256xf32> -> vector<8x256xf32>
    %c0_77 = arith.constant 0 : index
    %c0_78 = arith.constant 0 : index
    %451 = vector.load %arg11[%c0_77, %c0_78] : memref<1x256xf32, #tpu.memory_space<vmem>>, vector<1x256xf32>
    %452 = vector.broadcast %451 : vector<1x256xf32> to vector<8x256xf32>
    %453 = arith.addf %450, %452 : vector<8x256xf32>
    %cst_79 = arith.constant 5.000000e-01 : f32
    %454 = vector.broadcast %cst_79 : f32 to vector<8x256xf32>
    %455 = arith.mulf %454, %453 : vector<8x256xf32>
    %cst_80 = arith.constant 0.707106769 : f32
    %456 = vector.broadcast %cst_80 : f32 to vector<8x256xf32>
    %457 = arith.mulf %453, %456 : vector<8x256xf32>
    %458 = math.erf %457 : vector<8x256xf32>
    %cst_81 = arith.constant 1.000000e+00 : f32
    %459 = vector.broadcast %cst_81 : f32 to vector<8x256xf32>
    %460 = arith.addf %459, %458 : vector<8x256xf32>
    %461 = arith.mulf %455, %460 : vector<8x256xf32>
    %c0_82 = arith.constant 0 : index
    %c0_83 = arith.constant 0 : index
    %462 = vector.load %arg12[%c0_82, %c0_83] : memref<1x256xf32, #tpu.memory_space<vmem>>, vector<1x256xf32>
    %463 = vector.broadcast %462 : vector<1x256xf32> to vector<8x256xf32>
    %464 = arith.mulf %461, %463 : vector<8x256xf32>
    %cst_84 = arith.constant dense<0.000000e+00> : vector<8xf32>
    %465 = vector.multi_reduction <add>, %464, %cst_84 [1] : vector<8x256xf32> to vector<8xf32>
    %466 = vector.shape_cast %465 : vector<8xf32> to vector<8x1xf32>
    %c0_85 = arith.constant 0 : index
    %c0_86 = arith.constant 0 : index
    %467 = vector.load %arg13[%c0_85, %c0_86] : memref<1x1xf32, #tpu.memory_space<vmem>>, vector<1x1xf32>
    %468 = vector.broadcast %467 : vector<1x1xf32> to vector<8x1xf32>
    %469 = arith.addf %466, %468 : vector<8x1xf32>
    %c0_87 = arith.constant 0 : index
    %c0_88 = arith.constant 0 : index
    %470 = vector.load %arg14[%c0_87, %c0_88] : memref<32x128xf32, #tpu.memory_space<vmem>>, vector<32x128xf32>
    %cst_89 = arith.constant dense<0.000000e+00> : vector<1x128xf32>
    %471 = tpu.matmul %445, %470, %cst_89 {dimension_numbers = #tpu.dot_dimension_numbers<[1], [0], [0], [1], [0, 0, 1, 1], [], []>} : vector<1x32xf32>, vector<32x128xf32>, vector<1x128xf32> -> vector<1x128xf32>
    %c0_90 = arith.constant 0 : index
    %c0_91 = arith.constant 0 : index
    %472 = vector.load %arg15[%c0_90, %c0_91] : memref<1x128xf32, #tpu.memory_space<vmem>>, vector<1x128xf32>
    %473 = arith.addf %471, %472 : vector<1x128xf32>
    %cst_92 = arith.constant 5.000000e-01 : f32
    %474 = vector.broadcast %cst_92 : f32 to vector<1x128xf32>
    %475 = arith.mulf %474, %473 : vector<1x128xf32>
    %cst_93 = arith.constant 0.707106769 : f32
    %476 = vector.broadcast %cst_93 : f32 to vector<1x128xf32>
    %477 = arith.mulf %473, %476 : vector<1x128xf32>
    %478 = math.erf %477 : vector<1x128xf32>
    %cst_94 = arith.constant 1.000000e+00 : f32
    %479 = vector.broadcast %cst_94 : f32 to vector<1x128xf32>
    %480 = arith.addf %479, %478 : vector<1x128xf32>
    %481 = arith.mulf %475, %480 : vector<1x128xf32>
    %c0_95 = arith.constant 0 : index
    %c0_96 = arith.constant 0 : index
    %482 = vector.load %arg16[%c0_95, %c0_96] : memref<1x128xf32, #tpu.memory_space<vmem>>, vector<1x128xf32>
    %483 = arith.mulf %481, %482 : vector<1x128xf32>
    %cst_97 = arith.constant dense<0.000000e+00> : vector<1xf32>
    %484 = vector.multi_reduction <add>, %483, %cst_97 [1] : vector<1x128xf32> to vector<1xf32>
    %485 = vector.shape_cast %484 : vector<1xf32> to vector<1x1xf32>
    %c0_98 = arith.constant 0 : index
    %c0_99 = arith.constant 0 : index
    %486 = vector.load %arg17[%c0_98, %c0_99] : memref<1x1xf32, #tpu.memory_space<vmem>>, vector<1x1xf32>
    %487 = arith.addf %485, %486 : vector<1x1xf32>
    %488 = tpu.iota {dimensions = array<i32: 1>} : vector<8x128xi32>
    %489 = tpu.iota {dimensions = array<i32: 0>} : vector<8x128xi32>
    %490 = arith.cmpi eq, %488, %489 : vector<8x128xi32>
    %cst_100 = arith.constant 0.000000e+00 : f32
    %491 = vector.shape_cast %469 : vector<8x1xf32> to vector<8x1xf32>
    %492 = vector.broadcast %491 : vector<8x1xf32> to vector<8x128xf32>
    %493 = vector.broadcast %cst_100 : f32 to vector<8x128xf32>
    %494 = arith.select %490, %492, %493 : vector<8x128xi1>, vector<8x128xf32>
    %cst_101 = arith.constant dense<0.000000e+00> : vector<128xf32>
    %495 = vector.multi_reduction <add>, %494, %cst_101 [0] : vector<8x128xf32> to vector<128xf32>
    %496 = vector.shape_cast %495 : vector<128xf32> to vector<1x128xf32>
    %497 = tpu.iota {dimensions = array<i32: 1>} : vector<1x128xi32>
    %c8_i32 = arith.constant 8 : i32
    %498 = vector.broadcast %c8_i32 : i32 to vector<1x128xi32>
    %499 = arith.cmpi eq, %497, %498 : vector<1x128xi32>
    %cst_102 = arith.constant 0.000000e+00 : f32
    %500 = vector.shape_cast %487 : vector<1x1xf32> to vector<1x1xf32>
    %501 = vector.broadcast %500 : vector<1x1xf32> to vector<1x128xf32>
    %502 = vector.broadcast %cst_102 : f32 to vector<1x128xf32>
    %503 = arith.select %499, %501, %502 : vector<1x128xi1>, vector<1x128xf32>
    %504 = arith.addf %496, %503 : vector<1x128xf32>
    %c0_103 = arith.constant 0 : index
    %c0_104 = arith.constant 0 : index
    %c0_105 = arith.constant 0 : index
    %505 = vector.load %arg18[%c0_103, %c0_104, %c0_105] : memref<1x1x128xf32, #tpu.memory_space<vmem>>, vector<1x1x128xf32>
    %506 = vector.shape_cast %505 : vector<1x1x128xf32> to vector<1x128xf32>
    %507 = vector.shape_cast %504 : vector<1x128xf32> to vector<1x1x128xf32>
    tpu.vector_store %arg18[%c0_103, %c0_104, %c0_105], %507 {strides = array<i32>} : memref<1x1x128xf32, #tpu.memory_space<vmem>>, vector<1x1x128xf32>,
    return
  }
  func.func @transform_0(%arg0: i32) -> (i32, i32, i32) {
    %c0_i32 = arith.constant 0 : i32
    %c0_i32_0 = arith.constant 0 : i32
    %c0_i32_1 = arith.constant 0 : i32
    return %arg0, %c0_i32, %c0_i32_0 : i32, i32, i32
  }
  func.func @transform_1(%arg0: i32) -> (i32, i32) {
    %c0_i32 = arith.constant 0 : i32
    %c0_i32_0 = arith.constant 0 : i32
    %c0_i32_1 = arith.constant 0 : i32
    return %c0_i32, %c0_i32_0 : i32, i32
  }
  func.func @transform_2(%arg0: i32) -> (i32, i32) {
    %c0_i32 = arith.constant 0 : i32
    %c0_i32_0 = arith.constant 0 : i32
    %c0_i32_1 = arith.constant 0 : i32
    return %c0_i32, %c0_i32_0 : i32, i32
  }
  func.func @transform_3(%arg0: i32) -> (i32, i32) {
    %c0_i32 = arith.constant 0 : i32
    %c0_i32_0 = arith.constant 0 : i32
    %c0_i32_1 = arith.constant 0 : i32
    return %c0_i32, %c0_i32_0 : i32, i32
  }
  func.func @transform_4(%arg0: i32) -> (i32, i32) {
    %c0_i32 = arith.constant 0 : i32
    %c0_i32_0 = arith.constant 0 : i32
    %c0_i32_1 = arith.constant 0 : i32
    return %c0_i32, %c0_i32_0 : i32, i32
  }
  func.func @transform_5(%arg0: i32) -> (i32, i32) {
    %c0_i32 = arith.constant 0 : i32
    %c0_i32_0 = arith.constant 0 : i32
    %c0_i32_1 = arith.constant 0 : i32
    return %c0_i32, %c0_i32_0 : i32, i32
  }
  func.func @transform_6(%arg0: i32) -> (i32, i32) {
    %c0_i32 = arith.constant 0 : i32
    %c0_i32_0 = arith.constant 0 : i32
    %c0_i32_1 = arith.constant 0 : i32
    return %c0_i32, %c0_i32_0 : i32, i32
  }
  func.func @transform_7(%arg0: i32) -> (i32, i32) {
    %c0_i32 = arith.constant 0 : i32
    %c0_i32_0 = arith.constant 0 : i32
    %c0_i32_1 = arith.constant 0 : i32
    return %c0_i32, %c0_i32_0 : i32, i32
  }
  func.func @transform_8(%arg0: i32) -> (i32, i32) {
    %c0_i32 = arith.constant 0 : i32
    %c0_i32_0 = arith.constant 0 : i32
    %c0_i32_1 = arith.constant 0 : i32
    return %c0_i32, %c0_i32_0 : i32, i32
  }
  func.func @transform_9(%arg0: i32) -> (i32, i32) {
    %c0_i32 = arith.constant 0 : i32
    %c0_i32_0 = arith.constant 0 : i32
    %c0_i32_1 = arith.constant 0 : i32
    return %c0_i32, %c0_i32_0 : i32, i32
  }
  func.func @transform_10(%arg0: i32) -> (i32, i32) {
    %c0_i32 = arith.constant 0 : i32
    %c0_i32_0 = arith.constant 0 : i32
    %c0_i32_1 = arith.constant 0 : i32
    return %c0_i32, %c0_i32_0 : i32, i32
  }
  func.func @transform_11(%arg0: i32) -> (i32, i32) {
    %c0_i32 = arith.constant 0 : i32
    %c0_i32_0 = arith.constant 0 : i32
    %c0_i32_1 = arith.constant 0 : i32
    return %c0_i32, %c0_i32_0 : i32, i32
  }
  func.func @transform_12(%arg0: i32) -> (i32, i32) {
    %c0_i32 = arith.constant 0 : i32
    %c0_i32_0 = arith.constant 0 : i32
    %c0_i32_1 = arith.constant 0 : i32
    return %c0_i32, %c0_i32_0 : i32, i32
  }
  func.func @transform_13(%arg0: i32) -> (i32, i32) {
    %c0_i32 = arith.constant 0 : i32
    %c0_i32_0 = arith.constant 0 : i32
    %c0_i32_1 = arith.constant 0 : i32
    return %c0_i32, %c0_i32_0 : i32, i32
  }
  func.func @transform_14(%arg0: i32) -> (i32, i32) {
    %c0_i32 = arith.constant 0 : i32
    %c0_i32_0 = arith.constant 0 : i32
    %c0_i32_1 = arith.constant 0 : i32
    return %c0_i32, %c0_i32_0 : i32, i32
  }
  func.func @transform_15(%arg0: i32) -> (i32, i32) {
    %c0_i32 = arith.constant 0 : i32
    %c0_i32_0 = arith.constant 0 : i32
    %c0_i32_1 = arith.constant 0 : i32
    return %c0_i32, %c0_i32_0 : i32, i32
  }
  func.func @transform_16(%arg0: i32) -> (i32, i32) {
    %c0_i32 = arith.constant 0 : i32
    %c0_i32_0 = arith.constant 0 : i32
    %c0_i32_1 = arith.constant 0 : i32
    return %c0_i32, %c0_i32_0 : i32, i32
  }
  func.func @transform_17(%arg0: i32) -> (i32, i32, i32) {
    %c0_i32 = arith.constant 0 : i32
    %c0_i32_0 = arith.constant 0 : i32
    %c0_i32_1 = arith.constant 0 : i32
    return %arg0, %c0_i32, %c0_i32_0 : i32, i32, i32
  }
}

</mosaic_0001>

<llo_original>
// kernel: scopeit_forward_batched.1
$region0: #{scopeit_forward_batched.1}
  #allocation0 [shape = 'u32[]', space=smem, size = 0x4, offset = 0x4, fixed_abs, tag = 'smem constant byte address 0x4 - core index']
  #allocation1 [shape = 'u32[144,128]{1,0:T(1,128)}', space=vmem, size = 0x12000, scoped, tag = 'internal scratch']
  #allocation2 [shape = 'f32[1,1]{1,0:T(1,128)S(1)}', space=vmem, size = 0x200, scoped, tag = 'scoped memory for scopeit_forward_batched.1']
  #allocation3 [shape = 'f32[1,1]{1,0:T(1,128)S(1)}', space=vmem, size = 0x200, scoped, tag = 'scoped memory for scopeit_forward_batched.1']
  %s0 = inlined_call_operand.vmem [shape: f32[4,64,32], index: 0, kind: input, shape index: {}]
  %s1 = inlined_call_operand.vmem [shape: f32[64,256], index: 1, kind: input, shape index: {}]
  %s2 = inlined_call_operand.vmem [shape: f32[1,256], index: 2, kind: input, shape index: {}]
  %s3 = inlined_call_operand.vmem [shape: f32[64,256], index: 3, kind: input, shape index: {}]
  %s4 = inlined_call_operand.vmem [shape: f32[1,64], index: 4, kind: input, shape index: {}]
  %s5 = inlined_call_operand.vmem [shape: f32[64,256], index: 5, kind: input, shape index: {}]
  %s6 = inlined_call_operand.vmem [shape: f32[1,256], index: 6, kind: input, shape index: {}]
  %s7 = inlined_call_operand.vmem [shape: f32[64,256], index: 7, kind: input, shape index: {}]
  %s8 = inlined_call_operand.vmem [shape: f32[1,64], index: 8, kind: input, shape index: {}]
  %s9 = inlined_call_operand.hbm [shape: f32[64,256], index: 9, kind: input, shape index: {}]
  %s10 = inlined_call_operand.vmem [shape: f32[1,256], index: 10, kind: input, shape index: {}]
  %s11 = inlined_call_operand.vmem [shape: f32[1,256], index: 11, kind: input, shape index: {}]
  %s12 = inlined_call_operand.<no memory space> [shape: f32[1,1], index: 12, kind: input, shape index: {}]
  %s13 = inlined_call_operand.hbm [shape: f32[32,128], index: 13, kind: input, shape index: {}]
  %s14 = inlined_call_operand.vmem [shape: f32[1,128], index: 14, kind: input, shape index: {}]
  %s15 = inlined_call_operand.vmem [shape: f32[1,128], index: 15, kind: input, shape index: {}]
  %s16 = inlined_call_operand.<no memory space> [shape: f32[1,1], index: 16, kind: input, shape index: {}]
  %s17 = inlined_call_operand.vmem [shape: f32[4,1,128], index: 17, kind: output, shape index: {}]
  %s18 = sld [smem:[#allocation0]]
  $region109: #{scopeit_forward_batched.1} parent=0
    _
  %s20 = ssub.s32 1, %s18
  %s21 = scalar_select 0, %s20, %s18
  %v22 = vstv %s12
  %23 = vst [vmem:[#allocation2] sm:$0x1] %v22
  %v24 = vstv %s16
  %25 = vst [vmem:[#allocation3] sm:$0x1] %v24
  $region1: #{scopeit_forward_batched.1} parent=0
    #allocation4 [shape = 'u8[65536]{0}', space=vmem, size = 0x10000, scoped, tag = 'input window, operand 9, single buffered']
    #allocation5 [shape = 's32[2]{0}', space=sflag, size = 0x8, scoped, tag = 'scoped memory for scopeit_forward_batched.1']
    #allocation6 [shape = 'u8[16384]{0}', space=vmem, size = 0x4000, scoped, tag = 'input window, operand 13, single buffered']
    #allocation7 [shape = 's32[1]{0}', space=sflag, size = 0x4, scoped, tag = 'scoped memory for scopeit_forward_batched.1']
    %26 = vsyncpa [#allocation5], 0
    %27 = vsyncpa [#allocation7], 0
    loop: start=0, step=1, limit=6
    $region2: #{scopeit_forward_batched.1} parent=1 // loop_pre_header
      _
    $region3: #{scopeit_forward_batched.1} parent=1 // loop_header
      %s29 = sphi 0, %s33
      %p30 = scmp.ge.s32.totalorder %s29, 6
      %s39 = sphi 0, %s41
      %s42 = sphi 0, %s39
      %s43 = sphi 0, %s42
      %s59 = sphi 0, %s43
      %s63 = sphi 0, %s63
      %s65 = sphi 0, %s63
      %s66 = sphi 0, %s65
      %s80 = sphi 0, %s66
      %s84 = sphi 0, %s84
      %s86 = sphi 0, %s84
      %s87 = sphi 0, %s86
      %s101 = sphi 0, %s87
      %s105 = sphi 0, %s105
      %s107 = sphi 0, %s105
      %s108 = sphi 0, %s107
      %s122 = sphi 0, %s108
      %s126 = sphi 0, %s126
      %s128 = sphi 0, %s126
      %s129 = sphi 0, %s128
      %s143 = sphi 0, %s129
      %s147 = sphi 0, %s147
      %s149 = sphi 0, %s147
      %s150 = sphi 0, %s149
      %s164 = sphi 0, %s150
      %s168 = sphi 0, %s168
      %s170 = sphi 0, %s168
      %s171 = sphi 0, %s170
      %s185 = sphi 0, %s171
      %s189 = sphi 0, %s189
      %s191 = sphi 0, %s189
      %s192 = sphi 0, %s191
      %s206 = sphi 0, %s192
      %s210 = sphi 0, %s210
      %s212 = sphi 0, %s210
      %s213 = sphi 0, %s212
      %s227 = sphi 0, %s213
      %s231 = sphi 0, %s231
      %s233 = sphi 0, %s231
      %s234 = sphi 0, %s233
      %s248 = sphi 0, %s234
      %s252 = sphi 0, %s252
      %s254 = sphi 0, %s252
      %s255 = sphi 0, %s254
      %s269 = sphi 0, %s255
      %s273 = sphi 0, %s273
      %s275 = sphi 0, %s273
      %s276 = sphi 0, %s275
      %s290 = sphi 0, %s276
      %s294 = sphi 0, %s294
      %s296 = sphi 0, %s294
      %s297 = sphi 0, %s296
      %s311 = sphi 0, %s297
      %s315 = sphi 0, %s315
      %s317 = sphi 0, %s315
      %s318 = sphi 0, %s317
      %s332 = sphi 0, %s318
      %s336 = sphi 0, %s336
      %s338 = sphi 0, %s336
      %s339 = sphi 0, %s338
      %s353 = sphi 0, %s339
      %s357 = sphi 0, %s357
      %s359 = sphi 0, %s357
      %s360 = sphi 0, %s359
      %s374 = sphi 0, %s360
      %s378 = sphi 0, %s378
      %s380 = sphi 0, %s378
      %s381 = sphi 0, %s380
      %s395 = sphi 0, %s381
      %s401 = sphi 0, %s403
      %s404 = sphi 0, %s401
      %s405 = sphi 0, %s404
      %s421 = sphi 0, %s405
    $region4: #{scopeit_forward_batched.1} parent=1 // loop_header_branch
      %32 = sbr.rel (%p30) target = $region8
    $region5: #{scopeit_forward_batched.1} parent=1 // loop_body
      %s34 = ssub.s32 %s29, 1
      %s35 = ssub.s32 %s29, 2
      %s36 = sadd.s32 %s29, 1
      %s37 = ssub.s32 %s29, %s36
      %p38 = scmp.eq.s32.totalorder %s37, 0
      %s40 = sadd.s32 %s39, 1
      %s41 = scalar_select %p38, %s39, %s40
      %p44 = pneg %p38
      %p45 = scmp.eq.s32.totalorder %s29, 3
      %p46 = por %p44, %p45
      %p47 = scmp.ne.s32.totalorder %s39, %s42
      %p48 = scmp.eq.s32.totalorder %s29, 0
      %p49 = por %p47, %p48
      %p50 = scmp.ne.s32.totalorder %s39, %s42
      %p51 = scmp.eq.s32.totalorder %s34, 3
      %p52 = por %p50, %p51
      %p53 = scmp.ne.s32.totalorder %s42, %s43
      %p54 = scmp.eq.s32.totalorder %s34, 0
      %p55 = por %p53, %p54
      %p56 = scmp.ne.s32.totalorder %s42, %s43
      %p57 = scmp.eq.s32.totalorder %s35, 3
      %p58 = por %p56, %p57
      %p60 = scmp.ne.s32.totalorder %s43, %s59
      %p61 = scmp.eq.s32.totalorder %s35, 0
      %p62 = por %p60, %p61
      %s64 = sadd.s32 %s63, 1
      %p67 = scmp.eq.s32.totalorder %s29, 3
      %p68 = scmp.ne.s32.totalorder %s63, %s65
      %p69 = scmp.eq.s32.totalorder %s29, 0
      %p70 = por %p68, %p69
      %p71 = scmp.ne.s32.totalorder %s63, %s65
      %p72 = scmp.eq.s32.totalorder %s34, 3
      %p73 = por %p71, %p72
      %p74 = scmp.ne.s32.totalorder %s65, %s66
      %p75 = scmp.eq.s32.totalorder %s34, 0
      %p76 = por %p74, %p75
      %p77 = scmp.ne.s32.totalorder %s65, %s66
      %p78 = scmp.eq.s32.totalorder %s35, 3
      %p79 = por %p77, %p78
      %p81 = scmp.ne.s32.totalorder %s66, %s80
      %p82 = scmp.eq.s32.totalorder %s35, 0
      %p83 = por %p81, %p82
      %s85 = sadd.s32 %s84, 1
      %p88 = scmp.eq.s32.totalorder %s29, 3
      %p89 = scmp.ne.s32.totalorder %s84, %s86
      %p90 = scmp.eq.s32.totalorder %s29, 0
      %p91 = por %p89, %p90
      %p92 = scmp.ne.s32.totalorder %s84, %s86
      %p93 = scmp.eq.s32.totalorder %s34, 3
      %p94 = por %p92, %p93
      %p95 = scmp.ne.s32.totalorder %s86, %s87
      %p96 = scmp.eq.s32.totalorder %s34, 0
      %p97 = por %p95, %p96
      %p98 = scmp.ne.s32.totalorder %s86, %s87
      %p99 = scmp.eq.s32.totalorder %s35, 3
      %p100 = por %p98, %p99
      %p102 = scmp.ne.s32.totalorder %s87, %s101
      %p103 = scmp.eq.s32.totalorder %s35, 0
      %p104 = por %p102, %p103
      %s106 = sadd.s32 %s105, 1
      %p109 = scmp.eq.s32.totalorder %s29, 3
      %p110 = scmp.ne.s32.totalorder %s105, %s107
      %p111 = scmp.eq.s32.totalorder %s29, 0
      %p112 = por %p110, %p111
      %p113 = scmp.ne.s32.totalorder %s105, %s107
      %p114 = scmp.eq.s32.totalorder %s34, 3
      %p115 = por %p113, %p114
      %p116 = scmp.ne.s32.totalorder %s107, %s108
      %p117 = scmp.eq.s32.totalorder %s34, 0
      %p118 = por %p116, %p117
      %p119 = scmp.ne.s32.totalorder %s107, %s108
      %p120 = scmp.eq.s32.totalorder %s35, 3
      %p121 = por %p119, %p120
      %p123 = scmp.ne.s32.totalorder %s108, %s122
      %p124 = scmp.eq.s32.totalorder %s35, 0
      %p125 = por %p123, %p124
      %s127 = sadd.s32 %s126, 1
      %p130 = scmp.eq.s32.totalorder %s29, 3
      %p131 = scmp.ne.s32.totalorder %s126, %s128
      %p132 = scmp.eq.s32.totalorder %s29, 0
      %p133 = por %p131, %p132
      %p134 = scmp.ne.s32.totalorder %s126, %s128
      %p135 = scmp.eq.s32.totalorder %s34, 3
      %p136 = por %p134, %p135
      %p137 = scmp.ne.s32.totalorder %s128, %s129
      %p138 = scmp.eq.s32.totalorder %s34, 0
      %p139 = por %p137, %p138
      %p140 = scmp.ne.s32.totalorder %s128, %s129
      %p141 = scmp.eq.s32.totalorder %s35, 3
      %p142 = por %p140, %p141
      %p144 = scmp.ne.s32.totalorder %s129, %s143
      %p145 = scmp.eq.s32.totalorder %s35, 0
      %p146 = por %p144, %p145
      %s148 = sadd.s32 %s147, 1
      %p151 = scmp.eq.s32.totalorder %s29, 3
      %p152 = scmp.ne.s32.totalorder %s147, %s149
      %p153 = scmp.eq.s32.totalorder %s29, 0
      %p154 = por %p152, %p153
      %p155 = scmp.ne.s32.totalorder %s147, %s149
      %p156 = scmp.eq.s32.totalorder %s34, 3
      %p157 = por %p155, %p156
      %p158 = scmp.ne.s32.totalorder %s149, %s150
      %p159 = scmp.eq.s32.totalorder %s34, 0
      %p160 = por %p158, %p159
      %p161 = scmp.ne.s32.totalorder %s149, %s150
      %p162 = scmp.eq.s32.totalorder %s35, 3
      %p163 = por %p161, %p162
      %p165 = scmp.ne.s32.totalorder %s150, %s164
      %p166 = scmp.eq.s32.totalorder %s35, 0
      %p167 = por %p165, %p166
      %s169 = sadd.s32 %s168, 1
      %p172 = scmp.eq.s32.totalorder %s29, 3
      %p173 = scmp.ne.s32.totalorder %s168, %s170
      %p174 = scmp.eq.s32.totalorder %s29, 0
      %p175 = por %p173, %p174
      %p176 = scmp.ne.s32.totalorder %s168, %s170
      %p177 = scmp.eq.s32.totalorder %s34, 3
      %p178 = por %p176, %p177
      %p179 = scmp.ne.s32.totalorder %s170, %s171
      %p180 = scmp.eq.s32.totalorder %s34, 0
      %p181 = por %p179, %p180
      %p182 = scmp.ne.s32.totalorder %s170, %s171
      %p183 = scmp.eq.s32.totalorder %s35, 3
      %p184 = por %p182, %p183
      %p186 = scmp.ne.s32.totalorder %s171, %s185
      %p187 = scmp.eq.s32.totalorder %s35, 0
      %p188 = por %p186, %p187
      %s190 = sadd.s32 %s189, 1
      %p193 = scmp.eq.s32.totalorder %s29, 3
      %p194 = scmp.ne.s32.totalorder %s189, %s191
      %p195 = scmp.eq.s32.totalorder %s29, 0
      %p196 = por %p194, %p195
      %p197 = scmp.ne.s32.totalorder %s189, %s191
      %p198 = scmp.eq.s32.totalorder %s34, 3
      %p199 = por %p197, %p198
      %p200 = scmp.ne.s32.totalorder %s191, %s192
      %p201 = scmp.eq.s32.totalorder %s34, 0
      %p202 = por %p200, %p201
      %p203 = scmp.ne.s32.totalorder %s191, %s192
      %p204 = scmp.eq.s32.totalorder %s35, 3
      %p205 = por %p203, %p204
      %p207 = scmp.ne.s32.totalorder %s192, %s206
      %p208 = scmp.eq.s32.totalorder %s35, 0
      %p209 = por %p207, %p208
      %s211 = sadd.s32 %s210, 1
      %p214 = scmp.eq.s32.totalorder %s29, 3
      %p215 = scmp.ne.s32.totalorder %s210, %s212
      %p216 = scmp.eq.s32.totalorder %s29, 0
      %p217 = por %p215, %p216
      %p218 = scmp.ne.s32.totalorder %s210, %s212
      %p219 = scmp.eq.s32.totalorder %s34, 3
      %p220 = por %p218, %p219
      %p221 = scmp.ne.s32.totalorder %s212, %s213
      %p222 = scmp.eq.s32.totalorder %s34, 0
      %p223 = por %p221, %p222
      %p224 = scmp.ne.s32.totalorder %s212, %s213
      %p225 = scmp.eq.s32.totalorder %s35, 3
      %p226 = por %p224, %p225
      %p228 = scmp.ne.s32.totalorder %s213, %s227
      %p229 = scmp.eq.s32.totalorder %s35, 0
      %p230 = por %p228, %p229
      %s232 = sadd.s32 %s231, 1
      %p235 = scmp.eq.s32.totalorder %s29, 3
      %p236 = scmp.ne.s32.totalorder %s231, %s233
      %p237 = scmp.eq.s32.totalorder %s29, 0
      %p238 = por %p236, %p237
      %p239 = scmp.ne.s32.totalorder %s231, %s233
      %p240 = scmp.eq.s32.totalorder %s34, 3
      %p241 = por %p239, %p240
      %p242 = scmp.ne.s32.totalorder %s233, %s234
      %p243 = scmp.eq.s32.totalorder %s34, 0
      %p244 = por %p242, %p243
      %p245 = scmp.ne.s32.totalorder %s233, %s234
      %p246 = scmp.eq.s32.totalorder %s35, 3
      %p247 = por %p245, %p246
      %p249 = scmp.ne.s32.totalorder %s234, %s248
      %p250 = scmp.eq.s32.totalorder %s35, 0
      %p251 = por %p249, %p250
      %s253 = sadd.s32 %s252, 1
      %p256 = scmp.eq.s32.totalorder %s29, 3
      %p257 = scmp.ne.s32.totalorder %s252, %s254
      %p258 = scmp.eq.s32.totalorder %s29, 0
      %p259 = por %p257, %p258
      %p260 = scmp.ne.s32.totalorder %s252, %s254
      %p261 = scmp.eq.s32.totalorder %s34, 3
      %p262 = por %p260, %p261
      %p263 = scmp.ne.s32.totalorder %s254, %s255
      %p264 = scmp.eq.s32.totalorder %s34, 0
      %p265 = por %p263, %p264
      %p266 = scmp.ne.s32.totalorder %s254, %s255
      %p267 = scmp.eq.s32.totalorder %s35, 3
      %p268 = por %p266, %p267
      %p270 = scmp.ne.s32.totalorder %s255, %s269
      %p271 = scmp.eq.s32.totalorder %s35, 0
      %p272 = por %p270, %p271
      %s274 = sadd.s32 %s273, 1
      %p277 = scmp.eq.s32.totalorder %s29, 3
      %p278 = scmp.ne.s32.totalorder %s273, %s275
      %p279 = scmp.eq.s32.totalorder %s29, 0
      %p280 = por %p278, %p279
      %p281 = scmp.ne.s32.totalorder %s273, %s275
      %p282 = scmp.eq.s32.totalorder %s34, 3
      %p283 = por %p281, %p282
      %p284 = scmp.ne.s32.totalorder %s275, %s276
      %p285 = scmp.eq.s32.totalorder %s34, 0
      %p286 = por %p284, %p285
      %p287 = scmp.ne.s32.totalorder %s275, %s276
      %p288 = scmp.eq.s32.totalorder %s35, 3
      %p289 = por %p287, %p288
      %p291 = scmp.ne.s32.totalorder %s276, %s290
      %p292 = scmp.eq.s32.totalorder %s35, 0
      %p293 = por %p291, %p292
      %s295 = sadd.s32 %s294, 1
      %p298 = scmp.eq.s32.totalorder %s29, 3
      %p299 = scmp.ne.s32.totalorder %s294, %s296
      %p300 = scmp.eq.s32.totalorder %s29, 0
      %p301 = por %p299, %p300
      %p302 = scmp.ne.s32.totalorder %s294, %s296
      %p303 = scmp.eq.s32.totalorder %s34, 3
      %p304 = por %p302, %p303
      %p305 = scmp.ne.s32.totalorder %s296, %s297
      %p306 = scmp.eq.s32.totalorder %s34, 0
      %p307 = por %p305, %p306
      %p308 = scmp.ne.s32.totalorder %s296, %s297
      %p309 = scmp.eq.s32.totalorder %s35, 3
      %p310 = por %p308, %p309
      %p312 = scmp.ne.s32.totalorder %s297, %s311
      %p313 = scmp.eq.s32.totalorder %s35, 0
      %p314 = por %p312, %p313
      %s316 = sadd.s32 %s315, 1
      %p319 = scmp.eq.s32.totalorder %s29, 3
      %p320 = scmp.ne.s32.totalorder %s315, %s317
      %p321 = scmp.eq.s32.totalorder %s29, 0
      %p322 = por %p320, %p321
      %p323 = scmp.ne.s32.totalorder %s315, %s317
      %p324 = scmp.eq.s32.totalorder %s34, 3
      %p325 = por %p323, %p324
      %p326 = scmp.ne.s32.totalorder %s317, %s318
      %p327 = scmp.eq.s32.totalorder %s34, 0
      %p328 = por %p326, %p327
      %p329 = scmp.ne.s32.totalorder %s317, %s318
      %p330 = scmp.eq.s32.totalorder %s35, 3
      %p331 = por %p329, %p330
      %p333 = scmp.ne.s32.totalorder %s318, %s332
      %p334 = scmp.eq.s32.totalorder %s35, 0
      %p335 = por %p333, %p334
      %s337 = sadd.s32 %s336, 1
      %p340 = scmp.eq.s32.totalorder %s29, 3
      %p341 = scmp.ne.s32.totalorder %s336, %s338
      %p342 = scmp.eq.s32.totalorder %s29, 0
      %p343 = por %p341, %p342
      %p344 = scmp.ne.s32.totalorder %s336, %s338
      %p345 = scmp.eq.s32.totalorder %s34, 3
      %p346 = por %p344, %p345
      %p347 = scmp.ne.s32.totalorder %s338, %s339
      %p348 = scmp.eq.s32.totalorder %s34, 0
      %p349 = por %p347, %p348
      %p350 = scmp.ne.s32.totalorder %s338, %s339
      %p351 = scmp.eq.s32.totalorder %s35, 3
      %p352 = por %p350, %p351
      %p354 = scmp.ne.s32.totalorder %s339, %s353
      %p355 = scmp.eq.s32.totalorder %s35, 0
      %p356 = por %p354, %p355
      %s358 = sadd.s32 %s357, 1
      %p361 = scmp.eq.s32.totalorder %s29, 3
      %p362 = scmp.ne.s32.totalorder %s357, %s359
      %p363 = scmp.eq.s32.totalorder %s29, 0
      %p364 = por %p362, %p363
      %p365 = scmp.ne.s32.totalorder %s357, %s359
      %p366 = scmp.eq.s32.totalorder %s34, 3
      %p367 = por %p365, %p366
      %p368 = scmp.ne.s32.totalorder %s359, %s360
      %p369 = scmp.eq.s32.totalorder %s34, 0
      %p370 = por %p368, %p369
      %p371 = scmp.ne.s32.totalorder %s359, %s360
      %p372 = scmp.eq.s32.totalorder %s35, 3
      %p373 = por %p371, %p372
      %p375 = scmp.ne.s32.totalorder %s360, %s374
      %p376 = scmp.eq.s32.totalorder %s35, 0
      %p377 = por %p375, %p376
      %s379 = sadd.s32 %s378, 1
      %p382 = scmp.eq.s32.totalorder %s29, 3
      %p383 = scmp.ne.s32.totalorder %s378, %s380
      %p384 = scmp.eq.s32.totalorder %s29, 0
      %p385 = por %p383, %p384
      %p386 = scmp.ne.s32.totalorder %s378, %s380
      %p387 = scmp.eq.s32.totalorder %s34, 3
      %p388 = por %p386, %p387
      %p389 = scmp.ne.s32.totalorder %s380, %s381
      %p390 = scmp.eq.s32.totalorder %s34, 0
      %p391 = por %p389, %p390
      %p392 = scmp.ne.s32.totalorder %s380, %s381
      %p393 = scmp.eq.s32.totalorder %s35, 3
      %p394 = por %p392, %p393
      %p396 = scmp.ne.s32.totalorder %s381, %s395
      %p397 = scmp.eq.s32.totalorder %s35, 0
      %p398 = por %p396, %p397
      %s399 = ssub.s32 %s29, %s36
      %p400 = scmp.eq.s32.totalorder %s399, 0
      %s402 = sadd.s32 %s401, 1
      %s403 = scalar_select %p400, %s401, %s402
      %p406 = pneg %p400
      %p407 = scmp.eq.s32.totalorder %s29, 3
      %p408 = por %p406, %p407
      %p409 = scmp.ne.s32.totalorder %s401, %s404
      %p410 = scmp.eq.s32.totalorder %s29, 0
      %p411 = por %p409, %p410
      %p412 = scmp.ne.s32.totalorder %s401, %s404
      %p413 = scmp.eq.s32.totalorder %s34, 3
      %p414 = por %p412, %p413
      %p415 = scmp.ne.s32.totalorder %s404, %s405
      %p416 = scmp.eq.s32.totalorder %s34, 0
      %p417 = por %p415, %p416
      %p418 = scmp.ne.s32.totalorder %s404, %s405
      %p419 = scmp.eq.s32.totalorder %s35, 3
      %p420 = por %p418, %p419
      %p422 = scmp.ne.s32.totalorder %s405, %s421
      %p423 = scmp.eq.s32.totalorder %s35, 0
      %p424 = por %p422, %p423
      %p425 = scmp.le.s32.totalorder 1, %s29
      %p426 = scmp.lt.s32.totalorder %s29, 5
      %p427 = pnand %p425, %p426
      %p428 = pneg %p427
      // Predicated region
      $region9: #{scopeit_forward_batched.1} parent=5 // pred_check
        _
      $region10: #{scopeit_forward_batched.1} parent=5 // pred_check_branch
        %430 = sbr.rel (%p427) target = $region12
      $region11: #{scopeit_forward_batched.1} parent=5 // pred_region
        %s431 = ssub.s32 %s29, 1
        // Predicated region
        $region13: #{scopeit_forward_batched.1} parent=11 // pred_check
          %p432 = pneg %p76
        $region14: #{scopeit_forward_batched.1} parent=11 // pred_check_branch
          %434 = sbr.rel (%p432) target = $region16
        $region15: #{scopeit_forward_batched.1} parent=11 // pred_region
          _
        $region16: #{scopeit_forward_batched.1} parent=11 // pred_fallthru
          _
        // Predicated region
        $region17: #{scopeit_forward_batched.1} parent=11 // pred_check
          %p435 = pneg %p97
        $region18: #{scopeit_forward_batched.1} parent=11 // pred_check_branch
          %437 = sbr.rel (%p435) target = $region20
        $region19: #{scopeit_forward_batched.1} parent=11 // pred_region
          _
        $region20: #{scopeit_forward_batched.1} parent=11 // pred_fallthru
          _
        // Predicated region
        $region21: #{scopeit_forward_batched.1} parent=11 // pred_check
          %p438 = pneg %p118
        $region22: #{scopeit_forward_batched.1} parent=11 // pred_check_branch
          %440 = sbr.rel (%p438) target = $region24
        $region23: #{scopeit_forward_batched.1} parent=11 // pred_region
          _
        $region24: #{scopeit_forward_batched.1} parent=11 // pred_fallthru
          _
        // Predicated region
        $region25: #{scopeit_forward_batched.1} parent=11 // pred_check
          %p441 = pneg %p139
        $region26: #{scopeit_forward_batched.1} parent=11 // pred_check_branch
          %443 = sbr.rel (%p441) target = $region28
        $region27: #{scopeit_forward_batched.1} parent=11 // pred_region
          _
        $region28: #{scopeit_forward_batched.1} parent=11 // pred_fallthru
          _
        // Predicated region
        $region29: #{scopeit_forward_batched.1} parent=11 // pred_check
          %p444 = pneg %p160
        $region30: #{scopeit_forward_batched.1} parent=11 // pred_check_branch
          %446 = sbr.rel (%p444) target = $region32
        $region31: #{scopeit_forward_batched.1} parent=11 // pred_region
          _
        $region32: #{scopeit_forward_batched.1} parent=11 // pred_fallthru
          _
        // Predicated region
        $region33: #{scopeit_forward_batched.1} parent=11 // pred_check
          %p447 = pneg %p181
        $region34: #{scopeit_forward_batched.1} parent=11 // pred_check_branch
          %449 = sbr.rel (%p447) target = $region36
        $region35: #{scopeit_forward_batched.1} parent=11 // pred_region
          _
        $region36: #{scopeit_forward_batched.1} parent=11 // pred_fallthru
          _
        // Predicated region
        $region37: #{scopeit_forward_batched.1} parent=11 // pred_check
          %p450 = pneg %p202
        $region38: #{scopeit_forward_batched.1} parent=11 // pred_check_branch
          %452 = sbr.rel (%p450) target = $region40
        $region39: #{scopeit_forward_batched.1} parent=11 // pred_region
          _
        $region40: #{scopeit_forward_batched.1} parent=11 // pred_fallthru
          _
        // Predicated region
        $region41: #{scopeit_forward_batched.1} parent=11 // pred_check
          %p453 = pneg %p223
        $region42: #{scopeit_forward_batched.1} parent=11 // pred_check_branch
          %455 = sbr.rel (%p453) target = $region44
        $region43: #{scopeit_forward_batched.1} parent=11 // pred_region
          _
        $region44: #{scopeit_forward_batched.1} parent=11 // pred_fallthru
          _
        // Predicated region
        $region45: #{scopeit_forward_batched.1} parent=11 // pred_check
          %p456 = pneg %p244
        $region46: #{scopeit_forward_batched.1} parent=11 // pred_check_branch
          %458 = sbr.rel (%p456) target = $region48
        $region47: #{scopeit_forward_batched.1} parent=11 // pred_region
          %s460 = ssub.s32 2048, 2048
          %461 = vsyncadd [#allocation5], %s460
          %s462 = sshll.u32 [#allocation4], 4
          %s463 = int_to_ptr.vmem [resolvable:$true] %s462
          %468 = dma.hbm_to_vmem [thread:$0]  %s9, 2048, %s463, [#allocation5], 256, 256, 16
        $region48: #{scopeit_forward_batched.1} parent=11 // pred_fallthru
          _
        // Predicated region
        $region49: #{scopeit_forward_batched.1} parent=11 // pred_check
          %p469 = pneg %p265
        $region50: #{scopeit_forward_batched.1} parent=11 // pred_check_branch
          %471 = sbr.rel (%p469) target = $region52
        $region51: #{scopeit_forward_batched.1} parent=11 // pred_region
          _
        $region52: #{scopeit_forward_batched.1} parent=11 // pred_fallthru
          _
        // Predicated region
        $region53: #{scopeit_forward_batched.1} parent=11 // pred_check
          %p472 = pneg %p286
        $region54: #{scopeit_forward_batched.1} parent=11 // pred_check_branch
          %474 = sbr.rel (%p472) target = $region56
        $region55: #{scopeit_forward_batched.1} parent=11 // pred_region
          _
        $region56: #{scopeit_forward_batched.1} parent=11 // pred_fallthru
          _
        // Predicated region
        $region57: #{scopeit_forward_batched.1} parent=11 // pred_check
          %p475 = pneg %p307
        $region58: #{scopeit_forward_batched.1} parent=11 // pred_check_branch
          %477 = sbr.rel (%p475) target = $region60
        $region59: #{scopeit_forward_batched.1} parent=11 // pred_region
          _
        $region60: #{scopeit_forward_batched.1} parent=11 // pred_fallthru
          _
        // Predicated region
        $region61: #{scopeit_forward_batched.1} parent=11 // pred_check
          %p478 = pneg %p328
        $region62: #{scopeit_forward_batched.1} parent=11 // pred_check_branch
          %480 = sbr.rel (%p478) target = $region64
        $region63: #{scopeit_forward_batched.1} parent=11 // pred_region
          %s482 = ssub.s32 512, 512
          %483 = vsyncadd [#allocation7], %s482
          %s484 = sshll.u32 [#allocation6], 4
          %s485 = int_to_ptr.vmem [resolvable:$true] %s484
          %490 = dma.hbm_to_vmem [thread:$0]  %s13, 512, %s485, [#allocation7], 128, 128, 8
        $region64: #{scopeit_forward_batched.1} parent=11 // pred_fallthru
          _
        // Predicated region
        $region65: #{scopeit_forward_batched.1} parent=11 // pred_check
          %p491 = pneg %p349
        $region66: #{scopeit_forward_batched.1} parent=11 // pred_check_branch
          %493 = sbr.rel (%p491) target = $region68
        $region67: #{scopeit_forward_batched.1} parent=11 // pred_region
          _
        $region68: #{scopeit_forward_batched.1} parent=11 // pred_fallthru
          _
        // Predicated region
        $region69: #{scopeit_forward_batched.1} parent=11 // pred_check
          %p494 = pneg %p370
        $region70: #{scopeit_forward_batched.1} parent=11 // pred_check_branch
          %496 = sbr.rel (%p494) target = $region72
        $region71: #{scopeit_forward_batched.1} parent=11 // pred_region
          _
        $region72: #{scopeit_forward_batched.1} parent=11 // pred_fallthru
          _
        // Predicated region
        $region73: #{scopeit_forward_batched.1} parent=11 // pred_check
          %p497 = pneg %p391
        $region74: #{scopeit_forward_batched.1} parent=11 // pred_check_branch
          %499 = sbr.rel (%p497) target = $region76
        $region75: #{scopeit_forward_batched.1} parent=11 // pred_region
          _
        $region76: #{scopeit_forward_batched.1} parent=11 // pred_fallthru
          _
      $region12: #{scopeit_forward_batched.1} parent=5 // pred_fallthru
        _
      %p500 = scmp.lt.s32.totalorder %s29, 4
      // Predicated region
      $region77: #{scopeit_forward_batched.1} parent=5 // pred_check
        %p501 = pneg %p500
      $region78: #{scopeit_forward_batched.1} parent=5 // pred_check_branch
        %503 = sbr.rel (%p501) target = $region80
      $region79: #{scopeit_forward_batched.1} parent=5 // pred_region
        // Predicated region
        $region81: #{scopeit_forward_batched.1} parent=79 // pred_check
          %p504 = pneg %p49
        $region82: #{scopeit_forward_batched.1} parent=79 // pred_check_branch
          %506 = sbr.rel (%p504) target = $region84
        $region83: #{scopeit_forward_batched.1} parent=79 // pred_region
          %p507 = scmp.lt.s32.totalorder %s29, 3
          %s508 = scalar_select %p507, %s29, 3
          %s509 = smul.addr %s508, 8
          %s510 = smul.addr %s509, 8
          %s511 = scalar_lea.vmem %s0, %s510
        $region84: #{scopeit_forward_batched.1} parent=79 // pred_fallthru
          _
      $region80: #{scopeit_forward_batched.1} parent=5 // pred_fallthru
        _
      %p512 = scmp.le.s32.totalorder 1, %s29
      %p513 = scmp.lt.s32.totalorder %s29, 5
      %p514 = pnand %p512, %p513
      %p515 = pneg %p514
      // Predicated region
      $region85: #{scopeit_forward_batched.1} parent=5 // pred_check
        _
      $region86: #{scopeit_forward_batched.1} parent=5 // pred_check_branch
        %517 = sbr.rel (%p514) target = $region88
      $region87: #{scopeit_forward_batched.1} parent=5 // pred_region
        %s518 = ssub.s32 %s29, 1
        // Predicated region
        $region89: #{scopeit_forward_batched.1} parent=87 // pred_check
          %p519 = pneg %p244
        $region90: #{scopeit_forward_batched.1} parent=87 // pred_check_branch
          %521 = sbr.rel (%p519) target = $region92
        $region91: #{scopeit_forward_batched.1} parent=87 // pred_region
          %522 = dma.done [#allocation5], 2048
        $region92: #{scopeit_forward_batched.1} parent=87 // pred_fallthru
          _
        // Predicated region
        $region93: #{scopeit_forward_batched.1} parent=87 // pred_check
          %p523 = pneg %p328
        $region94: #{scopeit_forward_batched.1} parent=87 // pred_check_branch
          %525 = sbr.rel (%p523) target = $region96
        $region95: #{scopeit_forward_batched.1} parent=87 // pred_region
          %526 = dma.done [#allocation7], 512
        $region96: #{scopeit_forward_batched.1} parent=87 // pred_fallthru
          _
        %p527 = scmp.lt.s32.totalorder %s34, 3
        %s528 = scalar_select %p527, %s34, 3
        %s529 = smul.addr %s528, 8
        %s530 = smul.addr %s529, 8
        %s531 = scalar_lea.vmem %s0, %s530
        %p532 = pneg %p55
        %p533 = pneg %p52
        %p534 = pneg %p76
        %p535 = pneg %p73
        %p536 = pneg %p97
        %p537 = pneg %p94
        %p538 = pneg %p118
        %p539 = pneg %p115
        %p540 = pneg %p139
        %p541 = pneg %p136
        %p542 = pneg %p160
        %p543 = pneg %p157
        %p544 = pneg %p181
        %p545 = pneg %p178
        %p546 = pneg %p202
        %p547 = pneg %p199
        %p548 = pneg %p223
        %p549 = pneg %p220
        %p550 = pneg %p244
        %p551 = pneg %p241
        %p552 = pneg %p265
        %p553 = pneg %p262
        %p554 = pneg %p286
        %p555 = pneg %p283
        %p556 = pneg %p307
        %p557 = pneg %p304
        %p558 = pneg %p328
        %p559 = pneg %p325
        %p560 = pneg %p349
        %p561 = pneg %p346
        %p562 = pneg %p370
        %p563 = pneg %p367
        %p564 = pneg %p391
        %p565 = pneg %p388
        %p566 = pneg %p417
        %p567 = pneg %p414
        %p568 = scmp.lt.s32.totalorder %s34, 3
        %s569 = scalar_select %p568, %s34, 3
        %s570 = scalar_lea.vmem %s17, %s569
        %p571 = scmp.lt.s32.totalorder %s34, 3
        %s572 = scalar_select %p571, %s34, 3
        %s573 = smul.addr %s572, 8
        %s574 = smul.addr %s573, 8
        %s575 = scalar_lea.vmem %s0, %s574
        %p576 = scmp.lt.s32.totalorder %s34, 3
        %s577 = scalar_select %p576, %s34, 3
        %s578 = scalar_lea.vmem %s17, %s577
        %v579 = vld [vmem:[%s575] sm:$0xff]
        %v580 = vld [vmem:[%s575 + $0x8] sm:$0xff]
        %v581 = vld [vmem:[%s575 + $0x10] sm:$0xff]
        %v582 = vld [vmem:[%s575 + $0x18] sm:$0xff]
        %v583 = vld [vmem:[%s575 + $0x20] sm:$0xff]
        %v584 = vld [vmem:[%s575 + $0x28] sm:$0xff]
        %v585 = vld [vmem:[%s575 + $0x30] sm:$0xff]
        %v586 = vld [vmem:[%s575 + $0x38] sm:$0xff]
        %v587 = vld [vmem:[%s1] sm:$0xff]
        %v588 = vld [vmem:[%s1 + $0x8] sm:$0xff]
        %v589 = vld [vmem:[%s1 + $0x10] sm:$0xff]
        %v590 = vld [vmem:[%s1 + $0x18] sm:$0xff]
        %v591 = vld [vmem:[%s1 + $0x20] sm:$0xff]
        %v592 = vld [vmem:[%s1 + $0x28] sm:$0xff]
        %v593 = vld [vmem:[%s1 + $0x30] sm:$0xff]
        %v594 = vld [vmem:[%s1 + $0x38] sm:$0xff]
        %v595 = vld [vmem:[%s2] sm:$0x3]
        %v597 = vlaneseq
        %v598 = vshrl.u32 %v597, 7
        %v599 = vsub.s32 0, %v598
        %v600 = vrot.slane %v595, %v599
        %v601 = vlaneseq
        %v602 = vshrl.u32 %v601, 7
        %v603 = vsub.s32 1, %v602
        %v604 = vrot.slane %v595, %v603
        %vm607 = vcmask 261120
        %v609 = vsel %vm607, %v579, 0
        %v612 = vsel %vm607, %v580, 0
        %v615 = vsel %vm607, %v581, 0
        %v618 = vsel %vm607, %v582, 0
        %v621 = vsel %vm607, %v583, 0
        %v624 = vsel %vm607, %v584, 0
        %v627 = vsel %vm607, %v585, 0
        %v630 = vsel %vm607, %v586, 0
        %632 = vmatprep.subr.mxu0 %v588
        %633 = vmatpush1.msra.mxu0 %v587
        %634 = vmatprep.subr.mxu0 %v590
        %635 = vmatpush1.msra.mxu0 %v589
        %636 = vmatprep.subr.mxu0 %v592
        %637 = vmatpush1.msra.mxu0 %v591
        %638 = vmatprep.subr.mxu0 %v594
        %639 = vmatpush1.msra.mxu0 %v593
        %640 = vmatprep.subr.mxu0 0.0
        %641 = vmatpush1.msra.mxu0 0.0
        %642 = vmatprep.subr.mxu0 0.0
        %643 = vmatpush1.msra.mxu0 0.0
        %644 = vmatprep.subr.mxu0 0.0
        %645 = vmatpush1.msra.mxu0 0.0
        %646 = vmatprep.subr.mxu0 0.0
        %647 = vmatpush1.msra.mxu0 0.0
        %648 = vmatprep.subr.mxu0 0.0
        %649 = vmatpush1.msra.mxu0 0.0
        %650 = vmatprep.subr.mxu0 0.0
        %651 = vmatpush1.msra.mxu0 0.0
        %652 = vmatprep.subr.mxu0 0.0
        %653 = vmatpush1.msra.mxu0 0.0
        %654 = vmatprep.subr.mxu0 0.0
        %655 = vmatpush1.msra.mxu0 0.0
        %656 = vmatprep.subr.mxu0 0.0
        %657 = vmatpush1.msra.mxu0 0.0
        %658 = vmatprep.subr.mxu0 0.0
        %659 = vmatpush1.msra.mxu0 0.0
        %660 = vmatprep.subr.mxu0 0.0
        %661 = vmatpush1.msra.mxu0 0.0
        %662 = vmatprep.subr.mxu0 0.0
        %663 = vmatpush1.msra.mxu0 0.0
        %664 = vmatprep.subr.mxu0 0.0
        %665 = vmatpush1.msra.mxu0 0.0
        %666 = vmatprep.subr.mxu0 0.0
        %667 = vmatpush1.msra.mxu0 0.0
        %668 = vmatprep.subr.mxu0 0.0
        %669 = vmatpush1.msra.mxu0 0.0
        %670 = vmatprep.subr.mxu0 0.0
        %671 = vmatpush1.msra.mxu0 0.0
        %672 = vmatprep.subr.mxu0 0.0
        %673 = vmatpush1.msra.mxu0 0.0
        %674 = vmatprep.subr.mxu0 0.0
        %675 = vmatpush1.msra.mxu0 0.0
        %676 = vmatprep.subr.mxu0 0.0
        %677 = vmatpush1.msra.mxu0 0.0
        %678 = vmatprep.subr.mxu0 0.0
        %679 = vmatpush1.msra.mxu0 0.0
        %680 = vmatprep.subr.mxu0 0.0
        %681 = vmatpush1.msra.mxu0 0.0
        %682 = vmatprep.subr.mxu0 0.0
        %683 = vmatpush1.msra.mxu0 0.0
        %684 = vmatprep.subr.mxu0 0.0
        %685 = vmatpush1.msra.mxu0 0.0
        %686 = vmatprep.subr.mxu0 0.0
        %687 = vmatpush1.msra.mxu0 0.0
        %688 = vmatprep.subr.mxu0 0.0
        %689 = vmatpush1.msra.mxu0 0.0
        %690 = vmatprep.subr.mxu0 0.0
        %691 = vmatpush1.msra.mxu0 0.0
        %692 = vmatprep.subr.mxu0 0.0
        %693 = vmatpush1.msra.mxu0 0.0
        %694 = vmatprep.subr.mxu0 0.0
        %695 = vmatpush1.msra.mxu0 0.0
        %696 = vmatprep.mubr.f32.mxu0 0.0
        %697 = vmatmul.mubr.f32.gmra.mrb[0].mxu0 %v609
        %v698 = vpop.f32.mrb[0].mxu0
        %v699 = vadd.f32 %v600, %v698
        %v700 = vpop.f32.mrb[0].mxu0
        %v701 = vadd.f32 %v604, %v700
        %702 = vmatprep.mubr.f32.mxu0 0.0
        %703 = vmatmul.mubr.f32.gmra.mrb[0].mxu0 %v612
        %v704 = vpop.f32.mrb[0].mxu0
        %v705 = vadd.f32 %v600, %v704
        %v706 = vpop.f32.mrb[0].mxu0
        %v707 = vadd.f32 %v604, %v706
        %708 = vmatprep.mubr.f32.mxu0 0.0
        %709 = vmatmul.mubr.f32.gmra.mrb[0].mxu0 %v615
        %v710 = vpop.f32.mrb[0].mxu0
        %v711 = vadd.f32 %v600, %v710
        %v712 = vpop.f32.mrb[0].mxu0
        %v713 = vadd.f32 %v604, %v712
        %714 = vmatprep.mubr.f32.mxu0 0.0
        %715 = vmatmul.mubr.f32.gmra.mrb[0].mxu0 %v618
        %v716 = vpop.f32.mrb[0].mxu0
        %v717 = vadd.f32 %v600, %v716
        %v718 = vpop.f32.mrb[0].mxu0
        %v719 = vadd.f32 %v604, %v718
        %720 = vmatprep.mubr.f32.mxu0 0.0
        %721 = vmatmul.mubr.f32.gmra.mrb[0].mxu0 %v621
        %v722 = vpop.f32.mrb[0].mxu0
        %v723 = vadd.f32 %v600, %v722
        %v724 = vpop.f32.mrb[0].mxu0
        %v725 = vadd.f32 %v604, %v724
        %726 = vmatprep.mubr.f32.mxu0 0.0
        %727 = vmatmul.mubr.f32.gmra.mrb[0].mxu0 %v624
        %v728 = vpop.f32.mrb[0].mxu0
        %v729 = vadd.f32 %v600, %v728
        %v730 = vpop.f32.mrb[0].mxu0
        %v731 = vadd.f32 %v604, %v730
        %732 = vmatprep.mubr.f32.mxu0 0.0
        %733 = vmatmul.mubr.f32.gmra.mrb[0].mxu0 %v627
        %v734 = vpop.f32.mrb[0].mxu0
        %v735 = vadd.f32 %v600, %v734
        %v736 = vpop.f32.mrb[0].mxu0
        %v737 = vadd.f32 %v604, %v736
        %738 = vmatprep.mubr.f32.mxu0 0.0
        %739 = vmatmul.mubr.f32.gmra.mrb[0].mxu0 %v630
        %v740 = vpop.f32.mrb[0].mxu0
        %v741 = vadd.f32 %v600, %v740
        %v742 = vpop.f32.mrb[0].mxu0
        %v743 = vadd.f32 %v604, %v742
        %744 = vdwg.mxu0
        %v745 = vld [vmem:[%s1 + $0x40] sm:$0xff]
        %v746 = vld [vmem:[%s1 + $0x48] sm:$0xff]
        %v747 = vld [vmem:[%s1 + $0x50] sm:$0xff]
        %v748 = vld [vmem:[%s1 + $0x58] sm:$0xff]
        %v749 = vld [vmem:[%s1 + $0x60] sm:$0xff]
        %v750 = vld [vmem:[%s1 + $0x68] sm:$0xff]
        %v751 = vld [vmem:[%s1 + $0x70] sm:$0xff]
        %v752 = vld [vmem:[%s1 + $0x78] sm:$0xff]
        %753 = vmatprep.subr.mxu0 %v746
        %754 = vmatpush1.msra.mxu0 %v745
        %755 = vmatprep.subr.mxu0 %v748
        %756 = vmatpush1.msra.mxu0 %v747
        %757 = vmatprep.subr.mxu0 %v750
        %758 = vmatpush1.msra.mxu0 %v749
        %759 = vmatprep.subr.mxu0 %v752
        %760 = vmatpush1.msra.mxu0 %v751
        %761 = vmatprep.subr.mxu0 0.0
        %762 = vmatpush1.msra.mxu0 0.0
        %763 = vmatprep.subr.mxu0 0.0
        %764 = vmatpush1.msra.mxu0 0.0
        %765 = vmatprep.subr.mxu0 0.0
        %766 = vmatpush1.msra.mxu0 0.0
        %767 = vmatprep.subr.mxu0 0.0
        %768 = vmatpush1.msra.mxu0 0.0
        %769 = vmatprep.subr.mxu0 0.0
        %770 = vmatpush1.msra.mxu0 0.0
        %771 = vmatprep.subr.mxu0 0.0
        %772 = vmatpush1.msra.mxu0 0.0
        %773 = vmatprep.subr.mxu0 0.0
        %774 = vmatpush1.msra.mxu0 0.0
        %775 = vmatprep.subr.mxu0 0.0
        %776 = vmatpush1.msra.mxu0 0.0
        %777 = vmatprep.subr.mxu0 0.0
        %778 = vmatpush1.msra.mxu0 0.0
        %779 = vmatprep.subr.mxu0 0.0
        %780 = vmatpush1.msra.mxu0 0.0
        %781 = vmatprep.subr.mxu0 0.0
        %782 = vmatpush1.msra.mxu0 0.0
        %783 = vmatprep.subr.mxu0 0.0
        %784 = vmatpush1.msra.mxu0 0.0
        %785 = vmatprep.subr.mxu0 0.0
        %786 = vmatpush1.msra.mxu0 0.0
        %787 = vmatprep.subr.mxu0 0.0
        %788 = vmatpush1.msra.mxu0 0.0
        %789 = vmatprep.subr.mxu0 0.0
        %790 = vmatpush1.msra.mxu0 0.0
        %791 = vmatprep.subr.mxu0 0.0
        %792 = vmatpush1.msra.mxu0 0.0
        %793 = vmatprep.subr.mxu0 0.0
        %794 = vmatpush1.msra.mxu0 0.0
        %795 = vmatprep.subr.mxu0 0.0
        %796 = vmatpush1.msra.mxu0 0.0
        %797 = vmatprep.subr.mxu0 0.0
        %798 = vmatpush1.msra.mxu0 0.0
        %799 = vmatprep.subr.mxu0 0.0
        %800 = vmatpush1.msra.mxu0 0.0
        %801 = vmatprep.subr.mxu0 0.0
        %802 = vmatpush1.msra.mxu0 0.0
        %803 = vmatprep.subr.mxu0 0.0
        %804 = vmatpush1.msra.mxu0 0.0
        %805 = vmatprep.subr.mxu0 0.0
        %806 = vmatpush1.msra.mxu0 0.0
        %807 = vmatprep.subr.mxu0 0.0
        %808 = vmatpush1.msra.mxu0 0.0
        %809 = vmatprep.subr.mxu0 0.0
        %810 = vmatpush1.msra.mxu0 0.0
        %811 = vmatprep.subr.mxu0 0.0
        %812 = vmatpush1.msra.mxu0 0.0
        %813 = vmatprep.subr.mxu0 0.0
        %814 = vmatpush1.msra.mxu0 0.0
        %815 = vmatprep.subr.mxu0 0.0
        %816 = vmatpush1.msra.mxu0 0.0
        %817 = vmatprep.mubr.f32.mxu0 0.0
        %818 = vmatmul.mubr.f32.gmra.mrb[0].mxu0 %v609
        %v819 = vpop.f32.mrb[0].mxu0
        %v820 = vadd.f32 0.0, %v819
        %v821 = vpop.f32.mrb[0].mxu0
        %v822 = vadd.f32 0.0, %v821
        %823 = vmatprep.mubr.f32.mxu0 0.0
        %824 = vmatmul.mubr.f32.gmra.mrb[0].mxu0 %v612
        %v825 = vpop.f32.mrb[0].mxu0
        %v826 = vadd.f32 0.0, %v825
        %v827 = vpop.f32.mrb[0].mxu0
        %v828 = vadd.f32 0.0, %v827
        %829 = vmatprep.mubr.f32.mxu0 0.0
        %830 = vmatmul.mubr.f32.gmra.mrb[0].mxu0 %v615
        %v831 = vpop.f32.mrb[0].mxu0
        %v832 = vadd.f32 0.0, %v831
        %v833 = vpop.f32.mrb[0].mxu0
        %v834 = vadd.f32 0.0, %v833
        %835 = vmatprep.mubr.f32.mxu0 0.0
        %836 = vmatmul.mubr.f32.gmra.mrb[0].mxu0 %v618
        %v837 = vpop.f32.mrb[0].mxu0
        %v838 = vadd.f32 0.0, %v837
        %v839 = vpop.f32.mrb[0].mxu0
        %v840 = vadd.f32 0.0, %v839
        %841 = vmatprep.mubr.f32.mxu0 0.0
        %842 = vmatmul.mubr.f32.gmra.mrb[0].mxu0 %v621
        %v843 = vpop.f32.mrb[0].mxu0
        %v844 = vadd.f32 0.0, %v843
        %v845 = vpop.f32.mrb[0].mxu0
        %v846 = vadd.f32 0.0, %v845
        %847 = vmatprep.mubr.f32.mxu0 0.0
        %848 = vmatmul.mubr.f32.gmra.mrb[0].mxu0 %v624
        %v849 = vpop.f32.mrb[0].mxu0
        %v850 = vadd.f32 0.0, %v849
        %v851 = vpop.f32.mrb[0].mxu0
        %v852 = vadd.f32 0.0, %v851
        %853 = vmatprep.mubr.f32.mxu0 0.0
        %854 = vmatmul.mubr.f32.gmra.mrb[0].mxu0 %v627
        %v855 = vpop.f32.mrb[0].mxu0
        %v856 = vadd.f32 0.0, %v855
        %v857 = vpop.f32.mrb[0].mxu0
        %v858 = vadd.f32 0.0, %v857
        %859 = vmatprep.mubr.f32.mxu0 0.0
        %860 = vmatmul.mubr.f32.gmra.mrb[0].mxu0 %v630
        %v861 = vpop.f32.mrb[0].mxu0
        %v862 = vadd.f32 0.0, %v861
        %v863 = vpop.f32.mrb[0].mxu0
        %v864 = vadd.f32 0.0, %v863
        %865 = vdwg.mxu0
        %v866 = vld [vmem:[%s3] sm:$0xff]
        %v867 = vld [vmem:[%s3 + $0x8] sm:$0xff]
        %v868 = vld [vmem:[%s3 + $0x10] sm:$0xff]
        %v869 = vld [vmem:[%s3 + $0x18] sm:$0xff]
        %v870 = vld [vmem:[%s3 + $0x20] sm:$0xff]
        %v871 = vld [vmem:[%s3 + $0x28] sm:$0xff]
        %v872 = vld [vmem:[%s3 + $0x30] sm:$0xff]
        %v873 = vld [vmem:[%s3 + $0x38] sm:$0xff]
        %v874 = vld [vmem:[%s3 + $0x40] sm:$0xff]
        %v875 = vld [vmem:[%s3 + $0x48] sm:$0xff]
        %v876 = vld [vmem:[%s3 + $0x50] sm:$0xff]
        %v877 = vld [vmem:[%s3 + $0x58] sm:$0xff]
        %v878 = vld [vmem:[%s3 + $0x60] sm:$0xff]
        %v879 = vld [vmem:[%s3 + $0x68] sm:$0xff]
        %v880 = vld [vmem:[%s3 + $0x70] sm:$0xff]
        %v881 = vld [vmem:[%s3 + $0x78] sm:$0xff]
        %v882 = vld [vmem:[%s4] sm:$0x1]
        %v884 = vlaneseq
        %v885 = vshrl.u32 %v884, 7
        %v886 = vsub.s32 0, %v885
        %v887 = vrot.slane %v882, %v886
        %v889 = vadd.f32 %v699, %v862
        %v890 = vadd.f32 %v701, %v864
        %vm891 = vcmask 523264
        %v893 = vsel %vm891, 0.0, 0
        %895 = vmatprep.subr.mxu0 %v867
        %896 = vmatpush1.msra.mxu0 %v866
        %897 = vmatprep.subr.mxu0 %v869
        %898 = vmatpush1.msra.mxu0 %v868
        %899 = vmatprep.subr.mxu0 %v871
        %900 = vmatpush1.msra.mxu0 %v870
        %901 = vmatprep.subr.mxu0 %v873
        %902 = vmatpush1.msra.mxu0 %v872
        %903 = vmatprep.subr.mxu0 %v875
        %904 = vmatpush1.msra.mxu0 %v874
        %905 = vmatprep.subr.mxu0 %v877
        %906 = vmatpush1.msra.mxu0 %v876
        %907 = vmatprep.subr.mxu0 %v879
        %908 = vmatpush1.msra.mxu0 %v878
        %909 = vmatprep.subr.mxu0 %v881
        %910 = vmatpush1.msra.mxu0 %v880
        %911 = vmatprep.subr.mxu0 0.0
        %912 = vmatpush1.msra.mxu0 0.0
        %913 = vmatprep.subr.mxu0 0.0
        %914 = vmatpush1.msra.mxu0 0.0
        %915 = vmatprep.subr.mxu0 0.0
        %916 = vmatpush1.msra.mxu0 0.0
        %917 = vmatprep.subr.mxu0 0.0
        %918 = vmatpush1.msra.mxu0 0.0
        %919 = vmatprep.subr.mxu0 0.0
        %920 = vmatpush1.msra.mxu0 0.0
        %921 = vmatprep.subr.mxu0 0.0
        %922 = vmatpush1.msra.mxu0 0.0
        %923 = vmatprep.subr.mxu0 0.0
        %924 = vmatpush1.msra.mxu0 0.0
        %925 = vmatprep.subr.mxu0 0.0
        %926 = vmatpush1.msra.mxu0 0.0
        %927 = vmatprep.subr.mxu0 0.0
        %928 = vmatpush1.msra.mxu0 0.0
        %929 = vmatprep.subr.mxu0 0.0
        %930 = vmatpush1.msra.mxu0 0.0
        %931 = vmatprep.subr.mxu0 0.0
        %932 = vmatpush1.msra.mxu0 0.0
        %933 = vmatprep.subr.mxu0 0.0
        %934 = vmatpush1.msra.mxu0 0.0
        %935 = vmatprep.subr.mxu0 0.0
        %936 = vmatpush1.msra.mxu0 0.0
        %937 = vmatprep.subr.mxu0 0.0
        %938 = vmatpush1.msra.mxu0 0.0
        %939 = vmatprep.subr.mxu0 0.0
        %940 = vmatpush1.msra.mxu0 0.0
        %941 = vmatprep.subr.mxu0 0.0
        %942 = vmatpush1.msra.mxu0 0.0
        %943 = vmatprep.subr.mxu0 0.0
        %944 = vmatpush1.msra.mxu0 0.0
        %945 = vmatprep.subr.mxu0 0.0
        %946 = vmatpush1.msra.mxu0 0.0
        %947 = vmatprep.subr.mxu0 0.0
        %948 = vmatpush1.msra.mxu0 0.0
        %949 = vmatprep.subr.mxu0 0.0
        %950 = vmatpush1.msra.mxu0 0.0
        %951 = vmatprep.subr.mxu0 0.0
        %952 = vmatpush1.msra.mxu0 0.0
        %953 = vmatprep.subr.mxu0 0.0
        %954 = vmatpush1.msra.mxu0 0.0
        %955 = vmatprep.subr.mxu0 0.0
        %956 = vmatpush1.msra.mxu0 0.0
        %957 = vmatprep.subr.mxu0 0.0
        %958 = vmatpush1.msra.mxu0 0.0
        %959 = vmatprep.mubr.f32.mxu0 0.0
        %960 = vmatmul.mubr.f32.gmra.mrb[0].mxu0 %v893
        %v961 = vpop.f32.mrb[0].mxu0
        %v962 = vadd.f32 0.0, %v961
        %v963 = vpop.f32.mrb[0].mxu0
        %v964 = vadd.f32 0.0, %v963
        %965 = vdwg.mxu0
        %v966 = vadd.f32 %v889, %v962
        %v967 = vxor.u32 %v966, 2147483648
        %v968 = vmul.f32 %v967, 1.442695
        %v969 = vpow.pop %v968
        %v970 = vadd.f32 %v969, 1.0
        %v971 = vrcp.pop %v970
        %v972 = vmul.f32 1.0, %v971
        %v973 = vadd.f32 %v964, %v887
        %v974 = vmul.f32 %v972, %v973
        %v975 = vadd.f32 %v890, %v974
        %v976 = vtanh.pop %v975
        %v977 = vsub.f32 1.0, %v972
        %979 = vrot.lane.b32.xlu0 %v976, 64
        %v980 = vpop.permute.xlu0 %979
        %v982 = vmul.f32 %v977, %v980
        %v983 = vmul.f32 %v972, 0.0
        %v984 = vadd.f32 %v982, %v983
        %v985 = vadd.f32 %v705, %v856
        %v986 = vadd.f32 %v707, %v858
        %988 = vrot.lane.b32.xlu0 %v984, 64
        %v989 = vpop.permute.xlu0 %988
        %v990 = vsel %vm891, %v989, 0
        %992 = vmatprep.subr.mxu0 %v867
        %993 = vmatpush1.msra.mxu0 %v866
        %994 = vmatprep.subr.mxu0 %v869
        %995 = vmatpush1.msra.mxu0 %v868
        %996 = vmatprep.subr.mxu0 %v871
        %997 = vmatpush1.msra.mxu0 %v870
        %998 = vmatprep.subr.mxu0 %v873
        %999 = vmatpush1.msra.mxu0 %v872
        %1000 = vmatprep.subr.mxu0 %v875
        %1001 = vmatpush1.msra.mxu0 %v874
        %1002 = vmatprep.subr.mxu0 %v877
        %1003 = vmatpush1.msra.mxu0 %v876
        %1004 = vmatprep.subr.mxu0 %v879
        %1005 = vmatpush1.msra.mxu0 %v878
        %1006 = vmatprep.subr.mxu0 %v881
        %1007 = vmatpush1.msra.mxu0 %v880
        %1008 = vmatprep.subr.mxu0 0.0
        %1009 = vmatpush1.msra.mxu0 0.0
        %1010 = vmatprep.subr.mxu0 0.0
        %1011 = vmatpush1.msra.mxu0 0.0
        %1012 = vmatprep.subr.mxu0 0.0
        %1013 = vmatpush1.msra.mxu0 0.0
        %1014 = vmatprep.subr.mxu0 0.0
        %1015 = vmatpush1.msra.mxu0 0.0
        %1016 = vmatprep.subr.mxu0 0.0
        %1017 = vmatpush1.msra.mxu0 0.0
        %1018 = vmatprep.subr.mxu0 0.0
        %1019 = vmatpush1.msra.mxu0 0.0
        %1020 = vmatprep.subr.mxu0 0.0
        %1021 = vmatpush1.msra.mxu0 0.0
        %1022 = vmatprep.subr.mxu0 0.0
        %1023 = vmatpush1.msra.mxu0 0.0
        %1024 = vmatprep.subr.mxu0 0.0
        %1025 = vmatpush1.msra.mxu0 0.0
        %1026 = vmatprep.subr.mxu0 0.0
        %1027 = vmatpush1.msra.mxu0 0.0
        %1028 = vmatprep.subr.mxu0 0.0
        %1029 = vmatpush1.msra.mxu0 0.0
        %1030 = vmatprep.subr.mxu0 0.0
        %1031 = vmatpush1.msra.mxu0 0.0
        %1032 = vmatprep.subr.mxu0 0.0
        %1033 = vmatpush1.msra.mxu0 0.0
        %1034 = vmatprep.subr.mxu0 0.0
        %1035 = vmatpush1.msra.mxu0 0.0
        %1036 = vmatprep.subr.mxu0 0.0
        %1037 = vmatpush1.msra.mxu0 0.0
        %1038 = vmatprep.subr.mxu0 0.0
        %1039 = vmatpush1.msra.mxu0 0.0
        %1040 = vmatprep.subr.mxu0 0.0
        %1041 = vmatpush1.msra.mxu0 0.0
        %1042 = vmatprep.subr.mxu0 0.0
        %1043 = vmatpush1.msra.mxu0 0.0
        %1044 = vmatprep.subr.mxu0 0.0
        %1045 = vmatpush1.msra.mxu0 0.0
        %1046 = vmatprep.subr.mxu0 0.0
        %1047 = vmatpush1.msra.mxu0 0.0
        %1048 = vmatprep.subr.mxu0 0.0
        %1049 = vmatpush1.msra.mxu0 0.0
        %1050 = vmatprep.subr.mxu0 0.0
        %1051 = vmatpush1.msra.mxu0 0.0
        %1052 = vmatprep.subr.mxu0 0.0
        %1053 = vmatpush1.msra.mxu0 0.0
        %1054 = vmatprep.subr.mxu0 0.0
        %1055 = vmatpush1.msra.mxu0 0.0
        %1056 = vmatprep.mubr.f32.mxu0 0.0
        %1057 = vmatmul.mubr.f32.gmra.mrb[0].mxu0 %v990
        %v1058 = vpop.f32.mrb[0].mxu0
        %v1059 = vadd.f32 0.0, %v1058
        %v1060 = vpop.f32.mrb[0].mxu0
        %v1061 = vadd.f32 0.0, %v1060
        %1062 = vdwg.mxu0
        %v1063 = vadd.f32 %v985, %v1059
        %v1064 = vxor.u32 %v1063, 2147483648
        %v1065 = vmul.f32 %v1064, 1.442695
        %v1066 = vpow.pop %v1065
        %v1067 = vadd.f32 %v1066, 1.0
        %v1068 = vrcp.pop %v1067
        %v1069 = vmul.f32 1.0, %v1068
        %v1070 = vadd.f32 %v1061, %v887
        %v1071 = vmul.f32 %v1069, %v1070
        %v1072 = vadd.f32 %v986, %v1071
        %v1073 = vtanh.pop %v1072
        %v1074 = vsub.f32 1.0, %v1069
        %1076 = vrot.lane.b32.xlu0 %v1073, 64
        %v1077 = vpop.permute.xlu0 %1076
        %v1079 = vmul.f32 %v1074, %v1077
        %v1080 = vmul.f32 %v1069, %v984
        %v1081 = vadd.f32 %v1079, %v1080
        %v1082 = vadd.f32 %v711, %v850
        %v1083 = vadd.f32 %v713, %v852
        %1085 = vrot.lane.b32.xlu0 %v1081, 64
        %v1086 = vpop.permute.xlu0 %1085
        %v1087 = vsel %vm891, %v1086, 0
        %1089 = vmatprep.subr.mxu0 %v867
        %1090 = vmatpush1.msra.mxu0 %v866
        %1091 = vmatprep.subr.mxu0 %v869
        %1092 = vmatpush1.msra.mxu0 %v868
        %1093 = vmatprep.subr.mxu0 %v871
        %1094 = vmatpush1.msra.mxu0 %v870
        %1095 = vmatprep.subr.mxu0 %v873
        %1096 = vmatpush1.msra.mxu0 %v872
        %1097 = vmatprep.subr.mxu0 %v875
        %1098 = vmatpush1.msra.mxu0 %v874
        %1099 = vmatprep.subr.mxu0 %v877
        %1100 = vmatpush1.msra.mxu0 %v876
        %1101 = vmatprep.subr.mxu0 %v879
        %1102 = vmatpush1.msra.mxu0 %v878
        %1103 = vmatprep.subr.mxu0 %v881
        %1104 = vmatpush1.msra.mxu0 %v880
        %1105 = vmatprep.subr.mxu0 0.0
        %1106 = vmatpush1.msra.mxu0 0.0
        %1107 = vmatprep.subr.mxu0 0.0
        %1108 = vmatpush1.msra.mxu0 0.0
        %1109 = vmatprep.subr.mxu0 0.0
        %1110 = vmatpush1.msra.mxu0 0.0
        %1111 = vmatprep.subr.mxu0 0.0
        %1112 = vmatpush1.msra.mxu0 0.0
        %1113 = vmatprep.subr.mxu0 0.0
        %1114 = vmatpush1.msra.mxu0 0.0
        %1115 = vmatprep.subr.mxu0 0.0
        %1116 = vmatpush1.msra.mxu0 0.0
        %1117 = vmatprep.subr.mxu0 0.0
        %1118 = vmatpush1.msra.mxu0 0.0
        %1119 = vmatprep.subr.mxu0 0.0
        %1120 = vmatpush1.msra.mxu0 0.0
        %1121 = vmatprep.subr.mxu0 0.0
        %1122 = vmatpush1.msra.mxu0 0.0
        %1123 = vmatprep.subr.mxu0 0.0
        %1124 = vmatpush1.msra.mxu0 0.0
        %1125 = vmatprep.subr.mxu0 0.0
        %1126 = vmatpush1.msra.mxu0 0.0
        %1127 = vmatprep.subr.mxu0 0.0
        %1128 = vmatpush1.msra.mxu0 0.0
        %1129 = vmatprep.subr.mxu0 0.0
        %1130 = vmatpush1.msra.mxu0 0.0
        %1131 = vmatprep.subr.mxu0 0.0
        %1132 = vmatpush1.msra.mxu0 0.0
        %1133 = vmatprep.subr.mxu0 0.0
        %1134 = vmatpush1.msra.mxu0 0.0
        %1135 = vmatprep.subr.mxu0 0.0
        %1136 = vmatpush1.msra.mxu0 0.0
        %1137 = vmatprep.subr.mxu0 0.0
        %1138 = vmatpush1.msra.mxu0 0.0
        %1139 = vmatprep.subr.mxu0 0.0
        %1140 = vmatpush1.msra.mxu0 0.0
        %1141 = vmatprep.subr.mxu0 0.0
        %1142 = vmatpush1.msra.mxu0 0.0
        %1143 = vmatprep.subr.mxu0 0.0
        %1144 = vmatpush1.msra.mxu0 0.0
        %1145 = vmatprep.subr.mxu0 0.0
        %1146 = vmatpush1.msra.mxu0 0.0
        %1147 = vmatprep.subr.mxu0 0.0
        %1148 = vmatpush1.msra.mxu0 0.0
        %1149 = vmatprep.subr.mxu0 0.0
        %1150 = vmatpush1.msra.mxu0 0.0
        %1151 = vmatprep.subr.mxu0 0.0
        %1152 = vmatpush1.msra.mxu0 0.0
        %1153 = vmatprep.mubr.f32.mxu0 0.0
        %1154 = vmatmul.mubr.f32.gmra.mrb[0].mxu0 %v1087
        %v1155 = vpop.f32.mrb[0].mxu0
        %v1156 = vadd.f32 0.0, %v1155
        %v1157 = vpop.f32.mrb[0].mxu0
        %v1158 = vadd.f32 0.0, %v1157
        %1159 = vdwg.mxu0
        %v1160 = vadd.f32 %v1082, %v1156
        %v1161 = vxor.u32 %v1160, 2147483648
        %v1162 = vmul.f32 %v1161, 1.442695
        %v1163 = vpow.pop %v1162
        %v1164 = vadd.f32 %v1163, 1.0
        %v1165 = vrcp.pop %v1164
        %v1166 = vmul.f32 1.0, %v1165
        %v1167 = vadd.f32 %v1158, %v887
        %v1168 = vmul.f32 %v1166, %v1167
        %v1169 = vadd.f32 %v1083, %v1168
        %v1170 = vtanh.pop %v1169
        %v1171 = vsub.f32 1.0, %v1166
        %1173 = vrot.lane.b32.xlu0 %v1170, 64
        %v1174 = vpop.permute.xlu0 %1173
        %v1176 = vmul.f32 %v1171, %v1174
        %v1177 = vmul.f32 %v1166, %v1081
        %v1178 = vadd.f32 %v1176, %v1177
        %v1179 = vadd.f32 %v717, %v844
        %v1180 = vadd.f32 %v719, %v846
        %1182 = vrot.lane.b32.xlu0 %v1178, 64
        %v1183 = vpop.permute.xlu0 %1182
        %v1184 = vsel %vm891, %v1183, 0
        %1186 = vmatprep.subr.mxu0 %v867
        %1187 = vmatpush1.msra.mxu0 %v866
        %1188 = vmatprep.subr.mxu0 %v869
        %1189 = vmatpush1.msra.mxu0 %v868
        %1190 = vmatprep.subr.mxu0 %v871
        %1191 = vmatpush1.msra.mxu0 %v870
        %1192 = vmatprep.subr.mxu0 %v873
        %1193 = vmatpush1.msra.mxu0 %v872
        %1194 = vmatprep.subr.mxu0 %v875
        %1195 = vmatpush1.msra.mxu0 %v874
        %1196 = vmatprep.subr.mxu0 %v877
        %1197 = vmatpush1.msra.mxu0 %v876
        %1198 = vmatprep.subr.mxu0 %v879
        %1199 = vmatpush1.msra.mxu0 %v878
        %1200 = vmatprep.subr.mxu0 %v881
        %1201 = vmatpush1.msra.mxu0 %v880
        %1202 = vmatprep.subr.mxu0 0.0
        %1203 = vmatpush1.msra.mxu0 0.0
        %1204 = vmatprep.subr.mxu0 0.0
        %1205 = vmatpush1.msra.mxu0 0.0
        %1206 = vmatprep.subr.mxu0 0.0
        %1207 = vmatpush1.msra.mxu0 0.0
        %1208 = vmatprep.subr.mxu0 0.0
        %1209 = vmatpush1.msra.mxu0 0.0
        %1210 = vmatprep.subr.mxu0 0.0
        %1211 = vmatpush1.msra.mxu0 0.0
        %1212 = vmatprep.subr.mxu0 0.0
        %1213 = vmatpush1.msra.mxu0 0.0
        %1214 = vmatprep.subr.mxu0 0.0
        %1215 = vmatpush1.msra.mxu0 0.0
        %1216 = vmatprep.subr.mxu0 0.0
        %1217 = vmatpush1.msra.mxu0 0.0
        %1218 = vmatprep.subr.mxu0 0.0
        %1219 = vmatpush1.msra.mxu0 0.0
        %1220 = vmatprep.subr.mxu0 0.0
        %1221 = vmatpush1.msra.mxu0 0.0
        %1222 = vmatprep.subr.mxu0 0.0
        %1223 = vmatpush1.msra.mxu0 0.0
        %1224 = vmatprep.subr.mxu0 0.0
        %1225 = vmatpush1.msra.mxu0 0.0
        %1226 = vmatprep.subr.mxu0 0.0
        %1227 = vmatpush1.msra.mxu0 0.0
        %1228 = vmatprep.subr.mxu0 0.0
        %1229 = vmatpush1.msra.mxu0 0.0
        %1230 = vmatprep.subr.mxu0 0.0
        %1231 = vmatpush1.msra.mxu0 0.0
        %1232 = vmatprep.subr.mxu0 0.0
        %1233 = vmatpush1.msra.mxu0 0.0
        %1234 = vmatprep.subr.mxu0 0.0
        %1235 = vmatpush1.msra.mxu0 0.0
        %1236 = vmatprep.subr.mxu0 0.0
        %1237 = vmatpush1.msra.mxu0 0.0
        %1238 = vmatprep.subr.mxu0 0.0
        %1239 = vmatpush1.msra.mxu0 0.0
        %1240 = vmatprep.subr.mxu0 0.0
        %1241 = vmatpush1.msra.mxu0 0.0
        %1242 = vmatprep.subr.mxu0 0.0
        %1243 = vmatpush1.msra.mxu0 0.0
        %1244 = vmatprep.subr.mxu0 0.0
        %1245 = vmatpush1.msra.mxu0 0.0
        %1246 = vmatprep.subr.mxu0 0.0
        %1247 = vmatpush1.msra.mxu0 0.0
        %1248 = vmatprep.subr.mxu0 0.0
        %1249 = vmatpush1.msra.mxu0 0.0
        %1250 = vmatprep.mubr.f32.mxu0 0.0
        %1251 = vmatmul.mubr.f32.gmra.mrb[0].mxu0 %v1184
        %v1252 = vpop.f32.mrb[0].mxu0
        %v1253 = vadd.f32 0.0, %v1252
        %v1254 = vpop.f32.mrb[0].mxu0
        %v1255 = vadd.f32 0.0, %v1254
        %1256 = vdwg.mxu0
        %v1257 = vadd.f32 %v1179, %v1253
        %v1258 = vxor.u32 %v1257, 2147483648
        %v1259 = vmul.f32 %v1258, 1.442695
        %v1260 = vpow.pop %v1259
        %v1261 = vadd.f32 %v1260, 1.0
        %v1262 = vrcp.pop %v1261
        %v1263 = vmul.f32 1.0, %v1262
        %v1264 = vadd.f32 %v1255, %v887
        %v1265 = vmul.f32 %v1263, %v1264
        %v1266 = vadd.f32 %v1180, %v1265
        %v1267 = vtanh.pop %v1266
        %v1268 = vsub.f32 1.0, %v1263
        %1270 = vrot.lane.b32.xlu0 %v1267, 64
        %v1271 = vpop.permute.xlu0 %1270
        %v1273 = vmul.f32 %v1268, %v1271
        %v1274 = vmul.f32 %v1263, %v1178
        %v1275 = vadd.f32 %v1273, %v1274
        %v1276 = vadd.f32 %v723, %v838
        %v1277 = vadd.f32 %v725, %v840
        %1279 = vrot.lane.b32.xlu0 %v1275, 64
        %v1280 = vpop.permute.xlu0 %1279
        %v1281 = vsel %vm891, %v1280, 0
        %1283 = vmatprep.subr.mxu0 %v867
        %1284 = vmatpush1.msra.mxu0 %v866
        %1285 = vmatprep.subr.mxu0 %v869
        %1286 = vmatpush1.msra.mxu0 %v868
        %1287 = vmatprep.subr.mxu0 %v871
        %1288 = vmatpush1.msra.mxu0 %v870
        %1289 = vmatprep.subr.mxu0 %v873
        %1290 = vmatpush1.msra.mxu0 %v872
        %1291 = vmatprep.subr.mxu0 %v875
        %1292 = vmatpush1.msra.mxu0 %v874
        %1293 = vmatprep.subr.mxu0 %v877
        %1294 = vmatpush1.msra.mxu0 %v876
        %1295 = vmatprep.subr.mxu0 %v879
        %1296 = vmatpush1.msra.mxu0 %v878
        %1297 = vmatprep.subr.mxu0 %v881
        %1298 = vmatpush1.msra.mxu0 %v880
        %1299 = vmatprep.subr.mxu0 0.0
        %1300 = vmatpush1.msra.mxu0 0.0
        %1301 = vmatprep.subr.mxu0 0.0
        %1302 = vmatpush1.msra.mxu0 0.0
        %1303 = vmatprep.subr.mxu0 0.0
        %1304 = vmatpush1.msra.mxu0 0.0
        %1305 = vmatprep.subr.mxu0 0.0
        %1306 = vmatpush1.msra.mxu0 0.0
        %1307 = vmatprep.subr.mxu0 0.0
        %1308 = vmatpush1.msra.mxu0 0.0
        %1309 = vmatprep.subr.mxu0 0.0
        %1310 = vmatpush1.msra.mxu0 0.0
        %1311 = vmatprep.subr.mxu0 0.0
        %1312 = vmatpush1.msra.mxu0 0.0
        %1313 = vmatprep.subr.mxu0 0.0
        %1314 = vmatpush1.msra.mxu0 0.0
        %1315 = vmatprep.subr.mxu0 0.0
        %1316 = vmatpush1.msra.mxu0 0.0
        %1317 = vmatprep.subr.mxu0 0.0
        %1318 = vmatpush1.msra.mxu0 0.0
        %1319 = vmatprep.subr.mxu0 0.0
        %1320 = vmatpush1.msra.mxu0 0.0
        %1321 = vmatprep.subr.mxu0 0.0
        %1322 = vmatpush1.msra.mxu0 0.0
        %1323 = vmatprep.subr.mxu0 0.0
        %1324 = vmatpush1.msra.mxu0 0.0
        %1325 = vmatprep.subr.mxu0 0.0
        %1326 = vmatpush1.msra.mxu0 0.0
        %1327 = vmatprep.subr.mxu0 0.0
        %1328 = vmatpush1.msra.mxu0 0.0
        %1329 = vmatprep.subr.mxu0 0.0
        %1330 = vmatpush1.msra.mxu0 0.0
        %1331 = vmatprep.subr.mxu0 0.0
        %1332 = vmatpush1.msra.mxu0 0.0
        %1333 = vmatprep.subr.mxu0 0.0
        %1334 = vmatpush1.msra.mxu0 0.0
        %1335 = vmatprep.subr.mxu0 0.0
        %1336 = vmatpush1.msra.mxu0 0.0
        %1337 = vmatprep.subr.mxu0 0.0
        %1338 = vmatpush1.msra.mxu0 0.0
        %1339 = vmatprep.subr.mxu0 0.0
        %1340 = vmatpush1.msra.mxu0 0.0
        %1341 = vmatprep.subr.mxu0 0.0
        %1342 = vmatpush1.msra.mxu0 0.0
        %1343 = vmatprep.subr.mxu0 0.0
        %1344 = vmatpush1.msra.mxu0 0.0
        %1345 = vmatprep.subr.mxu0 0.0
        %1346 = vmatpush1.msra.mxu0 0.0
        %1347 = vmatprep.mubr.f32.mxu0 0.0
        %1348 = vmatmul.mubr.f32.gmra.mrb[0].mxu0 %v1281
        %v1349 = vpop.f32.mrb[0].mxu0
        %v1350 = vadd.f32 0.0, %v1349
        %v1351 = vpop.f32.mrb[0].mxu0
        %v1352 = vadd.f32 0.0, %v1351
        %1353 = vdwg.mxu0
        %v1354 = vadd.f32 %v1276, %v1350
        %v1355 = vxor.u32 %v1354, 2147483648
        %v1356 = vmul.f32 %v1355, 1.442695
        %v1357 = vpow.pop %v1356
        %v1358 = vadd.f32 %v1357, 1.0
        %v1359 = vrcp.pop %v1358
        %v1360 = vmul.f32 1.0, %v1359
        %v1361 = vadd.f32 %v1352, %v887
        %v1362 = vmul.f32 %v1360, %v1361
        %v1363 = vadd.f32 %v1277, %v1362
        %v1364 = vtanh.pop %v1363
        %v1365 = vsub.f32 1.0, %v1360
        %1367 = vrot.lane.b32.xlu0 %v1364, 64
        %v1368 = vpop.permute.xlu0 %1367
        %v1370 = vmul.f32 %v1365, %v1368
        %v1371 = vmul.f32 %v1360, %v1275
        %v1372 = vadd.f32 %v1370, %v1371
        %v1373 = vadd.f32 %v729, %v832
        %v1374 = vadd.f32 %v731, %v834
        %1376 = vrot.lane.b32.xlu0 %v1372, 64
        %v1377 = vpop.permute.xlu0 %1376
        %v1378 = vsel %vm891, %v1377, 0
        %1380 = vmatprep.subr.mxu0 %v867
        %1381 = vmatpush1.msra.mxu0 %v866
        %1382 = vmatprep.subr.mxu0 %v869
        %1383 = vmatpush1.msra.mxu0 %v868
        %1384 = vmatprep.subr.mxu0 %v871
        %1385 = vmatpush1.msra.mxu0 %v870
        %1386 = vmatprep.subr.mxu0 %v873
        %1387 = vmatpush1.msra.mxu0 %v872
        %1388 = vmatprep.subr.mxu0 %v875
        %1389 = vmatpush1.msra.mxu0 %v874
        %1390 = vmatprep.subr.mxu0 %v877
        %1391 = vmatpush1.msra.mxu0 %v876
        %1392 = vmatprep.subr.mxu0 %v879
        %1393 = vmatpush1.msra.mxu0 %v878
        %1394 = vmatprep.subr.mxu0 %v881
        %1395 = vmatpush1.msra.mxu0 %v880
        %1396 = vmatprep.subr.mxu0 0.0
        %1397 = vmatpush1.msra.mxu0 0.0
        %1398 = vmatprep.subr.mxu0 0.0
        %1399 = vmatpush1.msra.mxu0 0.0
        %1400 = vmatprep.subr.mxu0 0.0
        %1401 = vmatpush1.msra.mxu0 0.0
        %1402 = vmatprep.subr.mxu0 0.0
        %1403 = vmatpush1.msra.mxu0 0.0
        %1404 = vmatprep.subr.mxu0 0.0
        %1405 = vmatpush1.msra.mxu0 0.0
        %1406 = vmatprep.subr.mxu0 0.0
        %1407 = vmatpush1.msra.mxu0 0.0
        %1408 = vmatprep.subr.mxu0 0.0
        %1409 = vmatpush1.msra.mxu0 0.0
        %1410 = vmatprep.subr.mxu0 0.0
        %1411 = vmatpush1.msra.mxu0 0.0
        %1412 = vmatprep.subr.mxu0 0.0
        %1413 = vmatpush1.msra.mxu0 0.0
        %1414 = vmatprep.subr.mxu0 0.0
        %1415 = vmatpush1.msra.mxu0 0.0
        %1416 = vmatprep.subr.mxu0 0.0
        %1417 = vmatpush1.msra.mxu0 0.0
        %1418 = vmatprep.subr.mxu0 0.0
        %1419 = vmatpush1.msra.mxu0 0.0
        %1420 = vmatprep.subr.mxu0 0.0
        %1421 = vmatpush1.msra.mxu0 0.0
        %1422 = vmatprep.subr.mxu0 0.0
        %1423 = vmatpush1.msra.mxu0 0.0
        %1424 = vmatprep.subr.mxu0 0.0
        %1425 = vmatpush1.msra.mxu0 0.0
        %1426 = vmatprep.subr.mxu0 0.0
        %1427 = vmatpush1.msra.mxu0 0.0
        %1428 = vmatprep.subr.mxu0 0.0
        %1429 = vmatpush1.msra.mxu0 0.0
        %1430 = vmatprep.subr.mxu0 0.0
        %1431 = vmatpush1.msra.mxu0 0.0
        %1432 = vmatprep.subr.mxu0 0.0
        %1433 = vmatpush1.msra.mxu0 0.0
        %1434 = vmatprep.subr.mxu0 0.0
        %1435 = vmatpush1.msra.mxu0 0.0
        %1436 = vmatprep.subr.mxu0 0.0
        %1437 = vmatpush1.msra.mxu0 0.0
        %1438 = vmatprep.subr.mxu0 0.0
        %1439 = vmatpush1.msra.mxu0 0.0
        %1440 = vmatprep.subr.mxu0 0.0
        %1441 = vmatpush1.msra.mxu0 0.0
        %1442 = vmatprep.subr.mxu0 0.0
        %1443 = vmatpush1.msra.mxu0 0.0
        %1444 = vmatprep.mubr.f32.mxu0 0.0
        %1445 = vmatmul.mubr.f32.gmra.mrb[0].mxu0 %v1378
        %v1446 = vpop.f32.mrb[0].mxu0
        %v1447 = vadd.f32 0.0, %v1446
        %v1448 = vpop.f32.mrb[0].mxu0
        %v1449 = vadd.f32 0.0, %v1448
        %1450 = vdwg.mxu0
        %v1451 = vadd.f32 %v1373, %v1447
        %v1452 = vxor.u32 %v1451, 2147483648
        %v1453 = vmul.f32 %v1452, 1.442695
        %v1454 = vpow.pop %v1453
        %v1455 = vadd.f32 %v1454, 1.0
        %v1456 = vrcp.pop %v1455
        %v1457 = vmul.f32 1.0, %v1456
        %v1458 = vadd.f32 %v1449, %v887
        %v1459 = vmul.f32 %v1457, %v1458
        %v1460 = vadd.f32 %v1374, %v1459
        %v1461 = vtanh.pop %v1460
        %v1462 = vsub.f32 1.0, %v1457
        %1464 = vrot.lane.b32.xlu0 %v1461, 64
        %v1465 = vpop.permute.xlu0 %1464
        %v1467 = vmul.f32 %v1462, %v1465
        %v1468 = vmul.f32 %v1457, %v1372
        %v1469 = vadd.f32 %v1467, %v1468
        %v1470 = vadd.f32 %v735, %v826
        %v1471 = vadd.f32 %v737, %v828
        %1473 = vrot.lane.b32.xlu0 %v1469, 64
        %v1474 = vpop.permute.xlu0 %1473
        %v1475 = vsel %vm891, %v1474, 0
        %1477 = vmatprep.subr.mxu0 %v867
        %1478 = vmatpush1.msra.mxu0 %v866
        %1479 = vmatprep.subr.mxu0 %v869
        %1480 = vmatpush1.msra.mxu0 %v868
        %1481 = vmatprep.subr.mxu0 %v871
        %1482 = vmatpush1.msra.mxu0 %v870
        %1483 = vmatprep.subr.mxu0 %v873
        %1484 = vmatpush1.msra.mxu0 %v872
        %1485 = vmatprep.subr.mxu0 %v875
        %1486 = vmatpush1.msra.mxu0 %v874
        %1487 = vmatprep.subr.mxu0 %v877
        %1488 = vmatpush1.msra.mxu0 %v876
        %1489 = vmatprep.subr.mxu0 %v879
        %1490 = vmatpush1.msra.mxu0 %v878
        %1491 = vmatprep.subr.mxu0 %v881
        %1492 = vmatpush1.msra.mxu0 %v880
        %1493 = vmatprep.subr.mxu0 0.0
        %1494 = vmatpush1.msra.mxu0 0.0
        %1495 = vmatprep.subr.mxu0 0.0
        %1496 = vmatpush1.msra.mxu0 0.0
        %1497 = vmatprep.subr.mxu0 0.0
        %1498 = vmatpush1.msra.mxu0 0.0
        %1499 = vmatprep.subr.mxu0 0.0
        %1500 = vmatpush1.msra.mxu0 0.0
        %1501 = vmatprep.subr.mxu0 0.0
        %1502 = vmatpush1.msra.mxu0 0.0
        %1503 = vmatprep.subr.mxu0 0.0
        %1504 = vmatpush1.msra.mxu0 0.0
        %1505 = vmatprep.subr.mxu0 0.0
        %1506 = vmatpush1.msra.mxu0 0.0
        %1507 = vmatprep.subr.mxu0 0.0
        %1508 = vmatpush1.msra.mxu0 0.0
        %1509 = vmatprep.subr.mxu0 0.0
        %1510 = vmatpush1.msra.mxu0 0.0
        %1511 = vmatprep.subr.mxu0 0.0
        %1512 = vmatpush1.msra.mxu0 0.0
        %1513 = vmatprep.subr.mxu0 0.0
        %1514 = vmatpush1.msra.mxu0 0.0
        %1515 = vmatprep.subr.mxu0 0.0
        %1516 = vmatpush1.msra.mxu0 0.0
        %1517 = vmatprep.subr.mxu0 0.0
        %1518 = vmatpush1.msra.mxu0 0.0
        %1519 = vmatprep.subr.mxu0 0.0
        %1520 = vmatpush1.msra.mxu0 0.0
        %1521 = vmatprep.subr.mxu0 0.0
        %1522 = vmatpush1.msra.mxu0 0.0
        %1523 = vmatprep.subr.mxu0 0.0
        %1524 = vmatpush1.msra.mxu0 0.0
        %1525 = vmatprep.subr.mxu0 0.0
        %1526 = vmatpush1.msra.mxu0 0.0
        %1527 = vmatprep.subr.mxu0 0.0
        %1528 = vmatpush1.msra.mxu0 0.0
        %1529 = vmatprep.subr.mxu0 0.0
        %1530 = vmatpush1.msra.mxu0 0.0
        %1531 = vmatprep.subr.mxu0 0.0
        %1532 = vmatpush1.msra.mxu0 0.0
        %1533 = vmatprep.subr.mxu0 0.0
        %1534 = vmatpush1.msra.mxu0 0.0
        %1535 = vmatprep.subr.mxu0 0.0
        %1536 = vmatpush1.msra.mxu0 0.0
        %1537 = vmatprep.subr.mxu0 0.0
        %1538 = vmatpush1.msra.mxu0 0.0
        %1539 = vmatprep.subr.mxu0 0.0
        %1540 = vmatpush1.msra.mxu0 0.0
        %1541 = vmatprep.mubr.f32.mxu0 0.0
        %1542 = vmatmul.mubr.f32.gmra.mrb[0].mxu0 %v1475
        %v1543 = vpop.f32.mrb[0].mxu0
        %v1544 = vadd.f32 0.0, %v1543
        %v1545 = vpop.f32.mrb[0].mxu0
        %v1546 = vadd.f32 0.0, %v1545
        %1547 = vdwg.mxu0
        %v1548 = vadd.f32 %v1470, %v1544
        %v1549 = vxor.u32 %v1548, 2147483648
        %v1550 = vmul.f32 %v1549, 1.442695
        %v1551 = vpow.pop %v1550
        %v1552 = vadd.f32 %v1551, 1.0
        %v1553 = vrcp.pop %v1552
        %v1554 = vmul.f32 1.0, %v1553
        %v1555 = vadd.f32 %v1546, %v887
        %v1556 = vmul.f32 %v1554, %v1555
        %v1557 = vadd.f32 %v1471, %v1556
        %v1558 = vtanh.pop %v1557
        %v1559 = vsub.f32 1.0, %v1554
        %1561 = vrot.lane.b32.xlu0 %v1558, 64
        %v1562 = vpop.permute.xlu0 %1561
        %v1564 = vmul.f32 %v1559, %v1562
        %v1565 = vmul.f32 %v1554, %v1469
        %v1566 = vadd.f32 %v1564, %v1565
        %v1567 = vadd.f32 %v741, %v820
        %v1568 = vadd.f32 %v743, %v822
        %1570 = vrot.lane.b32.xlu0 %v1566, 64
        %v1571 = vpop.permute.xlu0 %1570
        %v1572 = vsel %vm891, %v1571, 0
        %1574 = vmatprep.subr.mxu0 %v867
        %1575 = vmatpush1.msra.mxu0 %v866
        %1576 = vmatprep.subr.mxu0 %v869
        %1577 = vmatpush1.msra.mxu0 %v868
        %1578 = vmatprep.subr.mxu0 %v871
        %1579 = vmatpush1.msra.mxu0 %v870
        %1580 = vmatprep.subr.mxu0 %v873
        %1581 = vmatpush1.msra.mxu0 %v872
        %1582 = vmatprep.subr.mxu0 %v875
        %1583 = vmatpush1.msra.mxu0 %v874
        %1584 = vmatprep.subr.mxu0 %v877
        %1585 = vmatpush1.msra.mxu0 %v876
        %1586 = vmatprep.subr.mxu0 %v879
        %1587 = vmatpush1.msra.mxu0 %v878
        %1588 = vmatprep.subr.mxu0 %v881
        %1589 = vmatpush1.msra.mxu0 %v880
        %1590 = vmatprep.subr.mxu0 0.0
        %1591 = vmatpush1.msra.mxu0 0.0
        %1592 = vmatprep.subr.mxu0 0.0
        %1593 = vmatpush1.msra.mxu0 0.0
        %1594 = vmatprep.subr.mxu0 0.0
        %1595 = vmatpush1.msra.mxu0 0.0
        %1596 = vmatprep.subr.mxu0 0.0
        %1597 = vmatpush1.msra.mxu0 0.0
        %1598 = vmatprep.subr.mxu0 0.0
        %1599 = vmatpush1.msra.mxu0 0.0
        %1600 = vmatprep.subr.mxu0 0.0
        %1601 = vmatpush1.msra.mxu0 0.0
        %1602 = vmatprep.subr.mxu0 0.0
        %1603 = vmatpush1.msra.mxu0 0.0
        %1604 = vmatprep.subr.mxu0 0.0
        %1605 = vmatpush1.msra.mxu0 0.0
        %1606 = vmatprep.subr.mxu0 0.0
        %1607 = vmatpush1.msra.mxu0 0.0
        %1608 = vmatprep.subr.mxu0 0.0
        %1609 = vmatpush1.msra.mxu0 0.0
        %1610 = vmatprep.subr.mxu0 0.0
        %1611 = vmatpush1.msra.mxu0 0.0
        %1612 = vmatprep.subr.mxu0 0.0
        %1613 = vmatpush1.msra.mxu0 0.0
        %1614 = vmatprep.subr.mxu0 0.0
        %1615 = vmatpush1.msra.mxu0 0.0
        %1616 = vmatprep.subr.mxu0 0.0
        %1617 = vmatpush1.msra.mxu0 0.0
        %1618 = vmatprep.subr.mxu0 0.0
        %1619 = vmatpush1.msra.mxu0 0.0
        %1620 = vmatprep.subr.mxu0 0.0
        %1621 = vmatpush1.msra.mxu0 0.0
        %1622 = vmatprep.subr.mxu0 0.0
        %1623 = vmatpush1.msra.mxu0 0.0
        %1624 = vmatprep.subr.mxu0 0.0
        %1625 = vmatpush1.msra.mxu0 0.0
        %1626 = vmatprep.subr.mxu0 0.0
        %1627 = vmatpush1.msra.mxu0 0.0
        %1628 = vmatprep.subr.mxu0 0.0
        %1629 = vmatpush1.msra.mxu0 0.0
        %1630 = vmatprep.subr.mxu0 0.0
        %1631 = vmatpush1.msra.mxu0 0.0
        %1632 = vmatprep.subr.mxu0 0.0
        %1633 = vmatpush1.msra.mxu0 0.0
        %1634 = vmatprep.subr.mxu0 0.0
        %1635 = vmatpush1.msra.mxu0 0.0
        %1636 = vmatprep.subr.mxu0 0.0
        %1637 = vmatpush1.msra.mxu0 0.0
        %1638 = vmatprep.mubr.f32.mxu0 0.0
        %1639 = vmatmul.mubr.f32.gmra.mrb[0].mxu0 %v1572
        %v1640 = vpop.f32.mrb[0].mxu0
        %v1641 = vadd.f32 0.0, %v1640
        %v1642 = vpop.f32.mrb[0].mxu0
        %v1643 = vadd.f32 0.0, %v1642
        %1644 = vdwg.mxu0
        %v1645 = vadd.f32 %v1567, %v1641
        %v1646 = vxor.u32 %v1645, 2147483648
        %v1647 = vmul.f32 %v1646, 1.442695
        %v1648 = vpow.pop %v1647
        %v1649 = vadd.f32 %v1648, 1.0
        %v1650 = vrcp.pop %v1649
        %v1651 = vmul.f32 1.0, %v1650
        %v1652 = vadd.f32 %v1643, %v887
        %v1653 = vmul.f32 %v1651, %v1652
        %v1654 = vadd.f32 %v1568, %v1653
        %v1655 = vtanh.pop %v1654
        %v1656 = vsub.f32 1.0, %v1651
        %1658 = vrot.lane.b32.xlu0 %v1655, 64
        %v1659 = vpop.permute.xlu0 %1658
        %v1661 = vmul.f32 %v1656, %v1659
        %v1662 = vmul.f32 %v1651, %v1566
        %v1663 = vadd.f32 %v1661, %v1662
        %1665 = vrot.lane.b32.xlu0 %v1663, 96
        %v1666 = vpop.permute.xlu0 %1665
        %v1668 = vadd.f32 %v1663, %v1666
        %v1669 = vld [vmem:[%s5] sm:$0xff]
        %v1670 = vld [vmem:[%s5 + $0x8] sm:$0xff]
        %v1671 = vld [vmem:[%s5 + $0x10] sm:$0xff]
        %v1672 = vld [vmem:[%s5 + $0x18] sm:$0xff]
        %v1673 = vld [vmem:[%s5 + $0x20] sm:$0xff]
        %v1674 = vld [vmem:[%s5 + $0x28] sm:$0xff]
        %v1675 = vld [vmem:[%s5 + $0x30] sm:$0xff]
        %v1676 = vld [vmem:[%s5 + $0x38] sm:$0xff]
        %v1677 = vld [vmem:[%s6] sm:$0x3]
        %v1679 = vlaneseq
        %v1680 = vshrl.u32 %v1679, 7
        %v1681 = vsub.s32 0, %v1680
        %v1682 = vrot.slane %v1677, %v1681
        %v1683 = vlaneseq
        %v1684 = vshrl.u32 %v1683, 7
        %v1685 = vsub.s32 1, %v1684
        %v1686 = vrot.slane %v1677, %v1685
        %1690 = vrot.lane.b32.xlu0 %v1668, 64
        %v1691 = vpop.permute.xlu0 %1690
        %v1692 = vsel %vm607, %v1691, 0
        %1694 = vmatprep.subr.mxu0 %v1670
        %1695 = vmatpush1.msra.mxu0 %v1669
        %1696 = vmatprep.subr.mxu0 %v1672
        %1697 = vmatpush1.msra.mxu0 %v1671
        %1698 = vmatprep.subr.mxu0 %v1674
        %1699 = vmatpush1.msra.mxu0 %v1673
        %1700 = vmatprep.subr.mxu0 %v1676
        %1701 = vmatpush1.msra.mxu0 %v1675
        %1702 = vmatprep.subr.mxu0 0.0
        %1703 = vmatpush1.msra.mxu0 0.0
        %1704 = vmatprep.subr.mxu0 0.0
        %1705 = vmatpush1.msra.mxu0 0.0
        %1706 = vmatprep.subr.mxu0 0.0
        %1707 = vmatpush1.msra.mxu0 0.0
        %1708 = vmatprep.subr.mxu0 0.0
        %1709 = vmatpush1.msra.mxu0 0.0
        %1710 = vmatprep.subr.mxu0 0.0
        %1711 = vmatpush1.msra.mxu0 0.0
        %1712 = vmatprep.subr.mxu0 0.0
        %1713 = vmatpush1.msra.mxu0 0.0
        %1714 = vmatprep.subr.mxu0 0.0
        %1715 = vmatpush1.msra.mxu0 0.0
        %1716 = vmatprep.subr.mxu0 0.0
        %1717 = vmatpush1.msra.mxu0 0.0
        %1718 = vmatprep.subr.mxu0 0.0
        %1719 = vmatpush1.msra.mxu0 0.0
        %1720 = vmatprep.subr.mxu0 0.0
        %1721 = vmatpush1.msra.mxu0 0.0
        %1722 = vmatprep.subr.mxu0 0.0
        %1723 = vmatpush1.msra.mxu0 0.0
        %1724 = vmatprep.subr.mxu0 0.0
        %1725 = vmatpush1.msra.mxu0 0.0
        %1726 = vmatprep.subr.mxu0 0.0
        %1727 = vmatpush1.msra.mxu0 0.0
        %1728 = vmatprep.subr.mxu0 0.0
        %1729 = vmatpush1.msra.mxu0 0.0
        %1730 = vmatprep.subr.mxu0 0.0
        %1731 = vmatpush1.msra.mxu0 0.0
        %1732 = vmatprep.subr.mxu0 0.0
        %1733 = vmatpush1.msra.mxu0 0.0
        %1734 = vmatprep.subr.mxu0 0.0
        %1735 = vmatpush1.msra.mxu0 0.0
        %1736 = vmatprep.subr.mxu0 0.0
        %1737 = vmatpush1.msra.mxu0 0.0
        %1738 = vmatprep.subr.mxu0 0.0
        %1739 = vmatpush1.msra.mxu0 0.0
        %1740 = vmatprep.subr.mxu0 0.0
        %1741 = vmatpush1.msra.mxu0 0.0
        %1742 = vmatprep.subr.mxu0 0.0
        %1743 = vmatpush1.msra.mxu0 0.0
        %1744 = vmatprep.subr.mxu0 0.0
        %1745 = vmatpush1.msra.mxu0 0.0
        %1746 = vmatprep.subr.mxu0 0.0
        %1747 = vmatpush1.msra.mxu0 0.0
        %1748 = vmatprep.subr.mxu0 0.0
        %1749 = vmatpush1.msra.mxu0 0.0
        %1750 = vmatprep.subr.mxu0 0.0
        %1751 = vmatpush1.msra.mxu0 0.0
        %1752 = vmatprep.subr.mxu0 0.0
        %1753 = vmatpush1.msra.mxu0 0.0
        %1754 = vmatprep.subr.mxu0 0.0
        %1755 = vmatpush1.msra.mxu0 0.0
        %1756 = vmatprep.subr.mxu0 0.0
        %1757 = vmatpush1.msra.mxu0 0.0
        %1758 = vmatprep.mubr.f32.mxu0 0.0
        %1759 = vmatmul.mubr.f32.gmra.mrb[0].mxu0 %v1692
        %v1760 = vpop.f32.mrb[0].mxu0
        %v1761 = vadd.f32 %v1682, %v1760
        %v1762 = vpop.f32.mrb[0].mxu0
        %v1763 = vadd.f32 %v1686, %v1762
        %1764 = vdwg.mxu0
        %v1765 = vld [vmem:[%s5 + $0x40] sm:$0xff]
        %v1766 = vld [vmem:[%s5 + $0x48] sm:$0xff]
        %v1767 = vld [vmem:[%s5 + $0x50] sm:$0xff]
        %v1768 = vld [vmem:[%s5 + $0x58] sm:$0xff]
        %v1769 = vld [vmem:[%s5 + $0x60] sm:$0xff]
        %v1770 = vld [vmem:[%s5 + $0x68] sm:$0xff]
        %v1771 = vld [vmem:[%s5 + $0x70] sm:$0xff]
        %v1772 = vld [vmem:[%s5 + $0x78] sm:$0xff]
        %1773 = vmatprep.subr.mxu0 %v1766
        %1774 = vmatpush1.msra.mxu0 %v1765
        %1775 = vmatprep.subr.mxu0 %v1768
        %1776 = vmatpush1.msra.mxu0 %v1767
        %1777 = vmatprep.subr.mxu0 %v1770
        %1778 = vmatpush1.msra.mxu0 %v1769
        %1779 = vmatprep.subr.mxu0 %v1772
        %1780 = vmatpush1.msra.mxu0 %v1771
        %1781 = vmatprep.subr.mxu0 0.0
        %1782 = vmatpush1.msra.mxu0 0.0
        %1783 = vmatprep.subr.mxu0 0.0
        %1784 = vmatpush1.msra.mxu0 0.0
        %1785 = vmatprep.subr.mxu0 0.0
        %1786 = vmatpush1.msra.mxu0 0.0
        %1787 = vmatprep.subr.mxu0 0.0
        %1788 = vmatpush1.msra.mxu0 0.0
        %1789 = vmatprep.subr.mxu0 0.0
        %1790 = vmatpush1.msra.mxu0 0.0
        %1791 = vmatprep.subr.mxu0 0.0
        %1792 = vmatpush1.msra.mxu0 0.0
        %1793 = vmatprep.subr.mxu0 0.0
        %1794 = vmatpush1.msra.mxu0 0.0
        %1795 = vmatprep.subr.mxu0 0.0
        %1796 = vmatpush1.msra.mxu0 0.0
        %1797 = vmatprep.subr.mxu0 0.0
        %1798 = vmatpush1.msra.mxu0 0.0
        %1799 = vmatprep.subr.mxu0 0.0
        %1800 = vmatpush1.msra.mxu0 0.0
        %1801 = vmatprep.subr.mxu0 0.0
        %1802 = vmatpush1.msra.mxu0 0.0
        %1803 = vmatprep.subr.mxu0 0.0
        %1804 = vmatpush1.msra.mxu0 0.0
        %1805 = vmatprep.subr.mxu0 0.0
        %1806 = vmatpush1.msra.mxu0 0.0
        %1807 = vmatprep.subr.mxu0 0.0
        %1808 = vmatpush1.msra.mxu0 0.0
        %1809 = vmatprep.subr.mxu0 0.0
        %1810 = vmatpush1.msra.mxu0 0.0
        %1811 = vmatprep.subr.mxu0 0.0
        %1812 = vmatpush1.msra.mxu0 0.0
        %1813 = vmatprep.subr.mxu0 0.0
        %1814 = vmatpush1.msra.mxu0 0.0
        %1815 = vmatprep.subr.mxu0 0.0
        %1816 = vmatpush1.msra.mxu0 0.0
        %1817 = vmatprep.subr.mxu0 0.0
        %1818 = vmatpush1.msra.mxu0 0.0
        %1819 = vmatprep.subr.mxu0 0.0
        %1820 = vmatpush1.msra.mxu0 0.0
        %1821 = vmatprep.subr.mxu0 0.0
        %1822 = vmatpush1.msra.mxu0 0.0
        %1823 = vmatprep.subr.mxu0 0.0
        %1824 = vmatpush1.msra.mxu0 0.0
        %1825 = vmatprep.subr.mxu0 0.0
        %1826 = vmatpush1.msra.mxu0 0.0
        %1827 = vmatprep.subr.mxu0 0.0
        %1828 = vmatpush1.msra.mxu0 0.0
        %1829 = vmatprep.subr.mxu0 0.0
        %1830 = vmatpush1.msra.mxu0 0.0
        %1831 = vmatprep.subr.mxu0 0.0
        %1832 = vmatpush1.msra.mxu0 0.0
        %1833 = vmatprep.subr.mxu0 0.0
        %1834 = vmatpush1.msra.mxu0 0.0
        %1835 = vmatprep.subr.mxu0 0.0
        %1836 = vmatpush1.msra.mxu0 0.0
        %1837 = vmatprep.mubr.f32.mxu0 0.0
        %1838 = vmatmul.mubr.f32.gmra.mrb[0].mxu0 %v1692
        %v1839 = vpop.f32.mrb[0].mxu0
        %v1840 = vadd.f32 0.0, %v1839
        %v1841 = vpop.f32.mrb[0].mxu0
        %v1842 = vadd.f32 0.0, %v1841
        %1843 = vdwg.mxu0
        %v1844 = vld [vmem:[%s7] sm:$0xff]
        %v1845 = vld [vmem:[%s7 + $0x8] sm:$0xff]
        %v1846 = vld [vmem:[%s7 + $0x10] sm:$0xff]
        %v1847 = vld [vmem:[%s7 + $0x18] sm:$0xff]
        %v1848 = vld [vmem:[%s7 + $0x20] sm:$0xff]
        %v1849 = vld [vmem:[%s7 + $0x28] sm:$0xff]
        %v1850 = vld [vmem:[%s7 + $0x30] sm:$0xff]
        %v1851 = vld [vmem:[%s7 + $0x38] sm:$0xff]
        %v1852 = vld [vmem:[%s7 + $0x40] sm:$0xff]
        %v1853 = vld [vmem:[%s7 + $0x48] sm:$0xff]
        %v1854 = vld [vmem:[%s7 + $0x50] sm:$0xff]
        %v1855 = vld [vmem:[%s7 + $0x58] sm:$0xff]
        %v1856 = vld [vmem:[%s7 + $0x60] sm:$0xff]
        %v1857 = vld [vmem:[%s7 + $0x68] sm:$0xff]
        %v1858 = vld [vmem:[%s7 + $0x70] sm:$0xff]
        %v1859 = vld [vmem:[%s7 + $0x78] sm:$0xff]
        %v1860 = vld [vmem:[%s8] sm:$0x1]
        %v1863 = vrot.slane %v1840, 7
        %v1864 = vrot.slane %v1842, 7
        %v1867 = vadd.f32 %v1761, %v1863
        %v1868 = vadd.f32 %v1763, %v1864
        %1869 = vmatprep.subr.mxu0 %v1845
        %1870 = vmatpush1.msra.mxu0 %v1844
        %1871 = vmatprep.subr.mxu0 %v1847
        %1872 = vmatpush1.msra.mxu0 %v1846
        %1873 = vmatprep.subr.mxu0 %v1849
        %1874 = vmatpush1.msra.mxu0 %v1848
        %1875 = vmatprep.subr.mxu0 %v1851
        %1876 = vmatpush1.msra.mxu0 %v1850
        %1877 = vmatprep.subr.mxu0 %v1853
        %1878 = vmatpush1.msra.mxu0 %v1852
        %1879 = vmatprep.subr.mxu0 %v1855
        %1880 = vmatpush1.msra.mxu0 %v1854
        %1881 = vmatprep.subr.mxu0 %v1857
        %1882 = vmatpush1.msra.mxu0 %v1856
        %1883 = vmatprep.subr.mxu0 %v1859
        %1884 = vmatpush1.msra.mxu0 %v1858
        %1885 = vmatprep.subr.mxu0 0.0
        %1886 = vmatpush1.msra.mxu0 0.0
        %1887 = vmatprep.subr.mxu0 0.0
        %1888 = vmatpush1.msra.mxu0 0.0
        %1889 = vmatprep.subr.mxu0 0.0
        %1890 = vmatpush1.msra.mxu0 0.0
        %1891 = vmatprep.subr.mxu0 0.0
        %1892 = vmatpush1.msra.mxu0 0.0
        %1893 = vmatprep.subr.mxu0 0.0
        %1894 = vmatpush1.msra.mxu0 0.0
        %1895 = vmatprep.subr.mxu0 0.0
        %1896 = vmatpush1.msra.mxu0 0.0
        %1897 = vmatprep.subr.mxu0 0.0
        %1898 = vmatpush1.msra.mxu0 0.0
        %1899 = vmatprep.subr.mxu0 0.0
        %1900 = vmatpush1.msra.mxu0 0.0
        %1901 = vmatprep.subr.mxu0 0.0
        %1902 = vmatpush1.msra.mxu0 0.0
        %1903 = vmatprep.subr.mxu0 0.0
        %1904 = vmatpush1.msra.mxu0 0.0
        %1905 = vmatprep.subr.mxu0 0.0
        %1906 = vmatpush1.msra.mxu0 0.0
        %1907 = vmatprep.subr.mxu0 0.0
        %1908 = vmatpush1.msra.mxu0 0.0
        %1909 = vmatprep.subr.mxu0 0.0
        %1910 = vmatpush1.msra.mxu0 0.0
        %1911 = vmatprep.subr.mxu0 0.0
        %1912 = vmatpush1.msra.mxu0 0.0
        %1913 = vmatprep.subr.mxu0 0.0
        %1914 = vmatpush1.msra.mxu0 0.0
        %1915 = vmatprep.subr.mxu0 0.0
        %1916 = vmatpush1.msra.mxu0 0.0
        %1917 = vmatprep.subr.mxu0 0.0
        %1918 = vmatpush1.msra.mxu0 0.0
        %1919 = vmatprep.subr.mxu0 0.0
        %1920 = vmatpush1.msra.mxu0 0.0
        %1921 = vmatprep.subr.mxu0 0.0
        %1922 = vmatpush1.msra.mxu0 0.0
        %1923 = vmatprep.subr.mxu0 0.0
        %1924 = vmatpush1.msra.mxu0 0.0
        %1925 = vmatprep.subr.mxu0 0.0
        %1926 = vmatpush1.msra.mxu0 0.0
        %1927 = vmatprep.subr.mxu0 0.0
        %1928 = vmatpush1.msra.mxu0 0.0
        %1929 = vmatprep.subr.mxu0 0.0
        %1930 = vmatpush1.msra.mxu0 0.0
        %1931 = vmatprep.subr.mxu0 0.0
        %1932 = vmatpush1.msra.mxu0 0.0
        %1933 = vmatprep.mubr.f32.mxu0 0.0
        %1934 = vmatmul.mubr.f32.gmra.mrb[0].mxu0 %v893
        %v1935 = vpop.f32.mrb[0].mxu0
        %v1936 = vadd.f32 0.0, %v1935
        %v1937 = vpop.f32.mrb[0].mxu0
        %v1938 = vadd.f32 0.0, %v1937
        %1939 = vdwg.mxu0
        %v1940 = vadd.f32 %v1867, %v1936
        %v1941 = vxor.u32 %v1940, 2147483648
        %v1942 = vmul.f32 %v1941, 1.442695
        %v1943 = vpow.pop %v1942
        %v1944 = vadd.f32 %v1943, 1.0
        %v1945 = vrcp.pop %v1944
        %v1946 = vmul.f32 1.0, %v1945
        %v1947 = vadd.f32 %v1938, %v1860
        %v1948 = vmul.f32 %v1946, %v1947
        %v1949 = vadd.f32 %v1868, %v1948
        %v1950 = vtanh.pop %v1949
        %v1951 = vsub.f32 1.0, %v1946
        %1953 = vrot.lane.b32.xlu0 %v1950, 64
        %v1954 = vpop.permute.xlu0 %1953
        %v1956 = vmul.f32 %v1951, %v1954
        %v1957 = vmul.f32 %v1946, 0.0
        %v1958 = vadd.f32 %v1956, %v1957
        %v1959 = vrot.slane %v1840, 5
        %v1960 = vrot.slane %v1842, 5
        %v1963 = vadd.f32 %v1761, %v1959
        %v1964 = vadd.f32 %v1763, %v1960
        %1966 = vrot.lane.b32.xlu0 %v1958, 64
        %v1967 = vpop.permute.xlu0 %1966
        %v1968 = vsel %vm891, %v1967, 0
        %1970 = vmatprep.subr.mxu0 %v1845
        %1971 = vmatpush1.msra.mxu0 %v1844
        %1972 = vmatprep.subr.mxu0 %v1847
        %1973 = vmatpush1.msra.mxu0 %v1846
        %1974 = vmatprep.subr.mxu0 %v1849
        %1975 = vmatpush1.msra.mxu0 %v1848
        %1976 = vmatprep.subr.mxu0 %v1851
        %1977 = vmatpush1.msra.mxu0 %v1850
        %1978 = vmatprep.subr.mxu0 %v1853
        %1979 = vmatpush1.msra.mxu0 %v1852
        %1980 = vmatprep.subr.mxu0 %v1855
        %1981 = vmatpush1.msra.mxu0 %v1854
        %1982 = vmatprep.subr.mxu0 %v1857
        %1983 = vmatpush1.msra.mxu0 %v1856
        %1984 = vmatprep.subr.mxu0 %v1859
        %1985 = vmatpush1.msra.mxu0 %v1858
        %1986 = vmatprep.subr.mxu0 0.0
        %1987 = vmatpush1.msra.mxu0 0.0
        %1988 = vmatprep.subr.mxu0 0.0
        %1989 = vmatpush1.msra.mxu0 0.0
        %1990 = vmatprep.subr.mxu0 0.0
        %1991 = vmatpush1.msra.mxu0 0.0
        %1992 = vmatprep.subr.mxu0 0.0
        %1993 = vmatpush1.msra.mxu0 0.0
        %1994 = vmatprep.subr.mxu0 0.0
        %1995 = vmatpush1.msra.mxu0 0.0
        %1996 = vmatprep.subr.mxu0 0.0
        %1997 = vmatpush1.msra.mxu0 0.0
        %1998 = vmatprep.subr.mxu0 0.0
        %1999 = vmatpush1.msra.mxu0 0.0
        %2000 = vmatprep.subr.mxu0 0.0
        %2001 = vmatpush1.msra.mxu0 0.0
        %2002 = vmatprep.subr.mxu0 0.0
        %2003 = vmatpush1.msra.mxu0 0.0
        %2004 = vmatprep.subr.mxu0 0.0
        %2005 = vmatpush1.msra.mxu0 0.0
        %2006 = vmatprep.subr.mxu0 0.0
        %2007 = vmatpush1.msra.mxu0 0.0
        %2008 = vmatprep.subr.mxu0 0.0
        %2009 = vmatpush1.msra.mxu0 0.0
        %2010 = vmatprep.subr.mxu0 0.0
        %2011 = vmatpush1.msra.mxu0 0.0
        %2012 = vmatprep.subr.mxu0 0.0
        %2013 = vmatpush1.msra.mxu0 0.0
        %2014 = vmatprep.subr.mxu0 0.0
        %2015 = vmatpush1.msra.mxu0 0.0
        %2016 = vmatprep.subr.mxu0 0.0
        %2017 = vmatpush1.msra.mxu0 0.0
        %2018 = vmatprep.subr.mxu0 0.0
        %2019 = vmatpush1.msra.mxu0 0.0
        %2020 = vmatprep.subr.mxu0 0.0
        %2021 = vmatpush1.msra.mxu0 0.0
        %2022 = vmatprep.subr.mxu0 0.0
        %2023 = vmatpush1.msra.mxu0 0.0
        %2024 = vmatprep.subr.mxu0 0.0
        %2025 = vmatpush1.msra.mxu0 0.0
        %2026 = vmatprep.subr.mxu0 0.0
        %2027 = vmatpush1.msra.mxu0 0.0
        %2028 = vmatprep.subr.mxu0 0.0
        %2029 = vmatpush1.msra.mxu0 0.0
        %2030 = vmatprep.subr.mxu0 0.0
        %2031 = vmatpush1.msra.mxu0 0.0
        %2032 = vmatprep.subr.mxu0 0.0
        %2033 = vmatpush1.msra.mxu0 0.0
        %2034 = vmatprep.mubr.f32.mxu0 0.0
        %2035 = vmatmul.mubr.f32.gmra.mrb[0].mxu0 %v1968
        %v2036 = vpop.f32.mrb[0].mxu0
        %v2037 = vadd.f32 0.0, %v2036
        %v2038 = vpop.f32.mrb[0].mxu0
        %v2039 = vadd.f32 0.0, %v2038
        %2040 = vdwg.mxu0
        %v2042 = vrot.slane %v2037, 7
        %v2044 = vadd.f32 %v1963, %v2042
        %v2045 = vxor.u32 %v2044, 2147483648
        %v2046 = vmul.f32 %v2045, 1.442695
        %v2047 = vpow.pop %v2046
        %v2048 = vadd.f32 %v2047, 1.0
        %v2049 = vrcp.pop %v2048
        %v2050 = vmul.f32 1.0, %v2049
        %v2051 = vadd.f32 %v2039, %v1860
        %v2053 = vrot.slane %v2051, 7
        %v2055 = vmul.f32 %v2050, %v2053
        %v2056 = vadd.f32 %v1964, %v2055
        %v2057 = vtanh.pop %v2056
        %v2058 = vsub.f32 1.0, %v2050
        %2060 = vrot.lane.b32.xlu0 %v2057, 64
        %v2061 = vpop.permute.xlu0 %2060
        %v2063 = vmul.f32 %v2058, %v2061
        %v2064 = vrot.slane %v1958, 7
        %v2066 = vmul.f32 %v2050, %v2064
        %v2067 = vadd.f32 %v2063, %v2066
        %v2068 = vrot.slane %v1840, 3
        %v2069 = vrot.slane %v1842, 3
        %v2072 = vadd.f32 %v1761, %v2068
        %v2073 = vadd.f32 %v1763, %v2069
        %v2075 = vrot.slane %v2067, 1
        %2076 = vrot.lane.b32.xlu0 %v2075, 64
        %v2077 = vpop.permute.xlu0 %2076
        %v2078 = vsel %vm891, %v2077, 0
        %2080 = vmatprep.subr.mxu0 %v1845
        %2081 = vmatpush1.msra.mxu0 %v1844
        %2082 = vmatprep.subr.mxu0 %v1847
        %2083 = vmatpush1.msra.mxu0 %v1846
        %2084 = vmatprep.subr.mxu0 %v1849
        %2085 = vmatpush1.msra.mxu0 %v1848
        %2086 = vmatprep.subr.mxu0 %v1851
        %2087 = vmatpush1.msra.mxu0 %v1850
        %2088 = vmatprep.subr.mxu0 %v1853
        %2089 = vmatpush1.msra.mxu0 %v1852
        %2090 = vmatprep.subr.mxu0 %v1855
        %2091 = vmatpush1.msra.mxu0 %v1854
        %2092 = vmatprep.subr.mxu0 %v1857
        %2093 = vmatpush1.msra.mxu0 %v1856
        %2094 = vmatprep.subr.mxu0 %v1859
        %2095 = vmatpush1.msra.mxu0 %v1858
        %2096 = vmatprep.subr.mxu0 0.0
        %2097 = vmatpush1.msra.mxu0 0.0
        %2098 = vmatprep.subr.mxu0 0.0
        %2099 = vmatpush1.msra.mxu0 0.0
        %2100 = vmatprep.subr.mxu0 0.0
        %2101 = vmatpush1.msra.mxu0 0.0
        %2102 = vmatprep.subr.mxu0 0.0
        %2103 = vmatpush1.msra.mxu0 0.0
        %2104 = vmatprep.subr.mxu0 0.0
        %2105 = vmatpush1.msra.mxu0 0.0
        %2106 = vmatprep.subr.mxu0 0.0
        %2107 = vmatpush1.msra.mxu0 0.0
        %2108 = vmatprep.subr.mxu0 0.0
        %2109 = vmatpush1.msra.mxu0 0.0
        %2110 = vmatprep.subr.mxu0 0.0
        %2111 = vmatpush1.msra.mxu0 0.0
        %2112 = vmatprep.subr.mxu0 0.0
        %2113 = vmatpush1.msra.mxu0 0.0
        %2114 = vmatprep.subr.mxu0 0.0
        %2115 = vmatpush1.msra.mxu0 0.0
        %2116 = vmatprep.subr.mxu0 0.0
        %2117 = vmatpush1.msra.mxu0 0.0
        %2118 = vmatprep.subr.mxu0 0.0
        %2119 = vmatpush1.msra.mxu0 0.0
        %2120 = vmatprep.subr.mxu0 0.0
        %2121 = vmatpush1.msra.mxu0 0.0
        %2122 = vmatprep.subr.mxu0 0.0
        %2123 = vmatpush1.msra.mxu0 0.0
        %2124 = vmatprep.subr.mxu0 0.0
        %2125 = vmatpush1.msra.mxu0 0.0
        %2126 = vmatprep.subr.mxu0 0.0
        %2127 = vmatpush1.msra.mxu0 0.0
        %2128 = vmatprep.subr.mxu0 0.0
        %2129 = vmatpush1.msra.mxu0 0.0
        %2130 = vmatprep.subr.mxu0 0.0
        %2131 = vmatpush1.msra.mxu0 0.0
        %2132 = vmatprep.subr.mxu0 0.0
        %2133 = vmatpush1.msra.mxu0 0.0
        %2134 = vmatprep.subr.mxu0 0.0
        %2135 = vmatpush1.msra.mxu0 0.0
        %2136 = vmatprep.subr.mxu0 0.0
        %2137 = vmatpush1.msra.mxu0 0.0
        %2138 = vmatprep.subr.mxu0 0.0
        %2139 = vmatpush1.msra.mxu0 0.0
        %2140 = vmatprep.subr.mxu0 0.0
        %2141 = vmatpush1.msra.mxu0 0.0
        %2142 = vmatprep.subr.mxu0 0.0
        %2143 = vmatpush1.msra.mxu0 0.0
        %2144 = vmatprep.mubr.f32.mxu0 0.0
        %2145 = vmatmul.mubr.f32.gmra.mrb[0].mxu0 %v2078
        %v2146 = vpop.f32.mrb[0].mxu0
        %v2147 = vadd.f32 0.0, %v2146
        %v2148 = vpop.f32.mrb[0].mxu0
        %v2149 = vadd.f32 0.0, %v2148
        %2150 = vdwg.mxu0
        %v2152 = vrot.slane %v2147, 6
        %v2154 = vadd.f32 %v2072, %v2152
        %v2155 = vxor.u32 %v2154, 2147483648
        %v2156 = vmul.f32 %v2155, 1.442695
        %v2157 = vpow.pop %v2156
        %v2158 = vadd.f32 %v2157, 1.0
        %v2159 = vrcp.pop %v2158
        %v2160 = vmul.f32 1.0, %v2159
        %v2161 = vadd.f32 %v2149, %v1860
        %v2163 = vrot.slane %v2161, 6
        %v2165 = vmul.f32 %v2160, %v2163
        %v2166 = vadd.f32 %v2073, %v2165
        %v2167 = vtanh.pop %v2166
        %v2168 = vsub.f32 1.0, %v2160
        %2170 = vrot.lane.b32.xlu0 %v2167, 64
        %v2171 = vpop.permute.xlu0 %2170
        %v2173 = vmul.f32 %v2168, %v2171
        %v2174 = vrot.slane %v2067, 7
        %v2176 = vmul.f32 %v2160, %v2174
        %v2177 = vadd.f32 %v2173, %v2176
        %v2178 = vrot.slane %v1840, 1
        %v2179 = vrot.slane %v1842, 1
        %v2182 = vadd.f32 %v1761, %v2178
        %v2183 = vadd.f32 %v1763, %v2179
        %v2185 = vrot.slane %v2177, 2
        %2186 = vrot.lane.b32.xlu0 %v2185, 64
        %v2187 = vpop.permute.xlu0 %2186
        %v2188 = vsel %vm891, %v2187, 0
        %2190 = vmatprep.subr.mxu0 %v1845
        %2191 = vmatpush1.msra.mxu0 %v1844
        %2192 = vmatprep.subr.mxu0 %v1847
        %2193 = vmatpush1.msra.mxu0 %v1846
        %2194 = vmatprep.subr.mxu0 %v1849
        %2195 = vmatpush1.msra.mxu0 %v1848
        %2196 = vmatprep.subr.mxu0 %v1851
        %2197 = vmatpush1.msra.mxu0 %v1850
        %2198 = vmatprep.subr.mxu0 %v1853
        %2199 = vmatpush1.msra.mxu0 %v1852
        %2200 = vmatprep.subr.mxu0 %v1855
        %2201 = vmatpush1.msra.mxu0 %v1854
        %2202 = vmatprep.subr.mxu0 %v1857
        %2203 = vmatpush1.msra.mxu0 %v1856
        %2204 = vmatprep.subr.mxu0 %v1859
        %2205 = vmatpush1.msra.mxu0 %v1858
        %2206 = vmatprep.subr.mxu0 0.0
        %2207 = vmatpush1.msra.mxu0 0.0
        %2208 = vmatprep.subr.mxu0 0.0
        %2209 = vmatpush1.msra.mxu0 0.0
        %2210 = vmatprep.subr.mxu0 0.0
        %2211 = vmatpush1.msra.mxu0 0.0
        %2212 = vmatprep.subr.mxu0 0.0
        %2213 = vmatpush1.msra.mxu0 0.0
        %2214 = vmatprep.subr.mxu0 0.0
        %2215 = vmatpush1.msra.mxu0 0.0
        %2216 = vmatprep.subr.mxu0 0.0
        %2217 = vmatpush1.msra.mxu0 0.0
        %2218 = vmatprep.subr.mxu0 0.0
        %2219 = vmatpush1.msra.mxu0 0.0
        %2220 = vmatprep.subr.mxu0 0.0
        %2221 = vmatpush1.msra.mxu0 0.0
        %2222 = vmatprep.subr.mxu0 0.0
        %2223 = vmatpush1.msra.mxu0 0.0
        %2224 = vmatprep.subr.mxu0 0.0
        %2225 = vmatpush1.msra.mxu0 0.0
        %2226 = vmatprep.subr.mxu0 0.0
        %2227 = vmatpush1.msra.mxu0 0.0
        %2228 = vmatprep.subr.mxu0 0.0
        %2229 = vmatpush1.msra.mxu0 0.0
        %2230 = vmatprep.subr.mxu0 0.0
        %2231 = vmatpush1.msra.mxu0 0.0
        %2232 = vmatprep.subr.mxu0 0.0
        %2233 = vmatpush1.msra.mxu0 0.0
        %2234 = vmatprep.subr.mxu0 0.0
        %2235 = vmatpush1.msra.mxu0 0.0
        %2236 = vmatprep.subr.mxu0 0.0
        %2237 = vmatpush1.msra.mxu0 0.0
        %2238 = vmatprep.subr.mxu0 0.0
        %2239 = vmatpush1.msra.mxu0 0.0
        %2240 = vmatprep.subr.mxu0 0.0
        %2241 = vmatpush1.msra.mxu0 0.0
        %2242 = vmatprep.subr.mxu0 0.0
        %2243 = vmatpush1.msra.mxu0 0.0
        %2244 = vmatprep.subr.mxu0 0.0
        %2245 = vmatpush1.msra.mxu0 0.0
        %2246 = vmatprep.subr.mxu0 0.0
        %2247 = vmatpush1.msra.mxu0 0.0
        %2248 = vmatprep.subr.mxu0 0.0
        %2249 = vmatpush1.msra.mxu0 0.0
        %2250 = vmatprep.subr.mxu0 0.0
        %2251 = vmatpush1.msra.mxu0 0.0
        %2252 = vmatprep.subr.mxu0 0.0
        %2253 = vmatpush1.msra.mxu0 0.0
        %2254 = vmatprep.mubr.f32.mxu0 0.0
        %2255 = vmatmul.mubr.f32.gmra.mrb[0].mxu0 %v2188
        %v2256 = vpop.f32.mrb[0].mxu0
        %v2257 = vadd.f32 0.0, %v2256
        %v2258 = vpop.f32.mrb[0].mxu0
        %v2259 = vadd.f32 0.0, %v2258
        %2260 = vdwg.mxu0
        %v2262 = vrot.slane %v2257, 5
        %v2264 = vadd.f32 %v2182, %v2262
        %v2265 = vxor.u32 %v2264, 2147483648
        %v2266 = vmul.f32 %v2265, 1.442695
        %v2267 = vpow.pop %v2266
        %v2268 = vadd.f32 %v2267, 1.0
        %v2269 = vrcp.pop %v2268
        %v2270 = vmul.f32 1.0, %v2269
        %v2271 = vadd.f32 %v2259, %v1860
        %v2273 = vrot.slane %v2271, 5
        %v2275 = vmul.f32 %v2270, %v2273
        %v2276 = vadd.f32 %v2183, %v2275
        %v2277 = vtanh.pop %v2276
        %v2278 = vsub.f32 1.0, %v2270
        %2280 = vrot.lane.b32.xlu0 %v2277, 64
        %v2281 = vpop.permute.xlu0 %2280
        %v2283 = vmul.f32 %v2278, %v2281
        %v2284 = vrot.slane %v2177, 7
        %v2286 = vmul.f32 %v2270, %v2284
        %v2287 = vadd.f32 %v2283, %v2286
        %v2289 = vrot.slane %v2287, 3
        %2290 = vrot.lane.b32.xlu0 %v2289, 64
        %v2291 = vpop.permute.xlu0 %2290
        %v2292 = vsel %vm891, %v2291, 0
        %2294 = vmatprep.subr.mxu0 %v1845
        %2295 = vmatpush1.msra.mxu0 %v1844
        %2296 = vmatprep.subr.mxu0 %v1847
        %2297 = vmatpush1.msra.mxu0 %v1846
        %2298 = vmatprep.subr.mxu0 %v1849
        %2299 = vmatpush1.msra.mxu0 %v1848
        %2300 = vmatprep.subr.mxu0 %v1851
        %2301 = vmatpush1.msra.mxu0 %v1850
        %2302 = vmatprep.subr.mxu0 %v1853
        %2303 = vmatpush1.msra.mxu0 %v1852
        %2304 = vmatprep.subr.mxu0 %v1855
        %2305 = vmatpush1.msra.mxu0 %v1854
        %2306 = vmatprep.subr.mxu0 %v1857
        %2307 = vmatpush1.msra.mxu0 %v1856
        %2308 = vmatprep.subr.mxu0 %v1859
        %2309 = vmatpush1.msra.mxu0 %v1858
        %2310 = vmatprep.subr.mxu0 0.0
        %2311 = vmatpush1.msra.mxu0 0.0
        %2312 = vmatprep.subr.mxu0 0.0
        %2313 = vmatpush1.msra.mxu0 0.0
        %2314 = vmatprep.subr.mxu0 0.0
        %2315 = vmatpush1.msra.mxu0 0.0
        %2316 = vmatprep.subr.mxu0 0.0
        %2317 = vmatpush1.msra.mxu0 0.0
        %2318 = vmatprep.subr.mxu0 0.0
        %2319 = vmatpush1.msra.mxu0 0.0
        %2320 = vmatprep.subr.mxu0 0.0
        %2321 = vmatpush1.msra.mxu0 0.0
        %2322 = vmatprep.subr.mxu0 0.0
        %2323 = vmatpush1.msra.mxu0 0.0
        %2324 = vmatprep.subr.mxu0 0.0
        %2325 = vmatpush1.msra.mxu0 0.0
        %2326 = vmatprep.subr.mxu0 0.0
        %2327 = vmatpush1.msra.mxu0 0.0
        %2328 = vmatprep.subr.mxu0 0.0
        %2329 = vmatpush1.msra.mxu0 0.0
        %2330 = vmatprep.subr.mxu0 0.0
        %2331 = vmatpush1.msra.mxu0 0.0
        %2332 = vmatprep.subr.mxu0 0.0
        %2333 = vmatpush1.msra.mxu0 0.0
        %2334 = vmatprep.subr.mxu0 0.0
        %2335 = vmatpush1.msra.mxu0 0.0
        %2336 = vmatprep.subr.mxu0 0.0
        %2337 = vmatpush1.msra.mxu0 0.0
        %2338 = vmatprep.subr.mxu0 0.0
        %2339 = vmatpush1.msra.mxu0 0.0
        %2340 = vmatprep.subr.mxu0 0.0
        %2341 = vmatpush1.msra.mxu0 0.0
        %2342 = vmatprep.subr.mxu0 0.0
        %2343 = vmatpush1.msra.mxu0 0.0
        %2344 = vmatprep.subr.mxu0 0.0
        %2345 = vmatpush1.msra.mxu0 0.0
        %2346 = vmatprep.subr.mxu0 0.0
        %2347 = vmatpush1.msra.mxu0 0.0
        %2348 = vmatprep.subr.mxu0 0.0
        %2349 = vmatpush1.msra.mxu0 0.0
        %2350 = vmatprep.subr.mxu0 0.0
        %2351 = vmatpush1.msra.mxu0 0.0
        %2352 = vmatprep.subr.mxu0 0.0
        %2353 = vmatpush1.msra.mxu0 0.0
        %2354 = vmatprep.subr.mxu0 0.0
        %2355 = vmatpush1.msra.mxu0 0.0
        %2356 = vmatprep.subr.mxu0 0.0
        %2357 = vmatpush1.msra.mxu0 0.0
        %2358 = vmatprep.mubr.f32.mxu0 0.0
        %2359 = vmatmul.mubr.f32.gmra.mrb[0].mxu0 %v2292
        %v2360 = vpop.f32.mrb[0].mxu0
        %v2361 = vadd.f32 0.0, %v2360
        %v2362 = vpop.f32.mrb[0].mxu0
        %v2363 = vadd.f32 0.0, %v2362
        %2364 = vdwg.mxu0
        %v2366 = vrot.slane %v2361, 4
        %v2368 = vadd.f32 %v1867, %v2366
        %v2369 = vxor.u32 %v2368, 2147483648
        %v2370 = vmul.f32 %v2369, 1.442695
        %v2371 = vpow.pop %v2370
        %v2372 = vadd.f32 %v2371, 1.0
        %v2373 = vrcp.pop %v2372
        %v2374 = vmul.f32 1.0, %v2373
        %v2375 = vadd.f32 %v2363, %v1860
        %v2377 = vrot.slane %v2375, 4
        %v2379 = vmul.f32 %v2374, %v2377
        %v2380 = vadd.f32 %v1868, %v2379
        %v2381 = vtanh.pop %v2380
        %v2382 = vsub.f32 1.0, %v2374
        %2384 = vrot.lane.b32.xlu0 %v2381, 64
        %v2385 = vpop.permute.xlu0 %2384
        %v2387 = vmul.f32 %v2382, %v2385
        %v2388 = vrot.slane %v2287, 7
        %v2390 = vmul.f32 %v2374, %v2388
        %v2391 = vadd.f32 %v2387, %v2390
        %v2393 = vrot.slane %v2391, 4
        %2394 = vrot.lane.b32.xlu0 %v2393, 64
        %v2395 = vpop.permute.xlu0 %2394
        %v2396 = vsel %vm891, %v2395, 0
        %2398 = vmatprep.subr.mxu0 %v1845
        %2399 = vmatpush1.msra.mxu0 %v1844
        %2400 = vmatprep.subr.mxu0 %v1847
        %2401 = vmatpush1.msra.mxu0 %v1846
        %2402 = vmatprep.subr.mxu0 %v1849
        %2403 = vmatpush1.msra.mxu0 %v1848
        %2404 = vmatprep.subr.mxu0 %v1851
        %2405 = vmatpush1.msra.mxu0 %v1850
        %2406 = vmatprep.subr.mxu0 %v1853
        %2407 = vmatpush1.msra.mxu0 %v1852
        %2408 = vmatprep.subr.mxu0 %v1855
        %2409 = vmatpush1.msra.mxu0 %v1854
        %2410 = vmatprep.subr.mxu0 %v1857
        %2411 = vmatpush1.msra.mxu0 %v1856
        %2412 = vmatprep.subr.mxu0 %v1859
        %2413 = vmatpush1.msra.mxu0 %v1858
        %2414 = vmatprep.subr.mxu0 0.0
        %2415 = vmatpush1.msra.mxu0 0.0
        %2416 = vmatprep.subr.mxu0 0.0
        %2417 = vmatpush1.msra.mxu0 0.0
        %2418 = vmatprep.subr.mxu0 0.0
        %2419 = vmatpush1.msra.mxu0 0.0
        %2420 = vmatprep.subr.mxu0 0.0
        %2421 = vmatpush1.msra.mxu0 0.0
        %2422 = vmatprep.subr.mxu0 0.0
        %2423 = vmatpush1.msra.mxu0 0.0
        %2424 = vmatprep.subr.mxu0 0.0
        %2425 = vmatpush1.msra.mxu0 0.0
        %2426 = vmatprep.subr.mxu0 0.0
        %2427 = vmatpush1.msra.mxu0 0.0
        %2428 = vmatprep.subr.mxu0 0.0
        %2429 = vmatpush1.msra.mxu0 0.0
        %2430 = vmatprep.subr.mxu0 0.0
        %2431 = vmatpush1.msra.mxu0 0.0
        %2432 = vmatprep.subr.mxu0 0.0
        %2433 = vmatpush1.msra.mxu0 0.0
        %2434 = vmatprep.subr.mxu0 0.0
        %2435 = vmatpush1.msra.mxu0 0.0
        %2436 = vmatprep.subr.mxu0 0.0
        %2437 = vmatpush1.msra.mxu0 0.0
        %2438 = vmatprep.subr.mxu0 0.0
        %2439 = vmatpush1.msra.mxu0 0.0
        %2440 = vmatprep.subr.mxu0 0.0
        %2441 = vmatpush1.msra.mxu0 0.0
        %2442 = vmatprep.subr.mxu0 0.0
        %2443 = vmatpush1.msra.mxu0 0.0
        %2444 = vmatprep.subr.mxu0 0.0
        %2445 = vmatpush1.msra.mxu0 0.0
        %2446 = vmatprep.subr.mxu0 0.0
        %2447 = vmatpush1.msra.mxu0 0.0
        %2448 = vmatprep.subr.mxu0 0.0
        %2449 = vmatpush1.msra.mxu0 0.0
        %2450 = vmatprep.subr.mxu0 0.0
        %2451 = vmatpush1.msra.mxu0 0.0
        %2452 = vmatprep.subr.mxu0 0.0
        %2453 = vmatpush1.msra.mxu0 0.0
        %2454 = vmatprep.subr.mxu0 0.0
        %2455 = vmatpush1.msra.mxu0 0.0
        %2456 = vmatprep.subr.mxu0 0.0
        %2457 = vmatpush1.msra.mxu0 0.0
        %2458 = vmatprep.subr.mxu0 0.0
        %2459 = vmatpush1.msra.mxu0 0.0
        %2460 = vmatprep.subr.mxu0 0.0
        %2461 = vmatpush1.msra.mxu0 0.0
        %2462 = vmatprep.mubr.f32.mxu0 0.0
        %2463 = vmatmul.mubr.f32.gmra.mrb[0].mxu0 %v2396
        %v2464 = vpop.f32.mrb[0].mxu0
        %v2465 = vadd.f32 0.0, %v2464
        %v2466 = vpop.f32.mrb[0].mxu0
        %v2467 = vadd.f32 0.0, %v2466
        %2468 = vdwg.mxu0
        %v2470 = vrot.slane %v2465, 3
        %v2472 = vadd.f32 %v1963, %v2470
        %v2473 = vxor.u32 %v2472, 2147483648
        %v2474 = vmul.f32 %v2473, 1.442695
        %v2475 = vpow.pop %v2474
        %v2476 = vadd.f32 %v2475, 1.0
        %v2477 = vrcp.pop %v2476
        %v2478 = vmul.f32 1.0, %v2477
        %v2479 = vadd.f32 %v2467, %v1860
        %v2481 = vrot.slane %v2479, 3
        %v2483 = vmul.f32 %v2478, %v2481
        %v2484 = vadd.f32 %v1964, %v2483
        %v2485 = vtanh.pop %v2484
        %v2486 = vsub.f32 1.0, %v2478
        %2488 = vrot.lane.b32.xlu0 %v2485, 64
        %v2489 = vpop.permute.xlu0 %2488
        %v2491 = vmul.f32 %v2486, %v2489
        %v2492 = vrot.slane %v2391, 7
        %v2494 = vmul.f32 %v2478, %v2492
        %v2495 = vadd.f32 %v2491, %v2494
        %v2497 = vrot.slane %v2495, 5
        %2498 = vrot.lane.b32.xlu0 %v2497, 64
        %v2499 = vpop.permute.xlu0 %2498
        %v2500 = vsel %vm891, %v2499, 0
        %2502 = vmatprep.subr.mxu0 %v1845
        %2503 = vmatpush1.msra.mxu0 %v1844
        %2504 = vmatprep.subr.mxu0 %v1847
        %2505 = vmatpush1.msra.mxu0 %v1846
        %2506 = vmatprep.subr.mxu0 %v1849
        %2507 = vmatpush1.msra.mxu0 %v1848
        %2508 = vmatprep.subr.mxu0 %v1851
        %2509 = vmatpush1.msra.mxu0 %v1850
        %2510 = vmatprep.subr.mxu0 %v1853
        %2511 = vmatpush1.msra.mxu0 %v1852
        %2512 = vmatprep.subr.mxu0 %v1855
        %2513 = vmatpush1.msra.mxu0 %v1854
        %2514 = vmatprep.subr.mxu0 %v1857
        %2515 = vmatpush1.msra.mxu0 %v1856
        %2516 = vmatprep.subr.mxu0 %v1859
        %2517 = vmatpush1.msra.mxu0 %v1858
        %2518 = vmatprep.subr.mxu0 0.0
        %2519 = vmatpush1.msra.mxu0 0.0
        %2520 = vmatprep.subr.mxu0 0.0
        %2521 = vmatpush1.msra.mxu0 0.0
        %2522 = vmatprep.subr.mxu0 0.0
        %2523 = vmatpush1.msra.mxu0 0.0
        %2524 = vmatprep.subr.mxu0 0.0
        %2525 = vmatpush1.msra.mxu0 0.0
        %2526 = vmatprep.subr.mxu0 0.0
        %2527 = vmatpush1.msra.mxu0 0.0
        %2528 = vmatprep.subr.mxu0 0.0
        %2529 = vmatpush1.msra.mxu0 0.0
        %2530 = vmatprep.subr.mxu0 0.0
        %2531 = vmatpush1.msra.mxu0 0.0
        %2532 = vmatprep.subr.mxu0 0.0
        %2533 = vmatpush1.msra.mxu0 0.0
        %2534 = vmatprep.subr.mxu0 0.0
        %2535 = vmatpush1.msra.mxu0 0.0
        %2536 = vmatprep.subr.mxu0 0.0
        %2537 = vmatpush1.msra.mxu0 0.0
        %2538 = vmatprep.subr.mxu0 0.0
        %2539 = vmatpush1.msra.mxu0 0.0
        %2540 = vmatprep.subr.mxu0 0.0
        %2541 = vmatpush1.msra.mxu0 0.0
        %2542 = vmatprep.subr.mxu0 0.0
        %2543 = vmatpush1.msra.mxu0 0.0
        %2544 = vmatprep.subr.mxu0 0.0
        %2545 = vmatpush1.msra.mxu0 0.0
        %2546 = vmatprep.subr.mxu0 0.0
        %2547 = vmatpush1.msra.mxu0 0.0
        %2548 = vmatprep.subr.mxu0 0.0
        %2549 = vmatpush1.msra.mxu0 0.0
        %2550 = vmatprep.subr.mxu0 0.0
        %2551 = vmatpush1.msra.mxu0 0.0
        %2552 = vmatprep.subr.mxu0 0.0
        %2553 = vmatpush1.msra.mxu0 0.0
        %2554 = vmatprep.subr.mxu0 0.0
        %2555 = vmatpush1.msra.mxu0 0.0
        %2556 = vmatprep.subr.mxu0 0.0
        %2557 = vmatpush1.msra.mxu0 0.0
        %2558 = vmatprep.subr.mxu0 0.0
        %2559 = vmatpush1.msra.mxu0 0.0
        %2560 = vmatprep.subr.mxu0 0.0
        %2561 = vmatpush1.msra.mxu0 0.0
        %2562 = vmatprep.subr.mxu0 0.0
        %2563 = vmatpush1.msra.mxu0 0.0
        %2564 = vmatprep.subr.mxu0 0.0
        %2565 = vmatpush1.msra.mxu0 0.0
        %2566 = vmatprep.mubr.f32.mxu0 0.0
        %2567 = vmatmul.mubr.f32.gmra.mrb[0].mxu0 %v2500
        %v2568 = vpop.f32.mrb[0].mxu0
        %v2569 = vadd.f32 0.0, %v2568
        %v2570 = vpop.f32.mrb[0].mxu0
        %v2571 = vadd.f32 0.0, %v2570
        %2572 = vdwg.mxu0
        %v2574 = vrot.slane %v2569, 2
        %v2576 = vadd.f32 %v2072, %v2574
        %v2577 = vxor.u32 %v2576, 2147483648
        %v2578 = vmul.f32 %v2577, 1.442695
        %v2579 = vpow.pop %v2578
        %v2580 = vadd.f32 %v2579, 1.0
        %v2581 = vrcp.pop %v2580
        %v2582 = vmul.f32 1.0, %v2581
        %v2583 = vadd.f32 %v2571, %v1860
        %v2585 = vrot.slane %v2583, 2
        %v2587 = vmul.f32 %v2582, %v2585
        %v2588 = vadd.f32 %v2073, %v2587
        %v2589 = vtanh.pop %v2588
        %v2590 = vsub.f32 1.0, %v2582
        %2592 = vrot.lane.b32.xlu0 %v2589, 64
        %v2593 = vpop.permute.xlu0 %2592
        %v2595 = vmul.f32 %v2590, %v2593
        %v2596 = vrot.slane %v2495, 7
        %v2598 = vmul.f32 %v2582, %v2596
        %v2599 = vadd.f32 %v2595, %v2598
        %v2601 = vrot.slane %v2599, 6
        %2602 = vrot.lane.b32.xlu0 %v2601, 64
        %v2603 = vpop.permute.xlu0 %2602
        %v2604 = vsel %vm891, %v2603, 0
        %2606 = vmatprep.subr.mxu0 %v1845
        %2607 = vmatpush1.msra.mxu0 %v1844
        %2608 = vmatprep.subr.mxu0 %v1847
        %2609 = vmatpush1.msra.mxu0 %v1846
        %2610 = vmatprep.subr.mxu0 %v1849
        %2611 = vmatpush1.msra.mxu0 %v1848
        %2612 = vmatprep.subr.mxu0 %v1851
        %2613 = vmatpush1.msra.mxu0 %v1850
        %2614 = vmatprep.subr.mxu0 %v1853
        %2615 = vmatpush1.msra.mxu0 %v1852
        %2616 = vmatprep.subr.mxu0 %v1855
        %2617 = vmatpush1.msra.mxu0 %v1854
        %2618 = vmatprep.subr.mxu0 %v1857
        %2619 = vmatpush1.msra.mxu0 %v1856
        %2620 = vmatprep.subr.mxu0 %v1859
        %2621 = vmatpush1.msra.mxu0 %v1858
        %2622 = vmatprep.subr.mxu0 0.0
        %2623 = vmatpush1.msra.mxu0 0.0
        %2624 = vmatprep.subr.mxu0 0.0
        %2625 = vmatpush1.msra.mxu0 0.0
        %2626 = vmatprep.subr.mxu0 0.0
        %2627 = vmatpush1.msra.mxu0 0.0
        %2628 = vmatprep.subr.mxu0 0.0
        %2629 = vmatpush1.msra.mxu0 0.0
        %2630 = vmatprep.subr.mxu0 0.0
        %2631 = vmatpush1.msra.mxu0 0.0
        %2632 = vmatprep.subr.mxu0 0.0
        %2633 = vmatpush1.msra.mxu0 0.0
        %2634 = vmatprep.subr.mxu0 0.0
        %2635 = vmatpush1.msra.mxu0 0.0
        %2636 = vmatprep.subr.mxu0 0.0
        %2637 = vmatpush1.msra.mxu0 0.0
        %2638 = vmatprep.subr.mxu0 0.0
        %2639 = vmatpush1.msra.mxu0 0.0
        %2640 = vmatprep.subr.mxu0 0.0
        %2641 = vmatpush1.msra.mxu0 0.0
        %2642 = vmatprep.subr.mxu0 0.0
        %2643 = vmatpush1.msra.mxu0 0.0
        %2644 = vmatprep.subr.mxu0 0.0
        %2645 = vmatpush1.msra.mxu0 0.0
        %2646 = vmatprep.subr.mxu0 0.0
        %2647 = vmatpush1.msra.mxu0 0.0
        %2648 = vmatprep.subr.mxu0 0.0
        %2649 = vmatpush1.msra.mxu0 0.0
        %2650 = vmatprep.subr.mxu0 0.0
        %2651 = vmatpush1.msra.mxu0 0.0
        %2652 = vmatprep.subr.mxu0 0.0
        %2653 = vmatpush1.msra.mxu0 0.0
        %2654 = vmatprep.subr.mxu0 0.0
        %2655 = vmatpush1.msra.mxu0 0.0
        %2656 = vmatprep.subr.mxu0 0.0
        %2657 = vmatpush1.msra.mxu0 0.0
        %2658 = vmatprep.subr.mxu0 0.0
        %2659 = vmatpush1.msra.mxu0 0.0
        %2660 = vmatprep.subr.mxu0 0.0
        %2661 = vmatpush1.msra.mxu0 0.0
        %2662 = vmatprep.subr.mxu0 0.0
        %2663 = vmatpush1.msra.mxu0 0.0
        %2664 = vmatprep.subr.mxu0 0.0
        %2665 = vmatpush1.msra.mxu0 0.0
        %2666 = vmatprep.subr.mxu0 0.0
        %2667 = vmatpush1.msra.mxu0 0.0
        %2668 = vmatprep.subr.mxu0 0.0
        %2669 = vmatpush1.msra.mxu0 0.0
        %2670 = vmatprep.mubr.f32.mxu0 0.0
        %2671 = vmatmul.mubr.f32.gmra.mrb[0].mxu0 %v2604
        %v2672 = vpop.f32.mrb[0].mxu0
        %v2673 = vadd.f32 0.0, %v2672
        %v2674 = vpop.f32.mrb[0].mxu0
        %v2675 = vadd.f32 0.0, %v2674
        %2676 = vdwg.mxu0
        %v2678 = vrot.slane %v2673, 1
        %v2680 = vadd.f32 %v2182, %v2678
        %v2681 = vxor.u32 %v2680, 2147483648
        %v2682 = vmul.f32 %v2681, 1.442695
        %v2683 = vpow.pop %v2682
        %v2684 = vadd.f32 %v2683, 1.0
        %v2685 = vrcp.pop %v2684
        %v2686 = vmul.f32 1.0, %v2685
        %v2687 = vadd.f32 %v2675, %v1860
        %v2689 = vrot.slane %v2687, 1
        %v2691 = vmul.f32 %v2686, %v2689
        %v2692 = vadd.f32 %v2183, %v2691
        %v2693 = vtanh.pop %v2692
        %v2694 = vsub.f32 1.0, %v2686
        %2696 = vrot.lane.b32.xlu0 %v2693, 64
        %v2697 = vpop.permute.xlu0 %2696
        %v2699 = vmul.f32 %v2694, %v2697
        %v2700 = vrot.slane %v2599, 7
        %v2702 = vmul.f32 %v2686, %v2700
        %v2703 = vadd.f32 %v2699, %v2702
        %2705 = vrot.lane.b32.xlu0 %v2703, 96
        %v2706 = vpop.permute.xlu0 %2705
        %v2708 = vadd.f32 %v2703, %v2706
        %vm2709 = vcmask 1040384
        %v2710 = vsel %vm2709, %v1958, %v2067
        %vm2711 = vcmask 1041408
        %v2712 = vsel %vm2711, %v2710, %v2177
        %vm2713 = vcmask 1042432
        %v2714 = vsel %vm2713, %v2712, %v2287
        %vm2715 = vcmask 1043456
        %v2716 = vsel %vm2715, %v2714, %v2391
        %vm2717 = vcmask 1044480
        %v2718 = vsel %vm2717, %v2716, %v2495
        %vm2719 = vcmask 1045504
        %v2720 = vsel %vm2719, %v2718, %v2599
        %vm2721 = vcmask 1046528
        %v2722 = vsel %vm2721, %v2720, %v2703
        %v2723 = vrot.slane %v2703, 7
        %v2725 = vrot.slane %v2599, 5
        %v2727 = vrot.slane %v2495, 3
        %v2729 = vrot.slane %v2391, 1
        %v2731 = vrot.slane %v2177, 5
        %v2733 = vrot.slane %v2067, 3
        %v2735 = vrot.slane %v1958, 1
        %v2737 = vsel %vm2709, %v2723, %v2725
        %v2738 = vsel %vm2711, %v2737, %v2727
        %v2739 = vsel %vm2713, %v2738, %v2729
        %v2740 = vsel %vm2715, %v2739, %v2388
        %v2741 = vsel %vm2717, %v2740, %v2731
        %v2742 = vsel %vm2719, %v2741, %v2733
        %v2743 = vsel %vm2721, %v2742, %v2735
        %2745 = vrot.lane.b32.xlu0 %v2722, 64
        %v2746 = vpop.permute.xlu0 %2745
        %2749 = vrot.lane.b32.xlu0 %v2743, 64
        %v2750 = vpop.permute.xlu0 %2749
        %v2752 = vsel %vm607, %v2746, %v2750
        %v2753 = vld [vmem:[#allocation4] sm:$0xff]
        %v2754 = vld [vmem:[#allocation4 + $0x8] sm:$0xff]
        %v2755 = vld [vmem:[#allocation4 + $0x10] sm:$0xff]
        %v2756 = vld [vmem:[#allocation4 + $0x18] sm:$0xff]
        %v2757 = vld [vmem:[#allocation4 + $0x20] sm:$0xff]
        %v2758 = vld [vmem:[#allocation4 + $0x28] sm:$0xff]
        %v2759 = vld [vmem:[#allocation4 + $0x30] sm:$0xff]
        %v2760 = vld [vmem:[#allocation4 + $0x38] sm:$0xff]
        %v2761 = vld [vmem:[#allocation4 + $0x40] sm:$0xff]
        %v2762 = vld [vmem:[#allocation4 + $0x48] sm:$0xff]
        %v2763 = vld [vmem:[#allocation4 + $0x50] sm:$0xff]
        %v2764 = vld [vmem:[#allocation4 + $0x58] sm:$0xff]
        %v2765 = vld [vmem:[#allocation4 + $0x60] sm:$0xff]
        %v2766 = vld [vmem:[#allocation4 + $0x68] sm:$0xff]
        %v2767 = vld [vmem:[#allocation4 + $0x70] sm:$0xff]
        %v2768 = vld [vmem:[#allocation4 + $0x78] sm:$0xff]
        %v2769 = vld [vmem:[%s10] sm:$0x3]
        %v2771 = vlaneseq
        %v2772 = vshrl.u32 %v2771, 7
        %v2773 = vsub.s32 0, %v2772
        %v2774 = vrot.slane %v2769, %v2773
        %v2775 = vlaneseq
        %v2776 = vshrl.u32 %v2775, 7
        %v2777 = vsub.s32 1, %v2776
        %v2778 = vrot.slane %v2769, %v2777
        %v2782 = vsel %vm891, %v2752, 0
        %2784 = vmatprep.subr.mxu0 %v2754
        %2785 = vmatpush1.msra.mxu0 %v2753
        %2786 = vmatprep.subr.mxu0 %v2756
        %2787 = vmatpush1.msra.mxu0 %v2755
        %2788 = vmatprep.subr.mxu0 %v2758
        %2789 = vmatpush1.msra.mxu0 %v2757
        %2790 = vmatprep.subr.mxu0 %v2760
        %2791 = vmatpush1.msra.mxu0 %v2759
        %2792 = vmatprep.subr.mxu0 %v2762
        %2793 = vmatpush1.msra.mxu0 %v2761
        %2794 = vmatprep.subr.mxu0 %v2764
        %2795 = vmatpush1.msra.mxu0 %v2763
        %2796 = vmatprep.subr.mxu0 %v2766
        %2797 = vmatpush1.msra.mxu0 %v2765
        %2798 = vmatprep.subr.mxu0 %v2768
        %2799 = vmatpush1.msra.mxu0 %v2767
        %2800 = vmatprep.subr.mxu0 0.0
        %2801 = vmatpush1.msra.mxu0 0.0
        %2802 = vmatprep.subr.mxu0 0.0
        %2803 = vmatpush1.msra.mxu0 0.0
        %2804 = vmatprep.subr.mxu0 0.0
        %2805 = vmatpush1.msra.mxu0 0.0
        %2806 = vmatprep.subr.mxu0 0.0
        %2807 = vmatpush1.msra.mxu0 0.0
        %2808 = vmatprep.subr.mxu0 0.0
        %2809 = vmatpush1.msra.mxu0 0.0
        %2810 = vmatprep.subr.mxu0 0.0
        %2811 = vmatpush1.msra.mxu0 0.0
        %2812 = vmatprep.subr.mxu0 0.0
        %2813 = vmatpush1.msra.mxu0 0.0
        %2814 = vmatprep.subr.mxu0 0.0
        %2815 = vmatpush1.msra.mxu0 0.0
        %2816 = vmatprep.subr.mxu0 0.0
        %2817 = vmatpush1.msra.mxu0 0.0
        %2818 = vmatprep.subr.mxu0 0.0
        %2819 = vmatpush1.msra.mxu0 0.0
        %2820 = vmatprep.subr.mxu0 0.0
        %2821 = vmatpush1.msra.mxu0 0.0
        %2822 = vmatprep.subr.mxu0 0.0
        %2823 = vmatpush1.msra.mxu0 0.0
        %2824 = vmatprep.subr.mxu0 0.0
        %2825 = vmatpush1.msra.mxu0 0.0
        %2826 = vmatprep.subr.mxu0 0.0
        %2827 = vmatpush1.msra.mxu0 0.0
        %2828 = vmatprep.subr.mxu0 0.0
        %2829 = vmatpush1.msra.mxu0 0.0
        %2830 = vmatprep.subr.mxu0 0.0
        %2831 = vmatpush1.msra.mxu0 0.0
        %2832 = vmatprep.subr.mxu0 0.0
        %2833 = vmatpush1.msra.mxu0 0.0
        %2834 = vmatprep.subr.mxu0 0.0
        %2835 = vmatpush1.msra.mxu0 0.0
        %2836 = vmatprep.subr.mxu0 0.0
        %2837 = vmatpush1.msra.mxu0 0.0
        %2838 = vmatprep.subr.mxu0 0.0
        %2839 = vmatpush1.msra.mxu0 0.0
        %2840 = vmatprep.subr.mxu0 0.0
        %2841 = vmatpush1.msra.mxu0 0.0
        %2842 = vmatprep.subr.mxu0 0.0
        %2843 = vmatpush1.msra.mxu0 0.0
        %2844 = vmatprep.subr.mxu0 0.0
        %2845 = vmatpush1.msra.mxu0 0.0
        %2846 = vmatprep.subr.mxu0 0.0
        %2847 = vmatpush1.msra.mxu0 0.0
        %2848 = vmatprep.mubr.f32.mxu0 0.0
        %2849 = vmatmul.mubr.f32.gmra.mrb[0].mxu0 %v2782
        %v2850 = vpop.f32.mrb[0].mxu0
        %v2851 = vadd.f32 %v2774, %v2850
        %v2852 = vpop.f32.mrb[0].mxu0
        %v2853 = vadd.f32 %v2778, %v2852
        %2854 = vdwg.mxu0
        %v2855 = vmul.f32 %v2851, 0.5
        %v2856 = vmul.f32 %v2853, 0.5
        %v2857 = vmul.f32 %v2851, 0.70710677
        %v2858 = vmul.f32 %v2853, 0.70710677
        %v2859 = verf.f32.pop %v2857
        %v2860 = verf.f32.pop %v2858
        %v2861 = vadd.f32 %v2859, 1.0
        %v2862 = vadd.f32 %v2860, 1.0
        %v2863 = vmul.f32 %v2855, %v2861
        %v2864 = vmul.f32 %v2856, %v2862
        %v2865 = vld [vmem:[%s11] sm:$0x3]
        %v2867 = vlaneseq
        %v2868 = vshrl.u32 %v2867, 7
        %v2869 = vsub.s32 0, %v2868
        %v2870 = vrot.slane %v2865, %v2869
        %v2871 = vlaneseq
        %v2872 = vshrl.u32 %v2871, 7
        %v2873 = vsub.s32 1, %v2872
        %v2874 = vrot.slane %v2865, %v2873
        %v2877 = vmul.f32 %v2863, %v2870
        %v2878 = vmul.f32 %v2864, %v2874
        %v2879 = vadd.f32 %v2877, %v2878
        %2880 = vadd.xlane.f32.xlu0 %v2879
        %v2881 = vpop.xlane.xlu0 %2880
        %v2882 = vld [vmem:[#allocation2] sm:$0x1]
        %v2884 = vlaneseq
        %v2885 = vshrl.u32 %v2884, 7
        %v2886 = vsub.s32 0, %v2885
        %v2887 = vrot.slane %v2882, %v2886
        %v2889 = vadd.f32 %v2881, %v2887
        %v2890 = vld [vmem:[#allocation6] sm:$0xff]
        %v2891 = vld [vmem:[#allocation6 + $0x8] sm:$0xff]
        %v2892 = vld [vmem:[#allocation6 + $0x10] sm:$0xff]
        %v2893 = vld [vmem:[#allocation6 + $0x18] sm:$0xff]
        %v2894 = vld [vmem:[%s14] sm:$0x1]
        %v2896 = vrot.slane %v2708, 7
        %2897 = vrot.lane.b32.xlu0 %v2896, 64
        %v2898 = vpop.permute.xlu0 %2897
        %v2899 = vsel %vm607, %v2898, 0
        %2901 = vmatprep.subr.mxu0 0.0
        %2902 = vmatpush1.msra.mxu0 %v2890
        %2903 = vmatprep.subr.mxu0 0.0
        %2904 = vmatpush1.msra.mxu0 %v2891
        %2905 = vmatprep.subr.mxu0 0.0
        %2906 = vmatpush1.msra.mxu0 %v2892
        %2907 = vmatprep.subr.mxu0 0.0
        %2908 = vmatpush1.msra.mxu0 %v2893
        %2909 = vmatprep.subr.mxu0 0.0
        %2910 = vmatpush1.msra.mxu0 0.0
        %2911 = vmatprep.subr.mxu0 0.0
        %2912 = vmatpush1.msra.mxu0 0.0
        %2913 = vmatprep.subr.mxu0 0.0
        %2914 = vmatpush1.msra.mxu0 0.0
        %2915 = vmatprep.subr.mxu0 0.0
        %2916 = vmatpush1.msra.mxu0 0.0
        %2917 = vmatprep.subr.mxu0 0.0
        %2918 = vmatpush1.msra.mxu0 0.0
        %2919 = vmatprep.subr.mxu0 0.0
        %2920 = vmatpush1.msra.mxu0 0.0
        %2921 = vmatprep.subr.mxu0 0.0
        %2922 = vmatpush1.msra.mxu0 0.0
        %2923 = vmatprep.subr.mxu0 0.0
        %2924 = vmatpush1.msra.mxu0 0.0
        %2925 = vmatprep.subr.mxu0 0.0
        %2926 = vmatpush1.msra.mxu0 0.0
        %2927 = vmatprep.subr.mxu0 0.0
        %2928 = vmatpush1.msra.mxu0 0.0
        %2929 = vmatprep.subr.mxu0 0.0
        %2930 = vmatpush1.msra.mxu0 0.0
        %2931 = vmatprep.subr.mxu0 0.0
        %2932 = vmatpush1.msra.mxu0 0.0
        %2933 = vmatprep.subr.mxu0 0.0
        %2934 = vmatpush1.msra.mxu0 0.0
        %2935 = vmatprep.subr.mxu0 0.0
        %2936 = vmatpush1.msra.mxu0 0.0
        %2937 = vmatprep.subr.mxu0 0.0
        %2938 = vmatpush1.msra.mxu0 0.0
        %2939 = vmatprep.subr.mxu0 0.0
        %2940 = vmatpush1.msra.mxu0 0.0
        %2941 = vmatprep.subr.mxu0 0.0
        %2942 = vmatpush1.msra.mxu0 0.0
        %2943 = vmatprep.subr.mxu0 0.0
        %2944 = vmatpush1.msra.mxu0 0.0
        %2945 = vmatprep.subr.mxu0 0.0
        %2946 = vmatpush1.msra.mxu0 0.0
        %2947 = vmatprep.subr.mxu0 0.0
        %2948 = vmatpush1.msra.mxu0 0.0
        %2949 = vmatprep.subr.mxu0 0.0
        %2950 = vmatpush1.msra.mxu0 0.0
        %2951 = vmatprep.subr.mxu0 0.0
        %2952 = vmatpush1.msra.mxu0 0.0
        %2953 = vmatprep.subr.mxu0 0.0
        %2954 = vmatpush1.msra.mxu0 0.0
        %2955 = vmatprep.subr.mxu0 0.0
        %2956 = vmatpush1.msra.mxu0 0.0
        %2957 = vmatprep.subr.mxu0 0.0
        %2958 = vmatpush1.msra.mxu0 0.0
        %2959 = vmatprep.subr.mxu0 0.0
        %2960 = vmatpush1.msra.mxu0 0.0
        %2961 = vmatprep.subr.mxu0 0.0
        %2962 = vmatpush1.msra.mxu0 0.0
        %2963 = vmatprep.subr.mxu0 0.0
        %2964 = vmatpush1.msra.mxu0 0.0
        %2965 = vmatprep.mubr.f32.mxu0 0.0
        %2966 = vmatmul.mubr.f32.gmra.mrb[0].mxu0 %v2899
        %v2967 = vpop.f32.mrb[0].mxu0
        %v2968 = vadd.f32 %v2894, %v2967
        %v2969 = vpop.f32.mrb[0].mxu0
        %2970 = vdwg.mxu0
        %v2971 = vmul.f32 %v2968, 0.5
        %v2972 = vmul.f32 %v2968, 0.70710677
        %v2973 = verf.f32.pop %v2972
        %v2974 = vadd.f32 %v2973, 1.0
        %v2975 = vmul.f32 %v2971, %v2974
        %v2976 = vld [vmem:[%s15] sm:$0x1]
        %v2977 = vmul.f32 %v2975, %v2976
        %v2978 = vsel %vm2709, %v2977, 0.0
        %2979 = vadd.xlane.f32.xlu0 %v2978
        %v2980 = vpop.xlane.xlu0 %2979
        %v2981 = vld [vmem:[#allocation3] sm:$0x1]
        %v2982 = vadd.f32 %v2980, %v2981
        %v2983 = vlaneseq
        %v2984 = vand.u32 %v2983, 127
        %v2985 = vlaneseq
        %v2986 = vshrl.u32 %v2985, 7
        %vm2987 = vcmp.eq.s32.totalorder %v2984, %v2986
        %2989 = vset.pattern.permute.xlu0 0
        %2990 = vperm.xlu0 %2989, %v2889
        %v2991 = vpop.permute.xlu0 %2990
        %v2993 = vsel %vm2987, %v2991, 0.0
        %v2994 = vrot.slane %v2993, 4
        %v2995 = vadd.f32 %v2993, %v2994
        %v2996 = vrot.slane %v2995, 2
        %v2997 = vadd.f32 %v2995, %v2996
        %v2998 = vrot.slane %v2997, 1
        %v2999 = vadd.f32 %v2997, %v2998
        %vm3000 = vcmp.eq.s32.totalorder %v2984, 8
        %3002 = vset.pattern.permute.xlu0 0
        %3003 = vperm.xlu0 %3002, %v2982
        %v3004 = vpop.permute.xlu0 %3003
        %v3006 = vsel %vm3000, %v3004, 0.0
        %v3007 = vadd.f32 %v2999, %v3006
        %3008 = vst [vmem:[%s578] sm:$0x1] %v3007
        %p3009 = scmp.lt.s32.totalorder %s34, 3
        %s3010 = scalar_select %p3009, %s34, 3
        %s3011 = scalar_lea.vmem %s17, %s3010
        // Predicated region
        $region97: #{scopeit_forward_batched.1} parent=87 // pred_check
          %p3012 = pneg %p414
        $region98: #{scopeit_forward_batched.1} parent=87 // pred_check_branch
          %3014 = sbr.rel (%p3012) target = $region100
        $region99: #{scopeit_forward_batched.1} parent=87 // pred_region
          _
        $region100: #{scopeit_forward_batched.1} parent=87 // pred_fallthru
          _
      $region88: #{scopeit_forward_batched.1} parent=5 // pred_fallthru
        _
      %p3015 = scmp.le.s32.totalorder 2, %s29
      // Predicated region
      $region101: #{scopeit_forward_batched.1} parent=5 // pred_check
        %p3016 = pneg %p3015
      $region102: #{scopeit_forward_batched.1} parent=5 // pred_check_branch
        %3018 = sbr.rel (%p3016) target = $region104
      $region103: #{scopeit_forward_batched.1} parent=5 // pred_region
        %s3019 = ssub.s32 %s29, 2
        // Predicated region
        $region105: #{scopeit_forward_batched.1} parent=103 // pred_check
          %p3020 = pneg %p420
        $region106: #{scopeit_forward_batched.1} parent=103 // pred_check_branch
          %3022 = sbr.rel (%p3020) target = $region108
        $region107: #{scopeit_forward_batched.1} parent=103 // pred_region
          %p3023 = scmp.lt.s32.totalorder %s35, 3
          %s3024 = scalar_select %p3023, %s35, 3
          %s3025 = scalar_lea.vmem %s17, %s3024
        $region108: #{scopeit_forward_batched.1} parent=103 // pred_fallthru
          _
      $region104: #{scopeit_forward_batched.1} parent=5 // pred_fallthru
        _
    $region6: #{scopeit_forward_batched.1} parent=1 // loop_footer
      %s33 = sadd.s32 1, %s29
    $region7: #{scopeit_forward_batched.1} parent=1 // loop_footer_branch
      %28 = sbr.rel target = $region3
    $region8: #{scopeit_forward_batched.1} parent=1 // loop_exit
      _
    %3026 = vsyncpa [#allocation5], 1
    %s3027 = scalar_lea.sflag [#allocation5], 1
    %3028 = vsyncpa %s3027, 1
    %3029 = vsyncpa [#allocation7], 1

</llo_original>
